<compile_context>
chip_gen: v5e
topology: v5e:2x2
jax: 0.10.0
libtpu: 0.0.40
codegen_flags: <defaults>
</compile_context>

<pallas_src>
import functools

import jax
import jax.numpy as jnp
from jax import lax
from jax.experimental import pallas as pl
from jax.experimental.pallas import tpu as pltpu

NUM_GROUPS = 32
EPS = 1e-6
MIB = 1024 * 1024
LOG2E = 1.4426950408889634  # folded into q so the softmax uses exp2 (EUP-native)


# ---------------------------------------------------------------------------
# Hardware / tiling helpers
# ---------------------------------------------------------------------------
@functools.lru_cache(maxsize=1)
def _phys_vmem_bytes():
    """Per-core physical VMEM (v5e/v6e: 128 MiB, v7x: 64 MiB); conservative fallback."""
    try:
        return int(pltpu.get_tpu_info().vmem_capacity_bytes)
    except Exception:
        return 64 * MIB


def _vmem_limit(need, phys):
    """Scoped-VMEM limit sized from actual need (with margin), capped below physical."""
    return int(min(phys * 9 // 10, max(32 * MIB, need * 3 // 2 + 4 * MIB)))


def _aligned_divisors(n, align, cap):
    """Multiples of `align` that divide n and are <= cap, descending."""
    out = []
    t = (min(cap, n) // align) * align
    while t >= align:
        if n % t == 0:
            out.append(t)
        t -= align
    return out


def _pick_hw_tile(hw, bytes_per_col, budget, cap=2048):
    """Largest 128-aligned divisor of hw whose VMEM footprint fits `budget`."""
    cands = _aligned_divisors(hw, 128, min(cap, max(budget // max(bytes_per_col, 1), 128)))
    # TODO(synk): when HW has no 128-aligned divisor the full-extent fallback may
    # exceed the budget for very large odd HW; a padded/masked path would fix it.
    return cands[0] if cands else hw


def _flash_tiles(b, hw, c, xbytes, budget):
    """Pick (tq, tkv) for the attention kernel.  Prefers a resident (full-extent)
    KV block so K/V are fetched from HBM once per batch instead of once per q-tile."""

    def need(tq, tkv):
        blocks = (tq * c * 2            # q (bf16)
                  + tkv * 2 * c * 2     # fused kv (bf16)
                  + tq * c * xbytes     # residual x (NCHW)
                  + tq * c * xbytes     # output (NCHW)
                  + c * c * 2 + c * 4)  # wp, bp
        scratch = tq * (c + 2) * 4      # m, l, acc (f32)
        inter = tq * tkv * 10           # s(f32) + p(f32) + p(bf16) intermediates
        return 2 * blocks + scratch + inter

    tq_cands = _aligned_divisors(hw, 128, 1024) or [hw]
    # v7x megacore: keep at least two parallel work units so both TCs get work.
    pref = [t for t in tq_cands if b * (hw // t) >= 2] or tq_cands

    for tq in pref:                      # 1) resident KV (best: KV read once/batch)
        if need(tq, hw) <= budget:
            return tq, hw, need(tq, hw)
    tkv_cands = _aligned_divisors(hw, 128, 2048) or [hw]
    for tq in pref:                      # 2) tiled KV, largest tq that fits
        for tkv in tkv_cands:
            if need(tq, tkv) <= budget:
                return tq, tkv, need(tq, tkv)
    tq, tkv = pref[-1], tkv_cands[-1]    # 3) smallest tiles (may exceed budget)
    return tq, tkv, need(tq, tkv)


# ---------------------------------------------------------------------------
# Kernel 1: GroupNorm statistics.  x is NCHW -> blocks are (1, C, t) with HW on
# lanes; per-channel sum / sum-of-squares are lane reductions accumulated in a
# VMEM scratch and stored once at the last HW tile.
# ---------------------------------------------------------------------------
def _gn_stats_kernel(x_ref, s_ref, acc_ref):
    @pl.when(pl.program_id(1) == 0)
    def _():
        acc_ref[...] = jnp.zeros_like(acc_ref)

    x = x_ref[0].astype(jnp.float32)                           # (C, t)
    acc_ref[:, 0:1] += jnp.sum(x, axis=-1, keepdims=True)      # sum
    acc_ref[:, 1:2] += jnp.sum(x * x, axis=-1, keepdims=True)  # sum of squares

    @pl.when(pl.program_id(1) == pl.num_programs(1) - 1)
    def _():
        s_ref[0] = acc_ref[...]


# ---------------------------------------------------------------------------
# Kernel 2: GroupNorm affine apply + fused QKV projection.
# grid = (B, HW_tiles), fully parallel.  Outputs q (B,HW,C) and kv (B,HW,2C) bf16.
# ---------------------------------------------------------------------------
def _gn_qkv_kernel(x_ref, aff_ref, wqkv_ref, bqkv_ref, q_ref, kv_ref):
    C = x_ref.shape[1]
    x_cm = x_ref[0].astype(jnp.float32)         # (C, t) channel-major
    a = aff_ref[0, :, 0:1]                      # (C, 1)  gamma * inv_std
    b = aff_ref[0, :, 1:2]                      # (C, 1)  beta  - mean * a
    xn_cm = x_cm * a + b                        # GroupNorm apply in f32
    xn = xn_cm.T.astype(jnp.bfloat16)           # (t, C): f32 XLU transpose, then bf16
    qkv = jnp.dot(xn, wqkv_ref[...],
                  preferred_element_type=jnp.float32) + bqkv_ref[...]   # (t, 3C)
    q_ref[0] = qkv[:, :C].astype(jnp.bfloat16)
    kv_ref[0] = qkv[:, C:].astype(jnp.bfloat16)


# ---------------------------------------------------------------------------
# Kernel 3: flash attention + proj_out + residual, NCHW residual in / NCHW out.
# grid = (B, q_tiles, kv_tiles); ("parallel", "parallel", "arbitrary").
# ---------------------------------------------------------------------------
def _flash_attn_kernel(q_ref, kv_ref, x_ref, wp_ref, bp_ref, o_ref,
                       m_sc, l_sc, acc_sc):
    C = q_ref.shape[-1]
    ki = pl.program_id(2)

    @pl.when(ki == 0)
    def _():
        m_sc[...] = jnp.full(m_sc.shape, -jnp.inf, jnp.float32)
        l_sc[...] = jnp.zeros_like(l_sc)
        acc_sc[...] = jnp.zeros_like(acc_sc)

    q = q_ref[0]                          # (tq, C) bf16; 1/sqrt(C)*log2(e) pre-folded
    k = kv_ref[0, :, :C]                  # (tkv, C) bf16
    v = kv_ref[0, :, C:]                  # (tkv, C) bf16

    s = lax.dot_general(q, k, (((1,), (1,)), ((), ())),
                        preferred_element_type=jnp.float32)     # (tq, tkv), log2 units

    m_prev = m_sc[...]
    m_new = jnp.maximum(m_prev, jnp.max(s, axis=-1, keepdims=True))
    alpha = jnp.exp2(m_prev - m_new)
    p = jnp.exp2(s - m_new)
    l_sc[...] = alpha * l_sc[...] + jnp.sum(p, axis=-1, keepdims=True)
    acc_sc[...] = alpha * acc_sc[...] + jnp.dot(
        p.astype(jnp.bfloat16), v, preferred_element_type=jnp.float32)  # (tq, C)
    m_sc[...] = m_new

    @pl.when(ki == pl.num_programs(2) - 1)
    def _():
        # Exact normalizer (runs once per q-tile; approx reciprocal not worth it).
        h = (acc_sc[...] * (1.0 / l_sc[...])).astype(jnp.bfloat16)        # (tq, C)
        # proj emitted channel-major so the NCHW output needs no transpose.
        proj = lax.dot_general(wp_ref[...], h, (((1,), (1,)), ((), ())),
                               preferred_element_type=jnp.float32)        # (C, tq)
        o_ref[0] = (x_ref[0].astype(jnp.float32) + proj + bp_ref[...]
                    ).astype(o_ref.dtype)


# ---------------------------------------------------------------------------
# Wrapper (public interface matches the PyTorch module: NCHW in / NCHW out).
# ---------------------------------------------------------------------------
@jax.jit
def attn_block(x_nchw, params):
    B, C, H, W = x_nchw.shape
    HW = H * W
    G = NUM_GROUPS
    assert C % G == 0, "GroupNorm(32) requires channels divisible by 32"
    # TODO(synk): support C that is a multiple of 32 but not 128 (needs sub-lane
    # slab handling in the fused qkv/kv tensors).
    assert C % 128 == 0, "this kernel requires channels to be a multiple of 128"
    cpg = C // G

    xbytes = x_nchw.dtype.itemsize
    phys = _phys_vmem_bytes()

    x = x_nchw.reshape(B, C, HW)          # free reshape; layout stays NCHW

    # ---- Kernel 1: per-channel sum / sum-of-squares --------------------------
    budget_12 = phys // 4
    bpc1 = 2 * C * xbytes + 16
    t1 = _pick_hw_tile(HW, bpc1, budget_12)
    stats = pl.pallas_call(
        _gn_stats_kernel,
        out_shape=jax.ShapeDtypeStruct((B, C, 2), jnp.float32),
        grid=(B, HW // t1),
        in_specs=[pl.BlockSpec((1, C, t1), lambda b, i: (b, 0, i))],
        out_specs=pl.BlockSpec((1, C, 2), lambda b, i: (b, 0, 0)),
        scratch_shapes=[pltpu.VMEM((C, 2), jnp.float32)],
        compiler_params=pltpu.CompilerParams(
            dimension_semantics=("parallel", "arbitrary"),
            vmem_limit_bytes=_vmem_limit(t1 * bpc1 + MIB, phys)),
    )(x)

    # Tiny per-(batch, group) math in plain JAX -> per-channel affine (a, b).
    # TODO(synk): E[x^2]-E[x]^2 in f32; switch to mean-shifted accumulation if
    # bit-level parity with PyTorch's two-pass GroupNorm is ever required.
    n = float(HW * cpg)
    sum_g = stats[:, :, 0].reshape(B, G, cpg).sum(-1)
    sumsq_g = stats[:, :, 1].reshape(B, G, cpg).sum(-1)
    mean_g = sum_g / n
    var_g = jnp.maximum(sumsq_g / n - mean_g * mean_g, 0.0)   # biased variance
    inv_g = lax.rsqrt(var_g + EPS)
    mean_c = jnp.repeat(mean_g, cpg, axis=1)                  # (B, C)
    inv_c = jnp.repeat(inv_g, cpg, axis=1)
    gamma = params["gamma"].reshape(1, C).astype(jnp.float32)
    beta = params["beta"].reshape(1, C).astype(jnp.float32)
    a_c = gamma * inv_c
    b_c = beta - mean_c * a_c
    affine = jnp.stack([a_c, b_c], axis=-1)                   # (B, C, 2)

    # ---- Weight prep: fuse QKV, fold 1/sqrt(C)*log2(e) into q, cast to bf16 --
    qscale = float(C) ** (-0.5) * LOG2E
    wqkv = jnp.concatenate(
        [params["wq"].T * qscale, params["wk"].T, params["wv"].T],
        axis=1).astype(jnp.bfloat16)                           # (C, 3C)
    bqkv = jnp.concatenate(
        [params["bq"] * qscale, params["bk"], params["bv"]]
    ).reshape(1, 3 * C).astype(jnp.float32)
    wp = params["wp"].astype(jnp.bfloat16)                     # (Cout, Cin), NT-form use
    bp = params["bp"].reshape(C, 1).astype(jnp.float32)

    # ---- Kernel 2: GroupNorm apply + fused QKV projection ---------------------
    bpc2 = (xbytes + 6) * 2 * C + 24 * C          # 2x-buffered blocks + f32 temporaries
    fixed2 = 2 * (C * 3 * C * 2 + 3 * C * 4 + C * 2 * 4)
    t2 = _pick_hw_tile(HW, bpc2, max(budget_12 - fixed2, 4 * MIB))
    q_hw, kv_hw = pl.pallas_call(
        _gn_qkv_kernel,
        out_shape=(jax.ShapeDtypeStruct((B, HW, C), jnp.bfloat16),
                   jax.ShapeDtypeStruct((B, HW, 2 * C), jnp.bfloat16)),
        grid=(B, HW // t2),
        in_specs=[
            pl.BlockSpec((1, C, t2), lambda b, i: (b, 0, i)),      # x (NCHW)
            pl.BlockSpec((1, C, 2), lambda b, i: (b, 0, 0)),       # affine (a, b)
            pl.BlockSpec((C, 3 * C), lambda b, i: (0, 0)),         # fused weights
            pl.BlockSpec((1, 3 * C), lambda b, i: (0, 0)),         # fused biases
        ],
        out_specs=(pl.BlockSpec((1, t2, C), lambda b, i: (b, i, 0)),
                   pl.BlockSpec((1, t2, 2 * C), lambda b, i: (b, i, 0))),
        compiler_params=pltpu.CompilerParams(
            dimension_semantics=("parallel", "parallel"),
            vmem_limit_bytes=_vmem_limit(t2 * bpc2 + fixed2, phys)),
    )(x, affine, wqkv, bqkv)

    # ---- Kernel 3: flash attention + proj_out + residual ----------------------
    # TODO(synk): pl.Buffered(1) on constant weight blocks / Buffered(3) on kv and
    # fp8 attention matmuls (v7x) left out for lowering-compatibility safety.
    tq_, tkv_, need3 = _flash_tiles(B, HW, C, xbytes, phys // 2)
    out = pl.pallas_call(
        _flash_attn_kernel,
        out_shape=jax.ShapeDtypeStruct((B, C, HW), x_nchw.dtype),
        grid=(B, HW // tq_, HW // tkv_),
        in_specs=[
            pl.BlockSpec((1, tq_, C), lambda b, qi, ki: (b, qi, 0)),       # q
            pl.BlockSpec((1, tkv_, 2 * C), lambda b, qi, ki: (b, ki, 0)),  # fused k|v
            pl.BlockSpec((1, C, tq_), lambda b, qi, ki: (b, 0, qi)),       # residual x
            pl.BlockSpec((C, C), lambda b, qi, ki: (0, 0)),                # wp
            pl.BlockSpec((C, 1), lambda b, qi, ki: (0, 0)),                # bp
        ],
        out_specs=pl.BlockSpec((1, C, tq_), lambda b, qi, ki: (b, 0, qi)),
        scratch_shapes=[
            pltpu.VMEM((tq_, 1), jnp.float32),     # running max (log2 units)
            pltpu.VMEM((tq_, 1), jnp.float32),     # running sum
            pltpu.VMEM((tq_, C), jnp.float32),     # output accumulator
        ],
        compiler_params=pltpu.CompilerParams(
            dimension_semantics=("parallel", "parallel", "arbitrary"),
            vmem_limit_bytes=_vmem_limit(need3, phys)),
    )(q_hw, kv_hw, x, wp, bp)

    return out.reshape(B, C, H, W)


# ---------------------------------------------------------------------------
# Parameters + pure-JAX reference (mirrors the PyTorch AttnBlock forward)
# ---------------------------------------------------------------------------
def init_params(key, C):
    ks = jax.random.split(key, 8)
    bound = 1.0 / jnp.sqrt(C)   # PyTorch Conv2d default uniform bound (k=1)
    u = lambda k, shape: jax.random.uniform(k, shape, jnp.float32, -bound, bound)
    return {
        "gamma": jnp.ones((C,), jnp.float32),
        "beta": jnp.zeros((C,), jnp.float32),
        "wq": u(ks[0], (C, C)), "bq": u(ks[1], (C,)),
        "wk": u(ks[2], (C, C)), "bk": u(ks[3], (C,)),
        "wv": u(ks[4], (C, C)), "bv": u(ks[5], (C,)),
        "wp": u(ks[6], (C, C)), "bp": u(ks[7], (C,)),
    }


def _reference(x, params):
    B, C, H, W = x.shape
    HW = H * W
    G = NUM_GROUPS
    xr = x.reshape(B, G, C // G, HW).astype(jnp.float32)
    mean = xr.mean(axis=(2, 3), keepdims=True)
    var = xr.var(axis=(2, 3), keepdims=True)
    h = ((xr - mean) / jnp.sqrt(var + EPS)).reshape(B, C, HW)
    h = h * params["gamma"][None, :, None] + params["beta"][None, :, None]

    def lin(w, b, t):
        return jnp.einsum("oc,bci->boi", w, t) + b[None, :, None]

    q = lin(params["wq"], params["bq"], h)
    k = lin(params["wk"], params["bk"], h)
    v = lin(params["wv"], params["bv"], h)
    w_ = jnp.einsum("bci,bcj->bij", q, k) * (float(C) ** -0.5)
    w_ = jax.nn.softmax(w_, axis=2)
    h_ = jnp.einsum("bcj,bij->bci", v, w_)
    h_ = lin(params["wp"], params["bp"], h_)
    return x + h_.reshape(B, C, H, W)


if __name__ == "__main__":
    key = jax.random.PRNGKey(0)
    kx, kp = jax.random.split(key)

    # C divisible by 32 (GroupNorm) and 128 (lane slabs); HW a multiple of 128.
    B, C, H, W = 2, 128, 16, 16
    x = jax.random.normal(kx, (B, C, H, W), jnp.float32)
    params = init_params(kp, C)

    y = attn_block(x, params)
    jax.block_until_ready(y)
    assert y.shape == (B, C, H, W)

    err = float(jnp.max(jnp.abs(y - _reference(x, params))))
    assert err < 1e-1, f"max abs error vs reference: {err}"
    print("KERNEL_OK")
</pallas_src>

<mosaic_0001>
module attributes {stable_mosaic.version = 11 : i64} {
  func.func @_gn_stats_kernel(%arg0: i32, %arg1: i32, %arg2: memref<1x128x256xf32, #tpu.memory_space<vmem>>, %arg3: memref<1x128x2xf32, #tpu.memory_space<vmem>>, %arg4: memref<128x2xf32, #tpu.memory_space<vmem>>) attributes {dimension_semantics = [#tpu.dimension_semantics<parallel>, #tpu.dimension_semantics<arbitrary>], iteration_bounds = array<i64: 2, 1>, scalar_prefetch = 0 : i64, scratch_operands = 1 : i64, tpu.core_type = #tpu.core_type<tc>, window_params = [{transform_indices = @transform_0, window_bounds = array<i64: 1, 128, 256>}, {transform_indices = @transform_1, window_bounds = array<i64: 1, 128, 2>}]} {
    %c0_i32 = arith.constant 0 : i32
    %0 = arith.cmpi eq, %arg1, %c0_i32 : i32
    %1 = arith.extui %0 : i1 to i32
    %c0_i32_0 = arith.constant 0 : i32
    %2 = arith.cmpi ne, %1, %c0_i32_0 : i32
    scf.if %2 {
      %cst_13 = arith.constant 0.000000e+00 : f32
      %19 = vector.broadcast %cst_13 : f32 to vector<128x2xf32>
      %c0_14 = arith.constant 0 : index
      %c0_15 = arith.constant 0 : index
      %20 = vector.load %arg4[%c0_14, %c0_15] : memref<128x2xf32, #tpu.memory_space<vmem>>, vector<128x2xf32>
      tpu.vector_store %arg4[%c0_14, %c0_15], %19 {strides = array<i32>} : memref<128x2xf32, #tpu.memory_space<vmem>>, vector<128x2xf32>,
    } else {
    }
    %c0 = arith.constant 0 : index
    %c0_1 = arith.constant 0 : index
    %c0_2 = arith.constant 0 : index
    %3 = vector.load %arg2[%c0, %c0_1, %c0_2] : memref<1x128x256xf32, #tpu.memory_space<vmem>>, vector<1x128x256xf32>
    %4 = vector.shape_cast %3 : vector<1x128x256xf32> to vector<128x256xf32>
    %c0_3 = arith.constant 0 : index
    %c0_4 = arith.constant 0 : index
    %5 = vector.load %arg4[%c0_3, %c0_4] : memref<128x2xf32, #tpu.memory_space<vmem>>, vector<128x1xf32>
    %cst = arith.constant dense<0.000000e+00> : vector<128xf32>
    %6 = vector.multi_reduction <add>, %4, %cst [1] : vector<128x256xf32> to vector<128xf32>
    %7 = vector.shape_cast %6 : vector<128xf32> to vector<128x1xf32>
    %8 = arith.addf %5, %7 : vector<128x1xf32>
    %c0_5 = arith.constant 0 : index
    %c0_6 = arith.constant 0 : index
    %9 = vector.load %arg4[%c0_5, %c0_6] : memref<128x2xf32, #tpu.memory_space<vmem>>, vector<128x1xf32>
    tpu.vector_store %arg4[%c0_5, %c0_6], %8 {strides = array<i32>} : memref<128x2xf32, #tpu.memory_space<vmem>>, vector<128x1xf32>,
    %c0_7 = arith.constant 0 : index
    %c1 = arith.constant 1 : index
    %10 = vector.load %arg4[%c0_7, %c1] : memref<128x2xf32, #tpu.memory_space<vmem>>, vector<128x1xf32>
    %11 = arith.mulf %4, %4 : vector<128x256xf32>
    %cst_8 = arith.constant dense<0.000000e+00> : vector<128xf32>
    %12 = vector.multi_reduction <add>, %11, %cst_8 [1] : vector<128x256xf32> to vector<128xf32>
    %13 = vector.shape_cast %12 : vector<128xf32> to vector<128x1xf32>
    %14 = arith.addf %10, %13 : vector<128x1xf32>
    %c0_9 = arith.constant 0 : index
    %c1_10 = arith.constant 1 : index
    %15 = vector.load %arg4[%c0_9, %c1_10] : memref<128x2xf32, #tpu.memory_space<vmem>>, vector<128x1xf32>
    tpu.vector_store %arg4[%c0_9, %c1_10], %14 {strides = array<i32>} : memref<128x2xf32, #tpu.memory_space<vmem>>, vector<128x1xf32>,
    %c0_i32_11 = arith.constant 0 : i32
    %16 = arith.cmpi eq, %arg1, %c0_i32_11 : i32
    %17 = arith.extui %16 : i1 to i32
    %c0_i32_12 = arith.constant 0 : i32
    %18 = arith.cmpi ne, %17, %c0_i32_12 : i32
    scf.if %18 {
      %c0_13 = arith.constant 0 : index
      %c0_14 = arith.constant 0 : index
      %19 = vector.load %arg4[%c0_13, %c0_14] : memref<128x2xf32, #tpu.memory_space<vmem>>, vector<128x2xf32>
      %c0_15 = arith.constant 0 : index
      %c0_16 = arith.constant 0 : index
      %c0_17 = arith.constant 0 : index
      %20 = vector.load %arg3[%c0_15, %c0_16, %c0_17] : memref<1x128x2xf32, #tpu.memory_space<vmem>>, vector<1x128x2xf32>
      %21 = vector.shape_cast %20 : vector<1x128x2xf32> to vector<128x2xf32>
      %22 = vector.shape_cast %19 : vector<128x2xf32> to vector<1x128x2xf32>
      tpu.vector_store %arg3[%c0_15, %c0_16, %c0_17], %22 {strides = array<i32>} : memref<1x128x2xf32, #tpu.memory_space<vmem>>, vector<1x128x2xf32>,
    } else {
    }
    return
  }
  func.func @transform_0(%arg0: i32, %arg1: i32) -> (i32, i32, i32) {
    %c0_i32 = arith.constant 0 : i32
    %c0_i32_0 = arith.constant 0 : i32
    return %arg0, %c0_i32, %arg1 : i32, i32, i32
  }
  func.func @transform_1(%arg0: i32, %arg1: i32) -> (i32, i32, i32) {
    %c0_i32 = arith.constant 0 : i32
    %c0_i32_0 = arith.constant 0 : i32
    %c0_i32_1 = arith.constant 0 : i32
    return %arg0, %c0_i32, %c0_i32_0 : i32, i32, i32
  }
}

module attributes {stable_mosaic.version = 11 : i64} {
  func.func @_gn_qkv_kernel(%arg0: i32, %arg1: i32, %arg2: memref<1x128x256xf32, #tpu.memory_space<vmem>>, %arg3: memref<1x128x2xf32, #tpu.memory_space<vmem>>, %arg4: memref<128x384xbf16, #tpu.memory_space<vmem>>, %arg5: memref<1x384xf32, #tpu.memory_space<vmem>>, %arg6: memref<1x256x128xbf16, #tpu.memory_space<vmem>>, %arg7: memref<1x256x256xbf16, #tpu.memory_space<vmem>>) attributes {dimension_semantics = [#tpu.dimension_semantics<parallel>, #tpu.dimension_semantics<parallel>], iteration_bounds = array<i64: 2, 1>, scalar_prefetch = 0 : i64, scratch_operands = 0 : i64, tpu.core_type = #tpu.core_type<tc>, window_params = [{transform_indices = @transform_0, window_bounds = array<i64: 1, 128, 256>}, {transform_indices = @transform_1, window_bounds = array<i64: 1, 128, 2>}, {pipeline_mode = #tpu.pipeline_mode<synchronous>, transform_indices = @transform_2, window_bounds = array<i64: 128, 384>}, {pipeline_mode = #tpu.pipeline_mode<synchronous>, transform_indices = @transform_3, window_bounds = array<i64: 1, 384>}, {transform_indices = @transform_4, window_bounds = array<i64: 1, 256, 128>}, {transform_indices = @transform_5, window_bounds = array<i64: 1, 256, 256>}]} {
    %c0 = arith.constant 0 : index
    %c0_0 = arith.constant 0 : index
    %c0_1 = arith.constant 0 : index
    %0 = vector.load %arg2[%c0, %c0_0, %c0_1] : memref<1x128x256xf32, #tpu.memory_space<vmem>>, vector<1x128x256xf32>
    %1 = vector.shape_cast %0 : vector<1x128x256xf32> to vector<128x256xf32>
    %c0_2 = arith.constant 0 : index
    %c0_3 = arith.constant 0 : index
    %c0_4 = arith.constant 0 : index
    %2 = vector.load %arg3[%c0_2, %c0_3, %c0_4] : memref<1x128x2xf32, #tpu.memory_space<vmem>>, vector<1x128x1xf32>
    %3 = vector.shape_cast %2 : vector<1x128x1xf32> to vector<128x1xf32>
    %c0_5 = arith.constant 0 : index
    %c0_6 = arith.constant 0 : index
    %c1 = arith.constant 1 : index
    %4 = vector.load %arg3[%c0_5, %c0_6, %c1] : memref<1x128x2xf32, #tpu.memory_space<vmem>>, vector<1x128x1xf32>
    %5 = vector.shape_cast %4 : vector<1x128x1xf32> to vector<128x1xf32>
    %6 = vector.broadcast %3 : vector<128x1xf32> to vector<128x256xf32>
    %7 = arith.mulf %1, %6 : vector<128x256xf32>
    %8 = vector.broadcast %5 : vector<128x1xf32> to vector<128x256xf32>
    %9 = arith.addf %7, %8 : vector<128x256xf32>
    %10 = tpu.transpose %9, [1, 0] : vector<128x256xf32> -> vector<256x128xf32>
    %11 = arith.truncf %10 : vector<256x128xf32> to vector<256x128xbf16>
    %c0_7 = arith.constant 0 : index
    %c0_8 = arith.constant 0 : index
    %12 = vector.load %arg4[%c0_7, %c0_8] : memref<128x384xbf16, #tpu.memory_space<vmem>>, vector<128x384xbf16>
    %cst = arith.constant dense<0.000000e+00> : vector<256x384xf32>
    %13 = tpu.matmul %11, %12, %cst {dimension_numbers = #tpu.dot_dimension_numbers<[1], [0], [0], [1], [0, 0, 1, 1], [], []>} : vector<256x128xbf16>, vector<128x384xbf16>, vector<256x384xf32> -> vector<256x384xf32>
    %c0_9 = arith.constant 0 : index
    %c0_10 = arith.constant 0 : index
    %14 = vector.load %arg5[%c0_9, %c0_10] : memref<1x384xf32, #tpu.memory_space<vmem>>, vector<1x384xf32>
    %15 = vector.broadcast %14 : vector<1x384xf32> to vector<256x384xf32>
    %16 = arith.addf %13, %15 : vector<256x384xf32>
    %17 = vector.extract_strided_slice %16 {offsets = [0, 0], sizes = [256, 128], strides = [1, 1]} : vector<256x384xf32> to vector<256x128xf32>
    %18 = arith.truncf %17 : vector<256x128xf32> to vector<256x128xbf16>
    %c0_11 = arith.constant 0 : index
    %c0_12 = arith.constant 0 : index
    %c0_13 = arith.constant 0 : index
    %19 = vector.load %arg6[%c0_11, %c0_12, %c0_13] : memref<1x256x128xbf16, #tpu.memory_space<vmem>>, vector<1x256x128xbf16>
    %20 = vector.shape_cast %19 : vector<1x256x128xbf16> to vector<256x128xbf16>
    %21 = vector.shape_cast %18 : vector<256x128xbf16> to vector<1x256x128xbf16>
    tpu.vector_store %arg6[%c0_11, %c0_12, %c0_13], %21 {strides = array<i32>} : memref<1x256x128xbf16, #tpu.memory_space<vmem>>, vector<1x256x128xbf16>,
    %22 = vector.extract_strided_slice %16 {offsets = [0, 128], sizes = [256, 256], strides = [1, 1]} : vector<256x384xf32> to vector<256x256xf32>
    %23 = arith.truncf %22 : vector<256x256xf32> to vector<256x256xbf16>
    %c0_14 = arith.constant 0 : index
    %c0_15 = arith.constant 0 : index
    %c0_16 = arith.constant 0 : index
    %24 = vector.load %arg7[%c0_14, %c0_15, %c0_16] : memref<1x256x256xbf16, #tpu.memory_space<vmem>>, vector<1x256x256xbf16>
    %25 = vector.shape_cast %24 : vector<1x256x256xbf16> to vector<256x256xbf16>
    %26 = vector.shape_cast %23 : vector<256x256xbf16> to vector<1x256x256xbf16>
    tpu.vector_store %arg7[%c0_14, %c0_15, %c0_16], %26 {strides = array<i32>} : memref<1x256x256xbf16, #tpu.memory_space<vmem>>, vector<1x256x256xbf16>,
    return
  }
  func.func @transform_0(%arg0: i32, %arg1: i32) -> (i32, i32, i32) {
    %c0_i32 = arith.constant 0 : i32
    %c0_i32_0 = arith.constant 0 : i32
    return %arg0, %c0_i32, %arg1 : i32, i32, i32
  }
  func.func @transform_1(%arg0: i32, %arg1: i32) -> (i32, i32, i32) {
    %c0_i32 = arith.constant 0 : i32
    %c0_i32_0 = arith.constant 0 : i32
    %c0_i32_1 = arith.constant 0 : i32
    return %arg0, %c0_i32, %c0_i32_0 : i32, i32, i32
  }
  func.func @transform_2(%arg0: i32, %arg1: i32) -> (i32, i32) {
    %c0_i32 = arith.constant 0 : i32
    %c0_i32_0 = arith.constant 0 : i32
    %c0_i32_1 = arith.constant 0 : i32
    return %c0_i32, %c0_i32_0 : i32, i32
  }
  func.func @transform_3(%arg0: i32, %arg1: i32) -> (i32, i32) {
    %c0_i32 = arith.constant 0 : i32
    %c0_i32_0 = arith.constant 0 : i32
    %c0_i32_1 = arith.constant 0 : i32
    return %c0_i32, %c0_i32_0 : i32, i32
  }
  func.func @transform_4(%arg0: i32, %arg1: i32) -> (i32, i32, i32) {
    %c0_i32 = arith.constant 0 : i32
    %c0_i32_0 = arith.constant 0 : i32
    return %arg0, %arg1, %c0_i32 : i32, i32, i32
  }
  func.func @transform_5(%arg0: i32, %arg1: i32) -> (i32, i32, i32) {
    %c0_i32 = arith.constant 0 : i32
    %c0_i32_0 = arith.constant 0 : i32
    return %arg0, %arg1, %c0_i32 : i32, i32, i32
  }
}

module attributes {stable_mosaic.version = 11 : i64} {
  func.func @_flash_attn_kernel(%arg0: i32, %arg1: i32, %arg2: i32, %arg3: memref<1x256x128xbf16, #tpu.memory_space<vmem>>, %arg4: memref<1x256x256xbf16, #tpu.memory_space<vmem>>, %arg5: memref<1x128x256xf32, #tpu.memory_space<vmem>>, %arg6: memref<128x128xbf16, #tpu.memory_space<vmem>>, %arg7: memref<128x1xf32, #tpu.memory_space<vmem>>, %arg8: memref<1x128x256xf32, #tpu.memory_space<vmem>>, %arg9: memref<256x1xf32, #tpu.memory_space<vmem>>, %arg10: memref<256x1xf32, #tpu.memory_space<vmem>>, %arg11: memref<256x128xf32, #tpu.memory_space<vmem>>) attributes {dimension_semantics = [#tpu.dimension_semantics<parallel>, #tpu.dimension_semantics<parallel>, #tpu.dimension_semantics<arbitrary>], iteration_bounds = array<i64: 2, 1, 1>, scalar_prefetch = 0 : i64, scratch_operands = 3 : i64, tpu.core_type = #tpu.core_type<tc>, window_params = [{transform_indices = @transform_0, window_bounds = array<i64: 1, 256, 128>}, {transform_indices = @transform_1, window_bounds = array<i64: 1, 256, 256>}, {transform_indices = @transform_2, window_bounds = array<i64: 1, 128, 256>}, {pipeline_mode = #tpu.pipeline_mode<synchronous>, transform_indices = @transform_3, window_bounds = array<i64: 128, 128>}, {pipeline_mode = #tpu.pipeline_mode<synchronous>, transform_indices = @transform_4, window_bounds = array<i64: 128, 1>}, {transform_indices = @transform_5, window_bounds = array<i64: 1, 128, 256>}]} {
    %c0_i32 = arith.constant 0 : i32
    %0 = arith.cmpi eq, %arg2, %c0_i32 : i32
    %1 = arith.extui %0 : i1 to i32
    %c0_i32_0 = arith.constant 0 : i32
    %2 = arith.cmpi ne, %1, %c0_i32_0 : i32
    scf.if %2 {
      %cst_25 = arith.constant 0xFF800000 : f32
      %36 = vector.broadcast %cst_25 : f32 to vector<256x1xf32>
      %c0_26 = arith.constant 0 : index
      %c0_27 = arith.constant 0 : index
      %37 = vector.load %arg9[%c0_26, %c0_27] : memref<256x1xf32, #tpu.memory_space<vmem>>, vector<256x1xf32>
      tpu.vector_store %arg9[%c0_26, %c0_27], %36 {strides = array<i32>} : memref<256x1xf32, #tpu.memory_space<vmem>>, vector<256x1xf32>,
      %cst_28 = arith.constant 0.000000e+00 : f32
      %38 = vector.broadcast %cst_28 : f32 to vector<256x1xf32>
      %c0_29 = arith.constant 0 : index
      %c0_30 = arith.constant 0 : index
      %39 = vector.load %arg10[%c0_29, %c0_30] : memref<256x1xf32, #tpu.memory_space<vmem>>, vector<256x1xf32>
      tpu.vector_store %arg10[%c0_29, %c0_30], %38 {strides = array<i32>} : memref<256x1xf32, #tpu.memory_space<vmem>>, vector<256x1xf32>,
      %cst_31 = arith.constant 0.000000e+00 : f32
      %40 = vector.broadcast %cst_31 : f32 to vector<256x128xf32>
      %c0_32 = arith.constant 0 : index
      %c0_33 = arith.constant 0 : index
      %41 = vector.load %arg11[%c0_32, %c0_33] : memref<256x128xf32, #tpu.memory_space<vmem>>, vector<256x128xf32>
      tpu.vector_store %arg11[%c0_32, %c0_33], %40 {strides = array<i32>} : memref<256x128xf32, #tpu.memory_space<vmem>>, vector<256x128xf32>,
    } else {
    }
    %c0 = arith.constant 0 : index
    %c0_1 = arith.constant 0 : index
    %c0_2 = arith.constant 0 : index
    %3 = vector.load %arg3[%c0, %c0_1, %c0_2] : memref<1x256x128xbf16, #tpu.memory_space<vmem>>, vector<1x256x128xbf16>
    %4 = vector.shape_cast %3 : vector<1x256x128xbf16> to vector<256x128xbf16>
    %c0_3 = arith.constant 0 : index
    %c0_4 = arith.constant 0 : index
    %c0_5 = arith.constant 0 : index
    %5 = vector.load %arg4[%c0_3, %c0_4, %c0_5] : memref<1x256x256xbf16, #tpu.memory_space<vmem>>, vector<1x256x128xbf16>
    %6 = vector.shape_cast %5 : vector<1x256x128xbf16> to vector<256x128xbf16>
    %c0_6 = arith.constant 0 : index
    %c0_7 = arith.constant 0 : index
    %c128 = arith.constant 128 : index
    %7 = vector.load %arg4[%c0_6, %c0_7, %c128] : memref<1x256x256xbf16, #tpu.memory_space<vmem>>, vector<1x256x128xbf16>
    %8 = vector.shape_cast %7 : vector<1x256x128xbf16> to vector<256x128xbf16>
    %cst = arith.constant dense<0.000000e+00> : vector<256x256xf32>
    %9 = tpu.matmul %4, %6, %cst {dimension_numbers = #tpu.dot_dimension_numbers<[1], [1], [0], [0], [0, 0, 1, 0], [], []>} : vector<256x128xbf16>, vector<256x128xbf16>, vector<256x256xf32> -> vector<256x256xf32>
    %c0_8 = arith.constant 0 : index
    %c0_9 = arith.constant 0 : index
    %10 = vector.load %arg9[%c0_8, %c0_9] : memref<256x1xf32, #tpu.memory_space<vmem>>, vector<256x1xf32>
    %cst_10 = arith.constant dense<0xFF800000> : vector<256xf32>
    %11 = vector.multi_reduction <maximumf>, %9, %cst_10 [1] : vector<256x256xf32> to vector<256xf32>
    %12 = vector.shape_cast %11 : vector<256xf32> to vector<256x1xf32>
    %13 = arith.maximumf %10, %12 : vector<256x1xf32>
    %14 = arith.subf %10, %13 : vector<256x1xf32>
    %15 = math.exp2 %14 : vector<256x1xf32>
    %16 = vector.broadcast %13 : vector<256x1xf32> to vector<256x256xf32>
    %17 = arith.subf %9, %16 : vector<256x256xf32>
    %18 = math.exp2 %17 : vector<256x256xf32>
    %c0_11 = arith.constant 0 : index
    %c0_12 = arith.constant 0 : index
    %19 = vector.load %arg10[%c0_11, %c0_12] : memref<256x1xf32, #tpu.memory_space<vmem>>, vector<256x1xf32>
    %20 = arith.mulf %15, %19 : vector<256x1xf32>
    %cst_13 = arith.constant dense<0.000000e+00> : vector<256xf32>
    %21 = vector.multi_reduction <add>, %18, %cst_13 [1] : vector<256x256xf32> to vector<256xf32>
    %22 = vector.shape_cast %21 : vector<256xf32> to vector<256x1xf32>
    %23 = arith.addf %20, %22 : vector<256x1xf32>
    %c0_14 = arith.constant 0 : index
    %c0_15 = arith.constant 0 : index
    %24 = vector.load %arg10[%c0_14, %c0_15] : memref<256x1xf32, #tpu.memory_space<vmem>>, vector<256x1xf32>
    tpu.vector_store %arg10[%c0_14, %c0_15], %23 {strides = array<i32>} : memref<256x1xf32, #tpu.memory_space<vmem>>, vector<256x1xf32>,
    %c0_16 = arith.constant 0 : index
    %c0_17 = arith.constant 0 : index
    %25 = vector.load %arg11[%c0_16, %c0_17] : memref<256x128xf32, #tpu.memory_space<vmem>>, vector<256x128xf32>
    %26 = vector.broadcast %15 : vector<256x1xf32> to vector<256x128xf32>
    %27 = arith.mulf %26, %25 : vector<256x128xf32>
    %28 = arith.truncf %18 : vector<256x256xf32> to vector<256x256xbf16>
    %cst_18 = arith.constant dense<0.000000e+00> : vector<256x128xf32>
    %29 = tpu.matmul %28, %8, %cst_18 {dimension_numbers = #tpu.dot_dimension_numbers<[1], [0], [0], [1], [0, 0, 1, 1], [], []>} : vector<256x256xbf16>, vector<256x128xbf16>, vector<256x128xf32> -> vector<256x128xf32>
    %30 = arith.addf %27, %29 : vector<256x128xf32>
    %c0_19 = arith.constant 0 : index
    %c0_20 = arith.constant 0 : index
    %31 = vector.load %arg11[%c0_19, %c0_20] : memref<256x128xf32, #tpu.memory_space<vmem>>, vector<256x128xf32>
    tpu.vector_store %arg11[%c0_19, %c0_20], %30 {strides = array<i32>} : memref<256x128xf32, #tpu.memory_space<vmem>>, vector<256x128xf32>,
    %c0_21 = arith.constant 0 : index
    %c0_22 = arith.constant 0 : index
    %32 = vector.load %arg9[%c0_21, %c0_22] : memref<256x1xf32, #tpu.memory_space<vmem>>, vector<256x1xf32>
    tpu.vector_store %arg9[%c0_21, %c0_22], %13 {strides = array<i32>} : memref<256x1xf32, #tpu.memory_space<vmem>>, vector<256x1xf32>,
    %c0_i32_23 = arith.constant 0 : i32
    %33 = arith.cmpi eq, %arg2, %c0_i32_23 : i32
    %34 = arith.extui %33 : i1 to i32
    %c0_i32_24 = arith.constant 0 : i32
    %35 = arith.cmpi ne, %34, %c0_i32_24 : i32
    scf.if %35 {
      %c0_25 = arith.constant 0 : index
      %c0_26 = arith.constant 0 : index
      %36 = vector.load %arg11[%c0_25, %c0_26] : memref<256x128xf32, #tpu.memory_space<vmem>>, vector<256x128xf32>
      %c0_27 = arith.constant 0 : index
      %c0_28 = arith.constant 0 : index
      %37 = vector.load %arg10[%c0_27, %c0_28] : memref<256x1xf32, #tpu.memory_space<vmem>>, vector<256x1xf32>
      %cst_29 = arith.constant 1.000000e+00 : f32
      %38 = vector.broadcast %cst_29 : f32 to vector<256x1xf32>
      %39 = arith.divf %38, %37 : vector<256x1xf32>
      %40 = vector.broadcast %39 : vector<256x1xf32> to vector<256x128xf32>
      %41 = arith.mulf %36, %40 : vector<256x128xf32>
      %42 = arith.truncf %41 : vector<256x128xf32> to vector<256x128xbf16>
      %c0_30 = arith.constant 0 : index
      %c0_31 = arith.constant 0 : index
      %43 = vector.load %arg6[%c0_30, %c0_31] : memref<128x128xbf16, #tpu.memory_space<vmem>>, vector<128x128xbf16>
      %cst_32 = arith.constant dense<0.000000e+00> : vector<128x256xf32>
      %44 = tpu.matmul %43, %42, %cst_32 {dimension_numbers = #tpu.dot_dimension_numbers<[1], [1], [0], [0], [0, 0, 1, 0], [], []>} : vector<128x128xbf16>, vector<256x128xbf16>, vector<128x256xf32> -> vector<128x256xf32>
      %c0_33 = arith.constant 0 : index
      %c0_34 = arith.constant 0 : index
      %c0_35 = arith.constant 0 : index
      %45 = vector.load %arg5[%c0_33, %c0_34, %c0_35] : memref<1x128x256xf32, #tpu.memory_space<vmem>>, vector<1x128x256xf32>
      %46 = vector.shape_cast %45 : vector<1x128x256xf32> to vector<128x256xf32>
      %47 = arith.addf %46, %44 : vector<128x256xf32>
      %c0_36 = arith.constant 0 : index
      %c0_37 = arith.constant 0 : index
      %48 = vector.load %arg7[%c0_36, %c0_37] : memref<128x1xf32, #tpu.memory_space<vmem>>, vector<128x1xf32>
      %49 = vector.broadcast %48 : vector<128x1xf32> to vector<128x256xf32>
      %50 = arith.addf %47, %49 : vector<128x256xf32>
      %c0_38 = arith.constant 0 : index
      %c0_39 = arith.constant 0 : index
      %c0_40 = arith.constant 0 : index
      %51 = vector.load %arg8[%c0_38, %c0_39, %c0_40] : memref<1x128x256xf32, #tpu.memory_space<vmem>>, vector<1x128x256xf32>
      %52 = vector.shape_cast %51 : vector<1x128x256xf32> to vector<128x256xf32>
      %53 = vector.shape_cast %50 : vector<128x256xf32> to vector<1x128x256xf32>
      tpu.vector_store %arg8[%c0_38, %c0_39, %c0_40], %53 {strides = array<i32>} : memref<1x128x256xf32, #tpu.memory_space<vmem>>, vector<1x128x256xf32>,
    } else {
    }
    return
  }
  func.func @transform_0(%arg0: i32, %arg1: i32, %arg2: i32) -> (i32, i32, i32) {
    %c0_i32 = arith.constant 0 : i32
    %c0_i32_0 = arith.constant 0 : i32
    return %arg0, %arg1, %c0_i32 : i32, i32, i32
  }
  func.func @transform_1(%arg0: i32, %arg1: i32, %arg2: i32) -> (i32, i32, i32) {
    %c0_i32 = arith.constant 0 : i32
    %c0_i32_0 = arith.constant 0 : i32
    return %arg0, %arg2, %c0_i32 : i32, i32, i32
  }
  func.func @transform_2(%arg0: i32, %arg1: i32, %arg2: i32) -> (i32, i32, i32) {
    %c0_i32 = arith.constant 0 : i32
    %c0_i32_0 = arith.constant 0 : i32
    return %arg0, %c0_i32, %arg1 : i32, i32, i32
  }
  func.func @transform_3(%arg0: i32, %arg1: i32, %arg2: i32) -> (i32, i32) {
    %c0_i32 = arith.constant 0 : i32
    %c0_i32_0 = arith.constant 0 : i32
    %c0_i32_1 = arith.constant 0 : i32
    return %c0_i32, %c0_i32_0 : i32, i32
  }
  func.func @transform_4(%arg0: i32, %arg1: i32, %arg2: i32) -> (i32, i32) {
    %c0_i32 = arith.constant 0 : i32
    %c0_i32_0 = arith.constant 0 : i32
    %c0_i32_1 = arith.constant 0 : i32
    return %c0_i32, %c0_i32_0 : i32, i32
  }
  func.func @transform_5(%arg0: i32, %arg1: i32, %arg2: i32) -> (i32, i32, i32) {
    %c0_i32 = arith.constant 0 : i32
    %c0_i32_0 = arith.constant 0 : i32
    return %arg0, %c0_i32, %arg1 : i32, i32, i32
  }
}

</mosaic_0001>

<llo_original>
// kernel: squeeze.3
$region0: #{squeeze.3}
  %s0 = inlined_call_operand.vmem [shape: f32[2,128], index: 0, kind: input, shape index: {}]
  %s1 = inlined_call_operand.vmem [shape: f32[2,32,4], index: 1, kind: output, shape index: {}]
  $region1: #{squeeze.3} parent=0
    #allocation0 [shape = 'u8[4096]{0}', space=vmem, size = 0x1000, scoped, tag = 'scoped mem for input reshape']
    %s3 = ssub.s32 4, 1
    %v4 = vld [vmem:[%s0] sm:%s3]
    %5 = vst [vmem:[#allocation0] sm:%s3] %v4
    %v6 = vld [vmem:[#allocation0] sm:$0x3]
    %vm7 = vcmask 31744
    %8 = vst.msk [vmem:[%s1] sm:$0x1] %vm7, %v6
    %s9 = scalar_lea.vmem %s1, 31
    %10 = vst.msk [vmem:[%s9] sm:$0x2] %vm7, %v6
    %v11 = vld [vmem:[#allocation0] sm:$0x3]
    %12 = vrot.lane.b32.xlu0 %v11, 124
    %v13 = vpop.permute.xlu0 %12
    %vm14 = vcmask 31744
    %s15 = scalar_lea.vmem %s1, 1
    %16 = vst.msk [vmem:[%s15] sm:$0x1] %vm14, %v13
    %s17 = scalar_lea.vmem %s1, 32
    %18 = vst.msk [vmem:[%s17] sm:$0x2] %vm14, %v13
    %v19 = vld [vmem:[#allocation0] sm:$0x3]
    %20 = vrot.lane.b32.xlu0 %v19, 120
    %v21 = vpop.permute.xlu0 %20
    %vm22 = vcmask 31744
    %s23 = scalar_lea.vmem %s1, 2
    %24 = vst.msk [vmem:[%s23] sm:$0x1] %vm22, %v21
    %s25 = scalar_lea.vmem %s1, 33
    %26 = vst.msk [vmem:[%s25] sm:$0x2] %vm22, %v21
    %v27 = vld [vmem:[#allocation0] sm:$0x3]
    %28 = vrot.lane.b32.xlu0 %v27, 116
    %v29 = vpop.permute.xlu0 %28
    %vm30 = vcmask 31744
    %s31 = scalar_lea.vmem %s1, 3
    %32 = vst.msk [vmem:[%s31] sm:$0x1] %vm30, %v29
    %s33 = scalar_lea.vmem %s1, 34
    %34 = vst.msk [vmem:[%s33] sm:$0x2] %vm30, %v29
    %v35 = vld [vmem:[#allocation0] sm:$0x3]
    %36 = vrot.lane.b32.xlu0 %v35, 112
    %v37 = vpop.permute.xlu0 %36
    %vm38 = vcmask 31744
    %s39 = scalar_lea.vmem %s1, 4
    %40 = vst.msk [vmem:[%s39] sm:$0x1] %vm38, %v37
    %s41 = scalar_lea.vmem %s1, 35
    %42 = vst.msk [vmem:[%s41] sm:$0x2] %vm38, %v37
    %v43 = vld [vmem:[#allocation0] sm:$0x3]
    %44 = vrot.lane.b32.xlu0 %v43, 108
    %v45 = vpop.permute.xlu0 %44
    %vm46 = vcmask 31744
    %s47 = scalar_lea.vmem %s1, 5
    %48 = vst.msk [vmem:[%s47] sm:$0x1] %vm46, %v45
    %s49 = scalar_lea.vmem %s1, 36
    %50 = vst.msk [vmem:[%s49] sm:$0x2] %vm46, %v45
    %v51 = vld [vmem:[#allocation0] sm:$0x3]
    %52 = vrot.lane.b32.xlu0 %v51, 104
    %v53 = vpop.permute.xlu0 %52
    %vm54 = vcmask 31744
    %s55 = scalar_lea.vmem %s1, 6
    %56 = vst.msk [vmem:[%s55] sm:$0x1] %vm54, %v53
    %s57 = scalar_lea.vmem %s1, 37
    %58 = vst.msk [vmem:[%s57] sm:$0x2] %vm54, %v53
    %v59 = vld [vmem:[#allocation0] sm:$0x3]
    %60 = vrot.lane.b32.xlu0 %v59, 100
    %v61 = vpop.permute.xlu0 %60
    %vm62 = vcmask 31744
    %s63 = scalar_lea.vmem %s1, 7
    %64 = vst.msk [vmem:[%s63] sm:$0x1] %vm62, %v61
    %s65 = scalar_lea.vmem %s1, 38
    %66 = vst.msk [vmem:[%s65] sm:$0x2] %vm62, %v61
    %v67 = vld [vmem:[#allocation0] sm:$0x3]
    %68 = vrot.lane.b32.xlu0 %v67, 96
    %v69 = vpop.permute.xlu0 %68
    %vm70 = vcmask 31744
    %s71 = scalar_lea.vmem %s1, 8
    %72 = vst.msk [vmem:[%s71] sm:$0x1] %vm70, %v69
    %s73 = scalar_lea.vmem %s1, 39
    %74 = vst.msk [vmem:[%s73] sm:$0x2] %vm70, %v69
    %v75 = vld [vmem:[#allocation0] sm:$0x3]
    %76 = vrot.lane.b32.xlu0 %v75, 92
    %v77 = vpop.permute.xlu0 %76
    %vm78 = vcmask 31744
    %s79 = scalar_lea.vmem %s1, 9
    %80 = vst.msk [vmem:[%s79] sm:$0x1] %vm78, %v77
    %s81 = scalar_lea.vmem %s1, 40
    %82 = vst.msk [vmem:[%s81] sm:$0x2] %vm78, %v77
    %v83 = vld [vmem:[#allocation0] sm:$0x3]
    %84 = vrot.lane.b32.xlu0 %v83, 88
    %v85 = vpop.permute.xlu0 %84
    %vm86 = vcmask 31744
    %s87 = scalar_lea.vmem %s1, 10
    %88 = vst.msk [vmem:[%s87] sm:$0x1] %vm86, %v85
    %s89 = scalar_lea.vmem %s1, 41
    %90 = vst.msk [vmem:[%s89] sm:$0x2] %vm86, %v85
    %v91 = vld [vmem:[#allocation0] sm:$0x3]
    %92 = vrot.lane.b32.xlu0 %v91, 84
    %v93 = vpop.permute.xlu0 %92
    %vm94 = vcmask 31744
    %s95 = scalar_lea.vmem %s1, 11
    %96 = vst.msk [vmem:[%s95] sm:$0x1] %vm94, %v93
    %s97 = scalar_lea.vmem %s1, 42
    %98 = vst.msk [vmem:[%s97] sm:$0x2] %vm94, %v93
    %v99 = vld [vmem:[#allocation0] sm:$0x3]
    %100 = vrot.lane.b32.xlu0 %v99, 80
    %v101 = vpop.permute.xlu0 %100
    %vm102 = vcmask 31744
    %s103 = scalar_lea.vmem %s1, 12
    %104 = vst.msk [vmem:[%s103] sm:$0x1] %vm102, %v101
    %s105 = scalar_lea.vmem %s1, 43
    %106 = vst.msk [vmem:[%s105] sm:$0x2] %vm102, %v101
    %v107 = vld [vmem:[#allocation0] sm:$0x3]
    %108 = vrot.lane.b32.xlu0 %v107, 76
    %v109 = vpop.permute.xlu0 %108
    %vm110 = vcmask 31744
    %s111 = scalar_lea.vmem %s1, 13
    %112 = vst.msk [vmem:[%s111] sm:$0x1] %vm110, %v109
    %s113 = scalar_lea.vmem %s1, 44
    %114 = vst.msk [vmem:[%s113] sm:$0x2] %vm110, %v109
    %v115 = vld [vmem:[#allocation0] sm:$0x3]
    %116 = vrot.lane.b32.xlu0 %v115, 72
    %v117 = vpop.permute.xlu0 %116
    %vm118 = vcmask 31744
    %s119 = scalar_lea.vmem %s1, 14
    %120 = vst.msk [vmem:[%s119] sm:$0x1] %vm118, %v117
    %s121 = scalar_lea.vmem %s1, 45
    %122 = vst.msk [vmem:[%s121] sm:$0x2] %vm118, %v117
    %v123 = vld [vmem:[#allocation0] sm:$0x3]
    %124 = vrot.lane.b32.xlu0 %v123, 68
    %v125 = vpop.permute.xlu0 %124
    %vm126 = vcmask 31744
    %s127 = scalar_lea.vmem %s1, 15
    %128 = vst.msk [vmem:[%s127] sm:$0x1] %vm126, %v125
    %s129 = scalar_lea.vmem %s1, 46
    %130 = vst.msk [vmem:[%s129] sm:$0x2] %vm126, %v125
    %v131 = vld [vmem:[#allocation0] sm:$0x3]
    %132 = vrot.lane.b32.xlu0 %v131, 64
    %v133 = vpop.permute.xlu0 %132
    %vm134 = vcmask 31744
    %s135 = scalar_lea.vmem %s1, 16
    %136 = vst.msk [vmem:[%s135] sm:$0x1] %vm134, %v133
    %s137 = scalar_lea.vmem %s1, 47
    %138 = vst.msk [vmem:[%s137] sm:$0x2] %vm134, %v133
    %v139 = vld [vmem:[#allocation0] sm:$0x3]
    %140 = vrot.lane.b32.xlu0 %v139, 60
    %v141 = vpop.permute.xlu0 %140
    %vm142 = vcmask 31744
    %s143 = scalar_lea.vmem %s1, 17
    %144 = vst.msk [vmem:[%s143] sm:$0x1] %vm142, %v141
    %s145 = scalar_lea.vmem %s1, 48
    %146 = vst.msk [vmem:[%s145] sm:$0x2] %vm142, %v141
    %v147 = vld [vmem:[#allocation0] sm:$0x3]
    %148 = vrot.lane.b32.xlu0 %v147, 56
    %v149 = vpop.permute.xlu0 %148
    %vm150 = vcmask 31744
    %s151 = scalar_lea.vmem %s1, 18
    %152 = vst.msk [vmem:[%s151] sm:$0x1] %vm150, %v149
    %s153 = scalar_lea.vmem %s1, 49
    %154 = vst.msk [vmem:[%s153] sm:$0x2] %vm150, %v149
    %v155 = vld [vmem:[#allocation0] sm:$0x3]
    %156 = vrot.lane.b32.xlu0 %v155, 52
    %v157 = vpop.permute.xlu0 %156
    %vm158 = vcmask 31744
    %s159 = scalar_lea.vmem %s1, 19
    %160 = vst.msk [vmem:[%s159] sm:$0x1] %vm158, %v157
    %s161 = scalar_lea.vmem %s1, 50
    %162 = vst.msk [vmem:[%s161] sm:$0x2] %vm158, %v157
    %v163 = vld [vmem:[#allocation0] sm:$0x3]
    %164 = vrot.lane.b32.xlu0 %v163, 48
    %v165 = vpop.permute.xlu0 %164
    %vm166 = vcmask 31744
    %s167 = scalar_lea.vmem %s1, 20
    %168 = vst.msk [vmem:[%s167] sm:$0x1] %vm166, %v165
    %s169 = scalar_lea.vmem %s1, 51
    %170 = vst.msk [vmem:[%s169] sm:$0x2] %vm166, %v165
    %v171 = vld [vmem:[#allocation0] sm:$0x3]
    %172 = vrot.lane.b32.xlu0 %v171, 44
    %v173 = vpop.permute.xlu0 %172
    %vm174 = vcmask 31744
    %s175 = scalar_lea.vmem %s1, 21
    %176 = vst.msk [vmem:[%s175] sm:$0x1] %vm174, %v173
    %s177 = scalar_lea.vmem %s1, 52
    %178 = vst.msk [vmem:[%s177] sm:$0x2] %vm174, %v173
    %v179 = vld [vmem:[#allocation0] sm:$0x3]
    %180 = vrot.lane.b32.xlu0 %v179, 40
    %v181 = vpop.permute.xlu0 %180
    %vm182 = vcmask 31744
    %s183 = scalar_lea.vmem %s1, 22
    %184 = vst.msk [vmem:[%s183] sm:$0x1] %vm182, %v181
    %s185 = scalar_lea.vmem %s1, 53
    %186 = vst.msk [vmem:[%s185] sm:$0x2] %vm182, %v181
    %v187 = vld [vmem:[#allocation0] sm:$0x3]
    %188 = vrot.lane.b32.xlu0 %v187, 36
    %v189 = vpop.permute.xlu0 %188
    %vm190 = vcmask 31744
    %s191 = scalar_lea.vmem %s1, 23
    %192 = vst.msk [vmem:[%s191] sm:$0x1] %vm190, %v189
    %s193 = scalar_lea.vmem %s1, 54
    %194 = vst.msk [vmem:[%s193] sm:$0x2] %vm190, %v189
    %v195 = vld [vmem:[#allocation0] sm:$0x3]
    %196 = vrot.lane.b32.xlu0 %v195, 32
    %v197 = vpop.permute.xlu0 %196
    %vm198 = vcmask 31744
    %s199 = scalar_lea.vmem %s1, 24
    %200 = vst.msk [vmem:[%s199] sm:$0x1] %vm198, %v197
    %s201 = scalar_lea.vmem %s1, 55
    %202 = vst.msk [vmem:[%s201] sm:$0x2] %vm198, %v197
    %v203 = vld [vmem:[#allocation0] sm:$0x3]
    %204 = vrot.lane.b32.xlu0 %v203, 28
    %v205 = vpop.permute.xlu0 %204
    %vm206 = vcmask 31744
    %s207 = scalar_lea.vmem %s1, 25
    %208 = vst.msk [vmem:[%s207] sm:$0x1] %vm206, %v205
    %s209 = scalar_lea.vmem %s1, 56
    %210 = vst.msk [vmem:[%s209] sm:$0x2] %vm206, %v205
    %v211 = vld [vmem:[#allocation0] sm:$0x3]
    %212 = vrot.lane.b32.xlu0 %v211, 24
    %v213 = vpop.permute.xlu0 %212
    %vm214 = vcmask 31744
    %s215 = scalar_lea.vmem %s1, 26
    %216 = vst.msk [vmem:[%s215] sm:$0x1] %vm214, %v213
    %s217 = scalar_lea.vmem %s1, 57
    %218 = vst.msk [vmem:[%s217] sm:$0x2] %vm214, %v213
    %v219 = vld [vmem:[#allocation0] sm:$0x3]
    %220 = vrot.lane.b32.xlu0 %v219, 20
    %v221 = vpop.permute.xlu0 %220
    %vm222 = vcmask 31744
    %s223 = scalar_lea.vmem %s1, 27
    %224 = vst.msk [vmem:[%s223] sm:$0x1] %vm222, %v221
    %s225 = scalar_lea.vmem %s1, 58
    %226 = vst.msk [vmem:[%s225] sm:$0x2] %vm222, %v221
    %v227 = vld [vmem:[#allocation0] sm:$0x3]
    %228 = vrot.lane.b32.xlu0 %v227, 16
    %v229 = vpop.permute.xlu0 %228
    %vm230 = vcmask 31744
    %s231 = scalar_lea.vmem %s1, 28
    %232 = vst.msk [vmem:[%s231] sm:$0x1] %vm230, %v229
    %s233 = scalar_lea.vmem %s1, 59
    %234 = vst.msk [vmem:[%s233] sm:$0x2] %vm230, %v229
    %v235 = vld [vmem:[#allocation0] sm:$0x3]
    %236 = vrot.lane.b32.xlu0 %v235, 12
    %v237 = vpop.permute.xlu0 %236
    %vm238 = vcmask 31744
    %s239 = scalar_lea.vmem %s1, 29
    %240 = vst.msk [vmem:[%s239] sm:$0x1] %vm238, %v237
    %s241 = scalar_lea.vmem %s1, 60
    %242 = vst.msk [vmem:[%s241] sm:$0x2] %vm238, %v237
    %v243 = vld [vmem:[#allocation0] sm:$0x3]
    %244 = vrot.lane.b32.xlu0 %v243, 8
    %v245 = vpop.permute.xlu0 %244
    %vm246 = vcmask 31744
    %s247 = scalar_lea.vmem %s1, 30
    %248 = vst.msk [vmem:[%s247] sm:$0x1] %vm246, %v245
    %s249 = scalar_lea.vmem %s1, 61
    %250 = vst.msk [vmem:[%s249] sm:$0x2] %vm246, %v245
    %v251 = vld [vmem:[#allocation0] sm:$0x3]
    %252 = vrot.lane.b32.xlu0 %v251, 4
    %v253 = vpop.permute.xlu0 %252
    %vm254 = vcmask 31744
    %s255 = scalar_lea.vmem %s1, 31
    %256 = vst.msk [vmem:[%s255] sm:$0x1] %vm254, %v253
    %s257 = scalar_lea.vmem %s1, 62
    %258 = vst.msk [vmem:[%s257] sm:$0x2] %vm254, %v253

// kernel: attn_block.3
$region0: #{attn_block.3}
  #allocation0 [shape = 'u32[]', space=smem, size = 0x4, offset = 0x4, fixed_abs, tag = 'smem constant byte address 0x4 - core index']
  #allocation1 [shape = 'u32[72,128]{1,0:T(1,128)}', space=vmem, size = 0x9000, scoped, tag = 'internal scratch']
  #allocation2 [shape = 'f32[128,2]{1,0:T(8,128)}', space=vmem, size = 0x10000, scoped, tag = 'scratch operand']
  %s0 = inlined_call_operand.vmem [shape: f32[2,128,256], index: 0, kind: input, shape index: {}]
  %s1 = inlined_call_operand.vmem [shape: f32[2,128,2], index: 1, kind: output, shape index: {}]
  %s2 = sld [smem:[#allocation0]]
  $region45: #{attn_block.3} parent=0
    _
  %s4 = ssub.s32 1, %s2
  %s5 = scalar_select 0, %s4, %s2
  loop: start=0, step=1, limit=4
  $region2: #{attn_block.3} parent=0 // loop_pre_header
    _
  $region3: #{attn_block.3} parent=0 // loop_header
    %s7 = sphi 0, %s11
    %p8 = scmp.ge.s32.totalorder %s7, 4
    %s14 = sphi 0, %s26
    %s15 = sphi 0, %s22
    %s16 = sphi 0, %s14
    %s17 = sphi 0, %s15
    %s18 = sphi 0, %s16
    %s19 = sphi 0, %s17
    %s31 = sphi 0, %s33
    %s34 = sphi 0, %s31
    %s35 = sphi 0, %s34
    %s51 = sphi 0, %s35
    %s57 = sphi 0, %s59
    %s60 = sphi 0, %s57
    %s61 = sphi 0, %s60
    %s77 = sphi 0, %s61
  $region4: #{attn_block.3} parent=0 // loop_header_branch
    %10 = sbr.rel (%p8) target = $region8
  $region5: #{attn_block.3} parent=0 // loop_body
    %s12 = ssub.s32 %s7, 1
    %s13 = ssub.s32 %s7, 2
    %s20 = sadd.s32 1, %s15
    %p21 = scmp.ge.s32.totalorder %s20, 1
    %s22 = scalar_select %p21, 0, %s20
    %s23 = sadd.s32 1, %s14
    %s24 = scalar_select %p21, %s23, %s14
    %p25 = scmp.ge.s32.totalorder %s24, 2
    %s26 = scalar_select %p25, 0, %s24
    %s27 = ssub.s32 %s14, %s26
    %s28 = ssub.s32 %s15, %s22
    %s29 = sor.u32 %s27, %s28
    %p30 = scmp.eq.s32.totalorder %s29, 0
    %s32 = sadd.s32 %s31, 1
    %s33 = scalar_select %p30, %s31, %s32
    %p36 = pneg %p30
    %p37 = scmp.eq.s32.totalorder %s7, 1
    %p38 = por %p36, %p37
    %p39 = scmp.ne.s32.totalorder %s31, %s34
    %p40 = scmp.eq.s32.totalorder %s7, 0
    %p41 = por %p39, %p40
    %p42 = scmp.ne.s32.totalorder %s31, %s34
    %p43 = scmp.eq.s32.totalorder %s12, 1
    %p44 = por %p42, %p43
    %p45 = scmp.ne.s32.totalorder %s34, %s35
    %p46 = scmp.eq.s32.totalorder %s12, 0
    %p47 = por %p45, %p46
    %p48 = scmp.ne.s32.totalorder %s34, %s35
    %p49 = scmp.eq.s32.totalorder %s13, 1
    %p50 = por %p48, %p49
    %p52 = scmp.ne.s32.totalorder %s35, %s51
    %p53 = scmp.eq.s32.totalorder %s13, 0
    %p54 = por %p52, %p53
    %s55 = ssub.s32 %s14, %s26
    %p56 = scmp.eq.s32.totalorder %s55, 0
    %s58 = sadd.s32 %s57, 1
    %s59 = scalar_select %p56, %s57, %s58
    %p62 = pneg %p56
    %p63 = scmp.eq.s32.totalorder %s7, 1
    %p64 = por %p62, %p63
    %p65 = scmp.ne.s32.totalorder %s57, %s60
    %p66 = scmp.eq.s32.totalorder %s7, 0
    %p67 = por %p65, %p66
    %p68 = scmp.ne.s32.totalorder %s57, %s60
    %p69 = scmp.eq.s32.totalorder %s12, 1
    %p70 = por %p68, %p69
    %p71 = scmp.ne.s32.totalorder %s60, %s61
    %p72 = scmp.eq.s32.totalorder %s12, 0
    %p73 = por %p71, %p72
    %p74 = scmp.ne.s32.totalorder %s60, %s61
    %p75 = scmp.eq.s32.totalorder %s13, 1
    %p76 = por %p74, %p75
    %p78 = scmp.ne.s32.totalorder %s61, %s77
    %p79 = scmp.eq.s32.totalorder %s13, 0
    %p80 = por %p78, %p79
    %p81 = scmp.le.s32.totalorder 1, %s7
    %p82 = scmp.lt.s32.totalorder %s7, 3
    %p83 = pnand %p81, %p82
    %p84 = pneg %p83
    // Predicated region
    $region9: #{attn_block.3} parent=5 // pred_check
      _
    $region10: #{attn_block.3} parent=5 // pred_check_branch
      %86 = sbr.rel (%p83) target = $region12
    $region11: #{attn_block.3} parent=5 // pred_region
      %s87 = ssub.s32 %s7, 1
    $region12: #{attn_block.3} parent=5 // pred_fallthru
      _
    %p88 = scmp.lt.s32.totalorder %s7, 2
    // Predicated region
    $region13: #{attn_block.3} parent=5 // pred_check
      %p89 = pneg %p88
    $region14: #{attn_block.3} parent=5 // pred_check_branch
      %91 = sbr.rel (%p89) target = $region16
    $region15: #{attn_block.3} parent=5 // pred_region
      // Predicated region
      $region17: #{attn_block.3} parent=15 // pred_check
        %p92 = pneg %p41
      $region18: #{attn_block.3} parent=15 // pred_check_branch
        %94 = sbr.rel (%p92) target = $region20
      $region19: #{attn_block.3} parent=15 // pred_region
        %s95 = smul.u32 2, %s15
        %p96 = scmp.lt.s32.totalorder %s14, 1
        %s97 = scalar_select %p96, %s14, 1
        %p98 = scmp.lt.s32.totalorder %s95, 1
        %s99 = scalar_select %p98, %s95, 1
        %s100 = smul.addr %s97, 32
        %s101 = sadd.s32 %s99, %s100
        %s102 = smul.addr %s101, 8
        %s103 = scalar_lea.vmem %s0, %s102
        %s104 = smul.u32 2, %s15
      $region20: #{attn_block.3} parent=15 // pred_fallthru
        _
    $region16: #{attn_block.3} parent=5 // pred_fallthru
      _
    %p105 = scmp.le.s32.totalorder 1, %s7
    %p106 = scmp.lt.s32.totalorder %s7, 3
    %p107 = pnand %p105, %p106
    %p108 = pneg %p107
    // Predicated region
    $region21: #{attn_block.3} parent=5 // pred_check
      _
    $region22: #{attn_block.3} parent=5 // pred_check_branch
      %110 = sbr.rel (%p107) target = $region24
    $region23: #{attn_block.3} parent=5 // pred_region
      %s111 = ssub.s32 %s7, 1
      %s112 = smul.u32 2, %s17
      %p113 = scmp.lt.s32.totalorder %s16, 1
      %s114 = scalar_select %p113, %s16, 1
      %p115 = scmp.lt.s32.totalorder %s112, 1
      %s116 = scalar_select %p115, %s112, 1
      %s117 = smul.addr %s114, 32
      %s118 = sadd.s32 %s116, %s117
      %s119 = smul.addr %s118, 8
      %s120 = scalar_lea.vmem %s0, %s119
      %p121 = pneg %p47
      %p122 = pneg %p44
      %p123 = pneg %p73
      %p124 = pneg %p70
      %p125 = scmp.lt.s32.totalorder %s16, 1
      %s126 = scalar_select %p125, %s16, 1
      %s127 = smul.addr %s126, 16
      %s128 = smul.addr %s127, 8
      %s129 = scalar_lea.vmem %s1, %s128
      %s130 = smul.u32 2, %s17
      %p131 = scmp.lt.s32.totalorder %s16, 1
      %s132 = scalar_select %p131, %s16, 1
      %p133 = scmp.lt.s32.totalorder %s130, 1
      %s134 = scalar_select %p133, %s130, 1
      %s135 = smul.addr %s132, 32
      %s136 = sadd.s32 %s134, %s135
      %s137 = smul.addr %s136, 8
      %s138 = scalar_lea.vmem %s0, %s137
      %s139 = smul.u32 2, %s17
      %p140 = scmp.lt.s32.totalorder %s16, 1
      %s141 = scalar_select %p140, %s16, 1
      %s142 = smul.addr %s141, 16
      %s143 = smul.addr %s142, 8
      %s144 = scalar_lea.vmem %s1, %s143
      %p145 = scmp.eq.s32.totalorder %s17, 0
      // Predicated region
      $region25: #{attn_block.3} parent=23 // pred_check
        %p146 = pneg %p145
      $region26: #{attn_block.3} parent=23 // pred_check_branch
        %148 = sbr.rel (%p146) target = $region28
      $region27: #{attn_block.3} parent=23 // pred_region
        %vm149 = vcmask 15360
        %150 = vst.msk [vmem:[#allocation2] sm:$0xff] %vm149, 0.0
        %151 = vst.msk [vmem:[#allocation2 + $0x8] sm:$0xff] %vm149, 0.0
        %152 = vst.msk [vmem:[#allocation2 + $0x10] sm:$0xff] %vm149, 0.0
        %153 = vst.msk [vmem:[#allocation2 + $0x18] sm:$0xff] %vm149, 0.0
        %154 = vst.msk [vmem:[#allocation2 + $0x20] sm:$0xff] %vm149, 0.0
        %155 = vst.msk [vmem:[#allocation2 + $0x28] sm:$0xff] %vm149, 0.0
        %156 = vst.msk [vmem:[#allocation2 + $0x30] sm:$0xff] %vm149, 0.0
        %157 = vst.msk [vmem:[#allocation2 + $0x38] sm:$0xff] %vm149, 0.0
        %158 = vst.msk [vmem:[#allocation2 + $0x40] sm:$0xff] %vm149, 0.0
        %159 = vst.msk [vmem:[#allocation2 + $0x48] sm:$0xff] %vm149, 0.0
        %160 = vst.msk [vmem:[#allocation2 + $0x50] sm:$0xff] %vm149, 0.0
        %161 = vst.msk [vmem:[#allocation2 + $0x58] sm:$0xff] %vm149, 0.0
        %162 = vst.msk [vmem:[#allocation2 + $0x60] sm:$0xff] %vm149, 0.0
        %163 = vst.msk [vmem:[#allocation2 + $0x68] sm:$0xff] %vm149, 0.0
        %164 = vst.msk [vmem:[#allocation2 + $0x70] sm:$0xff] %vm149, 0.0
        %165 = vst.msk [vmem:[#allocation2 + $0x78] sm:$0xff] %vm149, 0.0
      $region28: #{attn_block.3} parent=23 // pred_fallthru
        _
      %v166 = vld [vmem:[%s138] sm:$0xff]
      %v167 = vld [vmem:[%s138 + $0x8] sm:$0xff]
      %v168 = vld [vmem:[%s138 + $0x10] sm:$0xff]
      %v169 = vld [vmem:[%s138 + $0x18] sm:$0xff]
      %v170 = vld [vmem:[%s138 + $0x20] sm:$0xff]
      %v171 = vld [vmem:[%s138 + $0x28] sm:$0xff]
      %v172 = vld [vmem:[%s138 + $0x30] sm:$0xff]
      %v173 = vld [vmem:[%s138 + $0x38] sm:$0xff]
      %v174 = vld [vmem:[%s138 + $0x40] sm:$0xff]
      %v175 = vld [vmem:[%s138 + $0x48] sm:$0xff]
      %v176 = vld [vmem:[%s138 + $0x50] sm:$0xff]
      %v177 = vld [vmem:[%s138 + $0x58] sm:$0xff]
      %v178 = vld [vmem:[%s138 + $0x60] sm:$0xff]
      %v179 = vld [vmem:[%s138 + $0x68] sm:$0xff]
      %v180 = vld [vmem:[%s138 + $0x70] sm:$0xff]
      %v181 = vld [vmem:[%s138 + $0x78] sm:$0xff]
      %v182 = vld [vmem:[%s138 + $0x80] sm:$0xff]
      %v183 = vld [vmem:[%s138 + $0x88] sm:$0xff]
      %v184 = vld [vmem:[%s138 + $0x90] sm:$0xff]
      %v185 = vld [vmem:[%s138 + $0x98] sm:$0xff]
      %v186 = vld [vmem:[%s138 + $0xa0] sm:$0xff]
      %v187 = vld [vmem:[%s138 + $0xa8] sm:$0xff]
      %v188 = vld [vmem:[%s138 + $0xb0] sm:$0xff]
      %v189 = vld [vmem:[%s138 + $0xb8] sm:$0xff]
      %v190 = vld [vmem:[%s138 + $0xc0] sm:$0xff]
      %v191 = vld [vmem:[%s138 + $0xc8] sm:$0xff]
      %v192 = vld [vmem:[%s138 + $0xd0] sm:$0xff]
      %v193 = vld [vmem:[%s138 + $0xd8] sm:$0xff]
      %v194 = vld [vmem:[%s138 + $0xe0] sm:$0xff]
      %v195 = vld [vmem:[%s138 + $0xe8] sm:$0xff]
      %v196 = vld [vmem:[%s138 + $0xf0] sm:$0xff]
      %v197 = vld [vmem:[%s138 + $0xf8] sm:$0xff]
      %v198 = vld [vmem:[#allocation2] sm:$0xff]
      %v199 = vld [vmem:[#allocation2 + $0x8] sm:$0xff]
      %v200 = vld [vmem:[#allocation2 + $0x10] sm:$0xff]
      %v201 = vld [vmem:[#allocation2 + $0x18] sm:$0xff]
      %v202 = vld [vmem:[#allocation2 + $0x20] sm:$0xff]
      %v203 = vld [vmem:[#allocation2 + $0x28] sm:$0xff]
      %v204 = vld [vmem:[#allocation2 + $0x30] sm:$0xff]
      %v205 = vld [vmem:[#allocation2 + $0x38] sm:$0xff]
      %v206 = vld [vmem:[#allocation2 + $0x40] sm:$0xff]
      %v207 = vld [vmem:[#allocation2 + $0x48] sm:$0xff]
      %v208 = vld [vmem:[#allocation2 + $0x50] sm:$0xff]
      %v209 = vld [vmem:[#allocation2 + $0x58] sm:$0xff]
      %v210 = vld [vmem:[#allocation2 + $0x60] sm:$0xff]
      %v211 = vld [vmem:[#allocation2 + $0x68] sm:$0xff]
      %v212 = vld [vmem:[#allocation2 + $0x70] sm:$0xff]
      %v213 = vld [vmem:[#allocation2 + $0x78] sm:$0xff]
      %v214 = vadd.f32 %v166, %v167
      %215 = vadd.xlane.f32.xlu0 %v214
      %v216 = vpop.xlane.xlu0 %215
      %v217 = vadd.f32 %v168, %v169
      %218 = vadd.xlane.f32.xlu0 %v217
      %v219 = vpop.xlane.xlu0 %218
      %v220 = vadd.f32 %v170, %v171
      %221 = vadd.xlane.f32.xlu0 %v220
      %v222 = vpop.xlane.xlu0 %221
      %v223 = vadd.f32 %v172, %v173
      %224 = vadd.xlane.f32.xlu0 %v223
      %v225 = vpop.xlane.xlu0 %224
      %v226 = vadd.f32 %v174, %v175
      %227 = vadd.xlane.f32.xlu0 %v226
      %v228 = vpop.xlane.xlu0 %227
      %v229 = vadd.f32 %v176, %v177
      %230 = vadd.xlane.f32.xlu0 %v229
      %v231 = vpop.xlane.xlu0 %230
      %v232 = vadd.f32 %v178, %v179
      %233 = vadd.xlane.f32.xlu0 %v232
      %v234 = vpop.xlane.xlu0 %233
      %v235 = vadd.f32 %v180, %v181
      %236 = vadd.xlane.f32.xlu0 %v235
      %v237 = vpop.xlane.xlu0 %236
      %v238 = vadd.f32 %v182, %v183
      %239 = vadd.xlane.f32.xlu0 %v238
      %v240 = vpop.xlane.xlu0 %239
      %v241 = vadd.f32 %v184, %v185
      %242 = vadd.xlane.f32.xlu0 %v241
      %v243 = vpop.xlane.xlu0 %242
      %v244 = vadd.f32 %v186, %v187
      %245 = vadd.xlane.f32.xlu0 %v244
      %v246 = vpop.xlane.xlu0 %245
      %v247 = vadd.f32 %v188, %v189
      %248 = vadd.xlane.f32.xlu0 %v247
      %v249 = vpop.xlane.xlu0 %248
      %v250 = vadd.f32 %v190, %v191
      %251 = vadd.xlane.f32.xlu0 %v250
      %v252 = vpop.xlane.xlu0 %251
      %v253 = vadd.f32 %v192, %v193
      %254 = vadd.xlane.f32.xlu0 %v253
      %v255 = vpop.xlane.xlu0 %254
      %v256 = vadd.f32 %v194, %v195
      %257 = vadd.xlane.f32.xlu0 %v256
      %v258 = vpop.xlane.xlu0 %257
      %v259 = vadd.f32 %v196, %v197
      %260 = vadd.xlane.f32.xlu0 %v259
      %v261 = vpop.xlane.xlu0 %260
      %v262 = vadd.f32 %v198, %v216
      %v263 = vadd.f32 %v199, %v219
      %v264 = vadd.f32 %v200, %v222
      %v265 = vadd.f32 %v201, %v225
      %v266 = vadd.f32 %v202, %v228
      %v267 = vadd.f32 %v203, %v231
      %v268 = vadd.f32 %v204, %v234
      %v269 = vadd.f32 %v205, %v237
      %v270 = vadd.f32 %v206, %v240
      %v271 = vadd.f32 %v207, %v243
      %v272 = vadd.f32 %v208, %v246
      %v273 = vadd.f32 %v209, %v249
      %v274 = vadd.f32 %v210, %v252
      %v275 = vadd.f32 %v211, %v255
      %v276 = vadd.f32 %v212, %v258
      %v277 = vadd.f32 %v213, %v261
      %vm278 = vcmask 7168
      %279 = vst.msk [vmem:[#allocation2] sm:$0xff] %vm278, %v262
      %280 = vst.msk [vmem:[#allocation2 + $0x8] sm:$0xff] %vm278, %v263
      %281 = vst.msk [vmem:[#allocation2 + $0x10] sm:$0xff] %vm278, %v264
      %282 = vst.msk [vmem:[#allocation2 + $0x18] sm:$0xff] %vm278, %v265
      %283 = vst.msk [vmem:[#allocation2 + $0x20] sm:$0xff] %vm278, %v266
      %284 = vst.msk [vmem:[#allocation2 + $0x28] sm:$0xff] %vm278, %v267
      %285 = vst.msk [vmem:[#allocation2 + $0x30] sm:$0xff] %vm278, %v268
      %286 = vst.msk [vmem:[#allocation2 + $0x38] sm:$0xff] %vm278, %v269
      %287 = vst.msk [vmem:[#allocation2 + $0x40] sm:$0xff] %vm278, %v270
      %288 = vst.msk [vmem:[#allocation2 + $0x48] sm:$0xff] %vm278, %v271
      %289 = vst.msk [vmem:[#allocation2 + $0x50] sm:$0xff] %vm278, %v272
      %290 = vst.msk [vmem:[#allocation2 + $0x58] sm:$0xff] %vm278, %v273
      %291 = vst.msk [vmem:[#allocation2 + $0x60] sm:$0xff] %vm278, %v274
      %292 = vst.msk [vmem:[#allocation2 + $0x68] sm:$0xff] %vm278, %v275
      %293 = vst.msk [vmem:[#allocation2 + $0x70] sm:$0xff] %vm278, %v276
      %294 = vst.msk [vmem:[#allocation2 + $0x78] sm:$0xff] %vm278, %v277
      %v295 = vld [vmem:[#allocation2] sm:$0xff]
      %v296 = vld [vmem:[#allocation2 + $0x8] sm:$0xff]
      %v297 = vld [vmem:[#allocation2 + $0x10] sm:$0xff]
      %v298 = vld [vmem:[#allocation2 + $0x18] sm:$0xff]
      %v299 = vld [vmem:[#allocation2 + $0x20] sm:$0xff]
      %v300 = vld [vmem:[#allocation2 + $0x28] sm:$0xff]
      %v301 = vld [vmem:[#allocation2 + $0x30] sm:$0xff]
      %v302 = vld [vmem:[#allocation2 + $0x38] sm:$0xff]
      %v303 = vld [vmem:[#allocation2 + $0x40] sm:$0xff]
      %v304 = vld [vmem:[#allocation2 + $0x48] sm:$0xff]
      %v305 = vld [vmem:[#allocation2 + $0x50] sm:$0xff]
      %v306 = vld [vmem:[#allocation2 + $0x58] sm:$0xff]
      %v307 = vld [vmem:[#allocation2 + $0x60] sm:$0xff]
      %v308 = vld [vmem:[#allocation2 + $0x68] sm:$0xff]
      %v309 = vld [vmem:[#allocation2 + $0x70] sm:$0xff]
      %v310 = vld [vmem:[#allocation2 + $0x78] sm:$0xff]
      %v311 = vmul.f32 %v166, %v166
      %v312 = vmul.f32 %v167, %v167
      %v313 = vmul.f32 %v168, %v168
      %v314 = vmul.f32 %v169, %v169
      %v315 = vmul.f32 %v170, %v170
      %v316 = vmul.f32 %v171, %v171
      %v317 = vmul.f32 %v172, %v172
      %v318 = vmul.f32 %v173, %v173
      %v319 = vmul.f32 %v174, %v174
      %v320 = vmul.f32 %v175, %v175
      %v321 = vmul.f32 %v176, %v176
      %v322 = vmul.f32 %v177, %v177
      %v323 = vmul.f32 %v178, %v178
      %v324 = vmul.f32 %v179, %v179
      %v325 = vmul.f32 %v180, %v180
      %v326 = vmul.f32 %v181, %v181
      %v327 = vmul.f32 %v182, %v182
      %v328 = vmul.f32 %v183, %v183
      %v329 = vmul.f32 %v184, %v184
      %v330 = vmul.f32 %v185, %v185
      %v331 = vmul.f32 %v186, %v186
      %v332 = vmul.f32 %v187, %v187
      %v333 = vmul.f32 %v188, %v188
      %v334 = vmul.f32 %v189, %v189
      %v335 = vmul.f32 %v190, %v190
      %v336 = vmul.f32 %v191, %v191
      %v337 = vmul.f32 %v192, %v192
      %v338 = vmul.f32 %v193, %v193
      %v339 = vmul.f32 %v194, %v194
      %v340 = vmul.f32 %v195, %v195
      %v341 = vmul.f32 %v196, %v196
      %v342 = vmul.f32 %v197, %v197
      %v343 = vadd.f32 %v311, %v312
      %344 = vadd.xlane.f32.xlu0 %v343
      %v345 = vpop.xlane.xlu0 %344
      %v346 = vadd.f32 %v313, %v314
      %347 = vadd.xlane.f32.xlu0 %v346
      %v348 = vpop.xlane.xlu0 %347
      %v349 = vadd.f32 %v315, %v316
      %350 = vadd.xlane.f32.xlu0 %v349
      %v351 = vpop.xlane.xlu0 %350
      %v352 = vadd.f32 %v317, %v318
      %353 = vadd.xlane.f32.xlu0 %v352
      %v354 = vpop.xlane.xlu0 %353
      %v355 = vadd.f32 %v319, %v320
      %356 = vadd.xlane.f32.xlu0 %v355
      %v357 = vpop.xlane.xlu0 %356
      %v358 = vadd.f32 %v321, %v322
      %359 = vadd.xlane.f32.xlu0 %v358
      %v360 = vpop.xlane.xlu0 %359
      %v361 = vadd.f32 %v323, %v324
      %362 = vadd.xlane.f32.xlu0 %v361
      %v363 = vpop.xlane.xlu0 %362
      %v364 = vadd.f32 %v325, %v326
      %365 = vadd.xlane.f32.xlu0 %v364
      %v366 = vpop.xlane.xlu0 %365
      %v367 = vadd.f32 %v327, %v328
      %368 = vadd.xlane.f32.xlu0 %v367
      %v369 = vpop.xlane.xlu0 %368
      %v370 = vadd.f32 %v329, %v330
      %371 = vadd.xlane.f32.xlu0 %v370
      %v372 = vpop.xlane.xlu0 %371
      %v373 = vadd.f32 %v331, %v332
      %374 = vadd.xlane.f32.xlu0 %v373
      %v375 = vpop.xlane.xlu0 %374
      %v376 = vadd.f32 %v333, %v334
      %377 = vadd.xlane.f32.xlu0 %v376
      %v378 = vpop.xlane.xlu0 %377
      %v379 = vadd.f32 %v335, %v336
      %380 = vadd.xlane.f32.xlu0 %v379
      %v381 = vpop.xlane.xlu0 %380
      %v382 = vadd.f32 %v337, %v338
      %383 = vadd.xlane.f32.xlu0 %v382
      %v384 = vpop.xlane.xlu0 %383
      %v385 = vadd.f32 %v339, %v340
      %386 = vadd.xlane.f32.xlu0 %v385
      %v387 = vpop.xlane.xlu0 %386
      %v388 = vadd.f32 %v341, %v342
      %389 = vadd.xlane.f32.xlu0 %v388
      %v390 = vpop.xlane.xlu0 %389
      %v391 = vadd.f32 %v295, %v345
      %v392 = vadd.f32 %v296, %v348
      %v393 = vadd.f32 %v297, %v351
      %v394 = vadd.f32 %v298, %v354
      %v395 = vadd.f32 %v299, %v357
      %v396 = vadd.f32 %v300, %v360
      %v397 = vadd.f32 %v301, %v363
      %v398 = vadd.f32 %v302, %v366
      %v399 = vadd.f32 %v303, %v369
      %v400 = vadd.f32 %v304, %v372
      %v401 = vadd.f32 %v305, %v375
      %v402 = vadd.f32 %v306, %v378
      %v403 = vadd.f32 %v307, %v381
      %v404 = vadd.f32 %v308, %v384
      %v405 = vadd.f32 %v309, %v387
      %v406 = vadd.f32 %v310, %v390
      %vm407 = vcmask 15368
      %408 = vst.msk [vmem:[#allocation2] sm:$0xff] %vm407, %v391
      %409 = vst.msk [vmem:[#allocation2 + $0x8] sm:$0xff] %vm407, %v392
      %410 = vst.msk [vmem:[#allocation2 + $0x10] sm:$0xff] %vm407, %v393
      %411 = vst.msk [vmem:[#allocation2 + $0x18] sm:$0xff] %vm407, %v394
      %412 = vst.msk [vmem:[#allocation2 + $0x20] sm:$0xff] %vm407, %v395
      %413 = vst.msk [vmem:[#allocation2 + $0x28] sm:$0xff] %vm407, %v396
      %414 = vst.msk [vmem:[#allocation2 + $0x30] sm:$0xff] %vm407, %v397
      %415 = vst.msk [vmem:[#allocation2 + $0x38] sm:$0xff] %vm407, %v398
      %416 = vst.msk [vmem:[#allocation2 + $0x40] sm:$0xff] %vm407, %v399
      %417 = vst.msk [vmem:[#allocation2 + $0x48] sm:$0xff] %vm407, %v400
      %418 = vst.msk [vmem:[#allocation2 + $0x50] sm:$0xff] %vm407, %v401
      %419 = vst.msk [vmem:[#allocation2 + $0x58] sm:$0xff] %vm407, %v402
      %420 = vst.msk [vmem:[#allocation2 + $0x60] sm:$0xff] %vm407, %v403
      %421 = vst.msk [vmem:[#allocation2 + $0x68] sm:$0xff] %vm407, %v404
      %422 = vst.msk [vmem:[#allocation2 + $0x70] sm:$0xff] %vm407, %v405
      %423 = vst.msk [vmem:[#allocation2 + $0x78] sm:$0xff] %vm407, %v406
      // Predicated region
      $region29: #{attn_block.3} parent=23 // pred_check
        %p424 = pneg %p145
      $region30: #{attn_block.3} parent=23 // pred_check_branch
        %426 = sbr.rel (%p424) target = $region32
      $region31: #{attn_block.3} parent=23 // pred_region
        %v427 = vld [vmem:[#allocation2] sm:$0xff]
        %v428 = vld [vmem:[#allocation2 + $0x8] sm:$0xff]
        %v429 = vld [vmem:[#allocation2 + $0x10] sm:$0xff]
        %v430 = vld [vmem:[#allocation2 + $0x18] sm:$0xff]
        %v431 = vld [vmem:[#allocation2 + $0x20] sm:$0xff]
        %v432 = vld [vmem:[#allocation2 + $0x28] sm:$0xff]
        %v433 = vld [vmem:[#allocation2 + $0x30] sm:$0xff]
        %v434 = vld [vmem:[#allocation2 + $0x38] sm:$0xff]
        %v435 = vld [vmem:[#allocation2 + $0x40] sm:$0xff]
        %v436 = vld [vmem:[#allocation2 + $0x48] sm:$0xff]
        %v437 = vld [vmem:[#allocation2 + $0x50] sm:$0xff]
        %v438 = vld [vmem:[#allocation2 + $0x58] sm:$0xff]
        %v439 = vld [vmem:[#allocation2 + $0x60] sm:$0xff]
        %v440 = vld [vmem:[#allocation2 + $0x68] sm:$0xff]
        %v441 = vld [vmem:[#allocation2 + $0x70] sm:$0xff]
        %v442 = vld [vmem:[#allocation2 + $0x78] sm:$0xff]
        %vm443 = vcmask 15360
        %444 = vst.msk [vmem:[%s144] sm:$0xff] %vm443, %v427
        %445 = vst.msk [vmem:[%s144 + $0x8] sm:$0xff] %vm443, %v428
        %446 = vst.msk [vmem:[%s144 + $0x10] sm:$0xff] %vm443, %v429
        %447 = vst.msk [vmem:[%s144 + $0x18] sm:$0xff] %vm443, %v430
        %448 = vst.msk [vmem:[%s144 + $0x20] sm:$0xff] %vm443, %v431
        %449 = vst.msk [vmem:[%s144 + $0x28] sm:$0xff] %vm443, %v432
        %450 = vst.msk [vmem:[%s144 + $0x30] sm:$0xff] %vm443, %v433
        %451 = vst.msk [vmem:[%s144 + $0x38] sm:$0xff] %vm443, %v434
        %452 = vst.msk [vmem:[%s144 + $0x40] sm:$0xff] %vm443, %v435
        %453 = vst.msk [vmem:[%s144 + $0x48] sm:$0xff] %vm443, %v436
        %454 = vst.msk [vmem:[%s144 + $0x50] sm:$0xff] %vm443, %v437
        %455 = vst.msk [vmem:[%s144 + $0x58] sm:$0xff] %vm443, %v438
        %456 = vst.msk [vmem:[%s144 + $0x60] sm:$0xff] %vm443, %v439
        %457 = vst.msk [vmem:[%s144 + $0x68] sm:$0xff] %vm443, %v440
        %458 = vst.msk [vmem:[%s144 + $0x70] sm:$0xff] %vm443, %v441
        %459 = vst.msk [vmem:[%s144 + $0x78] sm:$0xff] %vm443, %v442
      $region32: #{attn_block.3} parent=23 // pred_fallthru
        _
      %p460 = scmp.lt.s32.totalorder %s16, 1
      %s461 = scalar_select %p460, %s16, 1
      %s462 = smul.addr %s461, 16
      %s463 = smul.addr %s462, 8
      %s464 = scalar_lea.vmem %s1, %s463
      // Predicated region
      $region33: #{attn_block.3} parent=23 // pred_check
        %p465 = pneg %p70
      $region34: #{attn_block.3} parent=23 // pred_check_branch
        %467 = sbr.rel (%p465) target = $region36
      $region35: #{attn_block.3} parent=23 // pred_region
        _
      $region36: #{attn_block.3} parent=23 // pred_fallthru
        _
    $region24: #{attn_block.3} parent=5 // pred_fallthru
      _
    %p468 = scmp.le.s32.totalorder 2, %s7
    // Predicated region
    $region37: #{attn_block.3} parent=5 // pred_check
      %p469 = pneg %p468
    $region38: #{attn_block.3} parent=5 // pred_check_branch
      %471 = sbr.rel (%p469) target = $region40
    $region39: #{attn_block.3} parent=5 // pred_region
      %s472 = ssub.s32 %s7, 2
      // Predicated region
      $region41: #{attn_block.3} parent=39 // pred_check
        %p473 = pneg %p76
      $region42: #{attn_block.3} parent=39 // pred_check_branch
        %475 = sbr.rel (%p473) target = $region44
      $region43: #{attn_block.3} parent=39 // pred_region
        %p476 = scmp.lt.s32.totalorder %s18, 1
        %s477 = scalar_select %p476, %s18, 1
        %s478 = smul.addr %s477, 16
        %s479 = smul.addr %s478, 8
        %s480 = scalar_lea.vmem %s1, %s479
      $region44: #{attn_block.3} parent=39 // pred_fallthru
        _
    $region40: #{attn_block.3} parent=5 // pred_fallthru
      _
  $region6: #{attn_block.3} parent=0 // loop_footer
    %s11 = sadd.s32 1, %s7
  $region7: #{attn_block.3} parent=0 // loop_footer_branch
    %6 = sbr.rel target = $region3
  $region8: #{attn_block.3} parent=0 // loop_exit
    _

// kernel: attn_block.4
$region0: #{attn_block.4}
  #allocation0 [shape = 'u32[]', space=smem, size = 0x4, offset = 0x4, fixed_abs, tag = 'smem constant byte address 0x4 - core index']
  #allocation1 [shape = 'u32[72,128]{1,0:T(1,128)}', space=vmem, size = 0x9000, scoped, tag = 'internal scratch']
  %s0 = inlined_call_operand.vmem [shape: f32[2,128,256], index: 0, kind: input, shape index: {}]
  %s1 = inlined_call_operand.vmem [shape: f32[2,128,2], index: 1, kind: input, shape index: {}]
  %s2 = inlined_call_operand.vmem [shape: bf16[128,384], index: 2, kind: input, shape index: {}]
  %s3 = inlined_call_operand.vmem [shape: f32[1,384], index: 3, kind: input, shape index: {}]
  %s4 = inlined_call_operand.vmem [shape: bf16[2,256,128], index: 4, kind: output, shape index: {0}]
  %s5 = inlined_call_operand.vmem [shape: bf16[2,256,256], index: 5, kind: output, shape index: {1}]
  %6 = xla_tuple %s4, %s5
  %s7 = sld [smem:[#allocation0]]
  $region57: #{attn_block.4} parent=0
    _
  %s9 = ssub.s32 1, %s7
  %s10 = scalar_select 0, %s9, %s7
  loop: start=0, step=1, limit=4
  $region2: #{attn_block.4} parent=0 // loop_pre_header
    _
  $region3: #{attn_block.4} parent=0 // loop_header
    %s12 = sphi 0, %s16
    %p13 = scmp.ge.s32.totalorder %s12, 4
    %s19 = sphi 0, %s31
    %s20 = sphi 0, %s27
    %s21 = sphi 0, %s19
    %s22 = sphi 0, %s20
    %s23 = sphi 0, %s21
    %s24 = sphi 0, %s22
    %s36 = sphi 0, %s38
    %s39 = sphi 0, %s36
    %s40 = sphi 0, %s39
    %s56 = sphi 0, %s40
    %s62 = sphi 0, %s64
    %s65 = sphi 0, %s62
    %s66 = sphi 0, %s65
    %s82 = sphi 0, %s66
    %s86 = sphi 0, %s86
    %s88 = sphi 0, %s86
    %s89 = sphi 0, %s88
    %s103 = sphi 0, %s89
    %s107 = sphi 0, %s107
    %s109 = sphi 0, %s107
    %s110 = sphi 0, %s109
    %s124 = sphi 0, %s110
    %s132 = sphi 0, %s134
    %s135 = sphi 0, %s132
    %s136 = sphi 0, %s135
    %s152 = sphi 0, %s136
    %s160 = sphi 0, %s162
    %s163 = sphi 0, %s160
    %s164 = sphi 0, %s163
    %s180 = sphi 0, %s164
  $region4: #{attn_block.4} parent=0 // loop_header_branch
    %15 = sbr.rel (%p13) target = $region8
  $region5: #{attn_block.4} parent=0 // loop_body
    %s17 = ssub.s32 %s12, 1
    %s18 = ssub.s32 %s12, 2
    %s25 = sadd.s32 1, %s20
    %p26 = scmp.ge.s32.totalorder %s25, 1
    %s27 = scalar_select %p26, 0, %s25
    %s28 = sadd.s32 1, %s19
    %s29 = scalar_select %p26, %s28, %s19
    %p30 = scmp.ge.s32.totalorder %s29, 2
    %s31 = scalar_select %p30, 0, %s29
    %s32 = ssub.s32 %s19, %s31
    %s33 = ssub.s32 %s20, %s27
    %s34 = sor.u32 %s32, %s33
    %p35 = scmp.eq.s32.totalorder %s34, 0
    %s37 = sadd.s32 %s36, 1
    %s38 = scalar_select %p35, %s36, %s37
    %p41 = pneg %p35
    %p42 = scmp.eq.s32.totalorder %s12, 1
    %p43 = por %p41, %p42
    %p44 = scmp.ne.s32.totalorder %s36, %s39
    %p45 = scmp.eq.s32.totalorder %s12, 0
    %p46 = por %p44, %p45
    %p47 = scmp.ne.s32.totalorder %s36, %s39
    %p48 = scmp.eq.s32.totalorder %s17, 1
    %p49 = por %p47, %p48
    %p50 = scmp.ne.s32.totalorder %s39, %s40
    %p51 = scmp.eq.s32.totalorder %s17, 0
    %p52 = por %p50, %p51
    %p53 = scmp.ne.s32.totalorder %s39, %s40
    %p54 = scmp.eq.s32.totalorder %s18, 1
    %p55 = por %p53, %p54
    %p57 = scmp.ne.s32.totalorder %s40, %s56
    %p58 = scmp.eq.s32.totalorder %s18, 0
    %p59 = por %p57, %p58
    %s60 = ssub.s32 %s19, %s31
    %p61 = scmp.eq.s32.totalorder %s60, 0
    %s63 = sadd.s32 %s62, 1
    %s64 = scalar_select %p61, %s62, %s63
    %p67 = pneg %p61
    %p68 = scmp.eq.s32.totalorder %s12, 1
    %p69 = por %p67, %p68
    %p70 = scmp.ne.s32.totalorder %s62, %s65
    %p71 = scmp.eq.s32.totalorder %s12, 0
    %p72 = por %p70, %p71
    %p73 = scmp.ne.s32.totalorder %s62, %s65
    %p74 = scmp.eq.s32.totalorder %s17, 1
    %p75 = por %p73, %p74
    %p76 = scmp.ne.s32.totalorder %s65, %s66
    %p77 = scmp.eq.s32.totalorder %s17, 0
    %p78 = por %p76, %p77
    %p79 = scmp.ne.s32.totalorder %s65, %s66
    %p80 = scmp.eq.s32.totalorder %s18, 1
    %p81 = por %p79, %p80
    %p83 = scmp.ne.s32.totalorder %s66, %s82
    %p84 = scmp.eq.s32.totalorder %s18, 0
    %p85 = por %p83, %p84
    %s87 = sadd.s32 %s86, 1
    %p90 = scmp.eq.s32.totalorder %s12, 1
    %p91 = scmp.ne.s32.totalorder %s86, %s88
    %p92 = scmp.eq.s32.totalorder %s12, 0
    %p93 = por %p91, %p92
    %p94 = scmp.ne.s32.totalorder %s86, %s88
    %p95 = scmp.eq.s32.totalorder %s17, 1
    %p96 = por %p94, %p95
    %p97 = scmp.ne.s32.totalorder %s88, %s89
    %p98 = scmp.eq.s32.totalorder %s17, 0
    %p99 = por %p97, %p98
    %p100 = scmp.ne.s32.totalorder %s88, %s89
    %p101 = scmp.eq.s32.totalorder %s18, 1
    %p102 = por %p100, %p101
    %p104 = scmp.ne.s32.totalorder %s89, %s103
    %p105 = scmp.eq.s32.totalorder %s18, 0
    %p106 = por %p104, %p105
    %s108 = sadd.s32 %s107, 1
    %p111 = scmp.eq.s32.totalorder %s12, 1
    %p112 = scmp.ne.s32.totalorder %s107, %s109
    %p113 = scmp.eq.s32.totalorder %s12, 0
    %p114 = por %p112, %p113
    %p115 = scmp.ne.s32.totalorder %s107, %s109
    %p116 = scmp.eq.s32.totalorder %s17, 1
    %p117 = por %p115, %p116
    %p118 = scmp.ne.s32.totalorder %s109, %s110
    %p119 = scmp.eq.s32.totalorder %s17, 0
    %p120 = por %p118, %p119
    %p121 = scmp.ne.s32.totalorder %s109, %s110
    %p122 = scmp.eq.s32.totalorder %s18, 1
    %p123 = por %p121, %p122
    %p125 = scmp.ne.s32.totalorder %s110, %s124
    %p126 = scmp.eq.s32.totalorder %s18, 0
    %p127 = por %p125, %p126
    %s128 = ssub.s32 %s19, %s31
    %s129 = ssub.s32 %s20, %s27
    %s130 = sor.u32 %s128, %s129
    %p131 = scmp.eq.s32.totalorder %s130, 0
    %s133 = sadd.s32 %s132, 1
    %s134 = scalar_select %p131, %s132, %s133
    %p137 = pneg %p131
    %p138 = scmp.eq.s32.totalorder %s12, 1
    %p139 = por %p137, %p138
    %p140 = scmp.ne.s32.totalorder %s132, %s135
    %p141 = scmp.eq.s32.totalorder %s12, 0
    %p142 = por %p140, %p141
    %p143 = scmp.ne.s32.totalorder %s132, %s135
    %p144 = scmp.eq.s32.totalorder %s17, 1
    %p145 = por %p143, %p144
    %p146 = scmp.ne.s32.totalorder %s135, %s136
    %p147 = scmp.eq.s32.totalorder %s17, 0
    %p148 = por %p146, %p147
    %p149 = scmp.ne.s32.totalorder %s135, %s136
    %p150 = scmp.eq.s32.totalorder %s18, 1
    %p151 = por %p149, %p150
    %p153 = scmp.ne.s32.totalorder %s136, %s152
    %p154 = scmp.eq.s32.totalorder %s18, 0
    %p155 = por %p153, %p154
    %s156 = ssub.s32 %s19, %s31
    %s157 = ssub.s32 %s20, %s27
    %s158 = sor.u32 %s156, %s157
    %p159 = scmp.eq.s32.totalorder %s158, 0
    %s161 = sadd.s32 %s160, 1
    %s162 = scalar_select %p159, %s160, %s161
    %p165 = pneg %p159
    %p166 = scmp.eq.s32.totalorder %s12, 1
    %p167 = por %p165, %p166
    %p168 = scmp.ne.s32.totalorder %s160, %s163
    %p169 = scmp.eq.s32.totalorder %s12, 0
    %p170 = por %p168, %p169
    %p171 = scmp.ne.s32.totalorder %s160, %s163
    %p172 = scmp.eq.s32.totalorder %s17, 1
    %p173 = por %p171, %p172
    %p174 = scmp.ne.s32.totalorder %s163, %s164
    %p175 = scmp.eq.s32.totalorder %s17, 0
    %p176 = por %p174, %p175
    %p177 = scmp.ne.s32.totalorder %s163, %s164
    %p178 = scmp.eq.s32.totalorder %s18, 1
    %p179 = por %p177, %p178
    %p181 = scmp.ne.s32.totalorder %s164, %s180
    %p182 = scmp.eq.s32.totalorder %s18, 0
    %p183 = por %p181, %p182
    %p184 = scmp.le.s32.totalorder 1, %s12
    %p185 = scmp.lt.s32.totalorder %s12, 3
    %p186 = pnand %p184, %p185
    %p187 = pneg %p186
    // Predicated region
    $region9: #{attn_block.4} parent=5 // pred_check
      _
    $region10: #{attn_block.4} parent=5 // pred_check_branch
      %189 = sbr.rel (%p186) target = $region12
    $region11: #{attn_block.4} parent=5 // pred_region
      %s190 = ssub.s32 %s12, 1
      // Predicated region
      $region13: #{attn_block.4} parent=11 // pred_check
        %p191 = pneg %p99
      $region14: #{attn_block.4} parent=11 // pred_check_branch
        %193 = sbr.rel (%p191) target = $region16
      $region15: #{attn_block.4} parent=11 // pred_region
        _
      $region16: #{attn_block.4} parent=11 // pred_fallthru
        _
      // Predicated region
      $region17: #{attn_block.4} parent=11 // pred_check
        %p194 = pneg %p120
      $region18: #{attn_block.4} parent=11 // pred_check_branch
        %196 = sbr.rel (%p194) target = $region20
      $region19: #{attn_block.4} parent=11 // pred_region
        _
      $region20: #{attn_block.4} parent=11 // pred_fallthru
        _
    $region12: #{attn_block.4} parent=5 // pred_fallthru
      _
    %p197 = scmp.lt.s32.totalorder %s12, 2
    // Predicated region
    $region21: #{attn_block.4} parent=5 // pred_check
      %p198 = pneg %p197
    $region22: #{attn_block.4} parent=5 // pred_check_branch
      %200 = sbr.rel (%p198) target = $region24
    $region23: #{attn_block.4} parent=5 // pred_region
      // Predicated region
      $region25: #{attn_block.4} parent=23 // pred_check
        %p201 = pneg %p46
      $region26: #{attn_block.4} parent=23 // pred_check_branch
        %203 = sbr.rel (%p201) target = $region28
      $region27: #{attn_block.4} parent=23 // pred_region
        %s204 = smul.u32 2, %s20
        %p205 = scmp.lt.s32.totalorder %s19, 1
        %s206 = scalar_select %p205, %s19, 1
        %p207 = scmp.lt.s32.totalorder %s204, 1
        %s208 = scalar_select %p207, %s204, 1
        %s209 = smul.addr %s206, 32
        %s210 = sadd.s32 %s208, %s209
        %s211 = smul.addr %s210, 8
        %s212 = scalar_lea.vmem %s0, %s211
        %s213 = smul.u32 2, %s20
      $region28: #{attn_block.4} parent=23 // pred_fallthru
        _
      // Predicated region
      $region29: #{attn_block.4} parent=23 // pred_check
        %p214 = pneg %p72
      $region30: #{attn_block.4} parent=23 // pred_check_branch
        %216 = sbr.rel (%p214) target = $region32
      $region31: #{attn_block.4} parent=23 // pred_region
        %p217 = scmp.lt.s32.totalorder %s19, 1
        %s218 = scalar_select %p217, %s19, 1
        %s219 = smul.addr %s218, 16
        %s220 = smul.addr %s219, 8
        %s221 = scalar_lea.vmem %s1, %s220
      $region32: #{attn_block.4} parent=23 // pred_fallthru
        _
    $region24: #{attn_block.4} parent=5 // pred_fallthru
      _
    %p222 = scmp.le.s32.totalorder 1, %s12
    %p223 = scmp.lt.s32.totalorder %s12, 3
    %p224 = pnand %p222, %p223
    %p225 = pneg %p224
    // Predicated region
    $region33: #{attn_block.4} parent=5 // pred_check
      _
    $region34: #{attn_block.4} parent=5 // pred_check_branch
      %227 = sbr.rel (%p224) target = $region36
    $region35: #{attn_block.4} parent=5 // pred_region
      %s228 = ssub.s32 %s12, 1
      %s229 = smul.u32 2, %s22
      %p230 = scmp.lt.s32.totalorder %s21, 1
      %s231 = scalar_select %p230, %s21, 1
      %p232 = scmp.lt.s32.totalorder %s229, 1
      %s233 = scalar_select %p232, %s229, 1
      %s234 = smul.addr %s231, 32
      %s235 = sadd.s32 %s233, %s234
      %s236 = smul.addr %s235, 8
      %s237 = scalar_lea.vmem %s0, %s236
      %p238 = pneg %p52
      %p239 = pneg %p49
      %p240 = scmp.lt.s32.totalorder %s21, 1
      %s241 = scalar_select %p240, %s21, 1
      %s242 = smul.addr %s241, 16
      %s243 = smul.addr %s242, 8
      %s244 = scalar_lea.vmem %s1, %s243
      %p245 = pneg %p78
      %p246 = pneg %p75
      %p247 = pneg %p99
      %p248 = pneg %p96
      %p249 = pneg %p120
      %p250 = pneg %p117
      %p251 = pneg %p148
      %p252 = pneg %p145
      %s253 = smul.u32 32, %s22
      %p254 = scmp.lt.s32.totalorder %s21, 1
      %s255 = scalar_select %p254, %s21, 1
      %p256 = scmp.lt.s32.totalorder %s253, 31
      %s257 = scalar_select %p256, %s253, 31
      %s258 = smul.addr %s255, 32
      %s259 = sadd.s32 %s257, %s258
      %s260 = smul.addr %s259, 4
      %s261 = scalar_lea.vmem %s4, %s260
      %p262 = pneg %p176
      %p263 = pneg %p173
      %s264 = smul.u32 32, %s22
      %p265 = scmp.lt.s32.totalorder %s21, 1
      %s266 = scalar_select %p265, %s21, 1
      %p267 = scmp.lt.s32.totalorder %s264, 31
      %s268 = scalar_select %p267, %s264, 31
      %s269 = smul.addr %s268, 2
      %s270 = smul.addr %s266, 64
      %s271 = sadd.s32 %s269, %s270
      %s272 = smul.addr %s271, 4
      %s273 = scalar_lea.vmem %s5, %s272
      %s274 = smul.u32 2, %s22
      %p275 = scmp.lt.s32.totalorder %s21, 1
      %s276 = scalar_select %p275, %s21, 1
      %p277 = scmp.lt.s32.totalorder %s274, 1
      %s278 = scalar_select %p277, %s274, 1
      %s279 = smul.addr %s276, 32
      %s280 = sadd.s32 %s278, %s279
      %s281 = smul.addr %s280, 8
      %s282 = scalar_lea.vmem %s0, %s281
      %s283 = smul.u32 2, %s22
      %p284 = scmp.lt.s32.totalorder %s21, 1
      %s285 = scalar_select %p284, %s21, 1
      %s286 = smul.addr %s285, 16
      %s287 = smul.addr %s286, 8
      %s288 = scalar_lea.vmem %s1, %s287
      %s289 = smul.u32 32, %s22
      %p290 = scmp.lt.s32.totalorder %s21, 1
      %s291 = scalar_select %p290, %s21, 1
      %p292 = scmp.lt.s32.totalorder %s289, 31
      %s293 = scalar_select %p292, %s289, 31
      %s294 = smul.addr %s291, 32
      %s295 = sadd.s32 %s293, %s294
      %s296 = smul.addr %s295, 4
      %s297 = scalar_lea.vmem %s4, %s296
      %s298 = smul.u32 32, %s22
      %s299 = smul.u32 32, %s22
      %p300 = scmp.lt.s32.totalorder %s21, 1
      %s301 = scalar_select %p300, %s21, 1
      %p302 = scmp.lt.s32.totalorder %s299, 31
      %s303 = scalar_select %p302, %s299, 31
      %s304 = smul.addr %s303, 2
      %s305 = smul.addr %s301, 64
      %s306 = sadd.s32 %s304, %s305
      %s307 = smul.addr %s306, 4
      %s308 = scalar_lea.vmem %s5, %s307
      %s309 = smul.u32 32, %s22
      %v310 = vld [vmem:[%s282] sm:$0xff]
      %v311 = vld [vmem:[%s282 + $0x8] sm:$0xff]
      %v312 = vld [vmem:[%s282 + $0x10] sm:$0xff]
      %v313 = vld [vmem:[%s282 + $0x18] sm:$0xff]
      %v314 = vld [vmem:[%s282 + $0x20] sm:$0xff]
      %v315 = vld [vmem:[%s282 + $0x28] sm:$0xff]
      %v316 = vld [vmem:[%s282 + $0x30] sm:$0xff]
      %v317 = vld [vmem:[%s282 + $0x38] sm:$0xff]
      %v318 = vld [vmem:[%s282 + $0x40] sm:$0xff]
      %v319 = vld [vmem:[%s282 + $0x48] sm:$0xff]
      %v320 = vld [vmem:[%s282 + $0x50] sm:$0xff]
      %v321 = vld [vmem:[%s282 + $0x58] sm:$0xff]
      %v322 = vld [vmem:[%s282 + $0x60] sm:$0xff]
      %v323 = vld [vmem:[%s282 + $0x68] sm:$0xff]
      %v324 = vld [vmem:[%s282 + $0x70] sm:$0xff]
      %v325 = vld [vmem:[%s282 + $0x78] sm:$0xff]
      %v326 = vld [vmem:[%s282 + $0x80] sm:$0xff]
      %v327 = vld [vmem:[%s282 + $0x88] sm:$0xff]
      %v328 = vld [vmem:[%s282 + $0x90] sm:$0xff]
      %v329 = vld [vmem:[%s282 + $0x98] sm:$0xff]
      %v330 = vld [vmem:[%s282 + $0xa0] sm:$0xff]
      %v331 = vld [vmem:[%s282 + $0xa8] sm:$0xff]
      %v332 = vld [vmem:[%s282 + $0xb0] sm:$0xff]
      %v333 = vld [vmem:[%s282 + $0xb8] sm:$0xff]
      %v334 = vld [vmem:[%s282 + $0xc0] sm:$0xff]
      %v335 = vld [vmem:[%s282 + $0xc8] sm:$0xff]
      %v336 = vld [vmem:[%s282 + $0xd0] sm:$0xff]
      %v337 = vld [vmem:[%s282 + $0xd8] sm:$0xff]
      %v338 = vld [vmem:[%s282 + $0xe0] sm:$0xff]
      %v339 = vld [vmem:[%s282 + $0xe8] sm:$0xff]
      %v340 = vld [vmem:[%s282 + $0xf0] sm:$0xff]
      %v341 = vld [vmem:[%s282 + $0xf8] sm:$0xff]
      %v342 = vld [vmem:[%s288] sm:$0xff]
      %v343 = vld [vmem:[%s288 + $0x8] sm:$0xff]
      %v344 = vld [vmem:[%s288 + $0x10] sm:$0xff]
      %v345 = vld [vmem:[%s288 + $0x18] sm:$0xff]
      %v346 = vld [vmem:[%s288 + $0x20] sm:$0xff]
      %v347 = vld [vmem:[%s288 + $0x28] sm:$0xff]
      %v348 = vld [vmem:[%s288 + $0x30] sm:$0xff]
      %v349 = vld [vmem:[%s288 + $0x38] sm:$0xff]
      %v350 = vld [vmem:[%s288 + $0x40] sm:$0xff]
      %v351 = vld [vmem:[%s288 + $0x48] sm:$0xff]
      %v352 = vld [vmem:[%s288 + $0x50] sm:$0xff]
      %v353 = vld [vmem:[%s288 + $0x58] sm:$0xff]
      %v354 = vld [vmem:[%s288 + $0x60] sm:$0xff]
      %v355 = vld [vmem:[%s288 + $0x68] sm:$0xff]
      %v356 = vld [vmem:[%s288 + $0x70] sm:$0xff]
      %v357 = vld [vmem:[%s288 + $0x78] sm:$0xff]
      %359 = vset.pattern.permute.xlu0 0
      %360 = vperm.xlu0 %359, %v342
      %v361 = vpop.permute.xlu0 %360
      %364 = vset.pattern.permute.xlu0 0
      %365 = vperm.xlu0 %364, %v343
      %v366 = vpop.permute.xlu0 %365
      %369 = vset.pattern.permute.xlu0 0
      %370 = vperm.xlu0 %369, %v344
      %v371 = vpop.permute.xlu0 %370
      %374 = vset.pattern.permute.xlu0 0
      %375 = vperm.xlu0 %374, %v345
      %v376 = vpop.permute.xlu0 %375
      %379 = vset.pattern.permute.xlu0 0
      %380 = vperm.xlu0 %379, %v346
      %v381 = vpop.permute.xlu0 %380
      %384 = vset.pattern.permute.xlu0 0
      %385 = vperm.xlu0 %384, %v347
      %v386 = vpop.permute.xlu0 %385
      %389 = vset.pattern.permute.xlu0 0
      %390 = vperm.xlu0 %389, %v348
      %v391 = vpop.permute.xlu0 %390
      %394 = vset.pattern.permute.xlu0 0
      %395 = vperm.xlu0 %394, %v349
      %v396 = vpop.permute.xlu0 %395
      %399 = vset.pattern.permute.xlu0 0
      %400 = vperm.xlu0 %399, %v350
      %v401 = vpop.permute.xlu0 %400
      %404 = vset.pattern.permute.xlu0 0
      %405 = vperm.xlu0 %404, %v351
      %v406 = vpop.permute.xlu0 %405
      %409 = vset.pattern.permute.xlu0 0
      %410 = vperm.xlu0 %409, %v352
      %v411 = vpop.permute.xlu0 %410
      %414 = vset.pattern.permute.xlu0 0
      %415 = vperm.xlu0 %414, %v353
      %v416 = vpop.permute.xlu0 %415
      %419 = vset.pattern.permute.xlu0 0
      %420 = vperm.xlu0 %419, %v354
      %v421 = vpop.permute.xlu0 %420
      %424 = vset.pattern.permute.xlu0 0
      %425 = vperm.xlu0 %424, %v355
      %v426 = vpop.permute.xlu0 %425
      %429 = vset.pattern.permute.xlu0 0
      %430 = vperm.xlu0 %429, %v356
      %v431 = vpop.permute.xlu0 %430
      %434 = vset.pattern.permute.xlu0 0
      %435 = vperm.xlu0 %434, %v357
      %v436 = vpop.permute.xlu0 %435
      %v438 = vmul.f32 %v310, %v361
      %v439 = vmul.f32 %v311, %v361
      %v440 = vmul.f32 %v312, %v366
      %v441 = vmul.f32 %v313, %v366
      %v442 = vmul.f32 %v314, %v371
      %v443 = vmul.f32 %v315, %v371
      %v444 = vmul.f32 %v316, %v376
      %v445 = vmul.f32 %v317, %v376
      %v446 = vmul.f32 %v318, %v381
      %v447 = vmul.f32 %v319, %v381
      %v448 = vmul.f32 %v320, %v386
      %v449 = vmul.f32 %v321, %v386
      %v450 = vmul.f32 %v322, %v391
      %v451 = vmul.f32 %v323, %v391
      %v452 = vmul.f32 %v324, %v396
      %v453 = vmul.f32 %v325, %v396
      %v454 = vmul.f32 %v326, %v401
      %v455 = vmul.f32 %v327, %v401
      %v456 = vmul.f32 %v328, %v406
      %v457 = vmul.f32 %v329, %v406
      %v458 = vmul.f32 %v330, %v411
      %v459 = vmul.f32 %v331, %v411
      %v460 = vmul.f32 %v332, %v416
      %v461 = vmul.f32 %v333, %v416
      %v462 = vmul.f32 %v334, %v421
      %v463 = vmul.f32 %v335, %v421
      %v464 = vmul.f32 %v336, %v426
      %v465 = vmul.f32 %v337, %v426
      %v466 = vmul.f32 %v338, %v431
      %v467 = vmul.f32 %v339, %v431
      %v468 = vmul.f32 %v340, %v436
      %v469 = vmul.f32 %v341, %v436
      %470 = vset.pattern.permute.xlu0 1
      %471 = vperm.xlu0 %470, %v342
      %v472 = vpop.permute.xlu0 %471
      %474 = vset.pattern.permute.xlu0 1
      %475 = vperm.xlu0 %474, %v343
      %v476 = vpop.permute.xlu0 %475
      %478 = vset.pattern.permute.xlu0 1
      %479 = vperm.xlu0 %478, %v344
      %v480 = vpop.permute.xlu0 %479
      %482 = vset.pattern.permute.xlu0 1
      %483 = vperm.xlu0 %482, %v345
      %v484 = vpop.permute.xlu0 %483
      %486 = vset.pattern.permute.xlu0 1
      %487 = vperm.xlu0 %486, %v346
      %v488 = vpop.permute.xlu0 %487
      %490 = vset.pattern.permute.xlu0 1
      %491 = vperm.xlu0 %490, %v347
      %v492 = vpop.permute.xlu0 %491
      %494 = vset.pattern.permute.xlu0 1
      %495 = vperm.xlu0 %494, %v348
      %v496 = vpop.permute.xlu0 %495
      %498 = vset.pattern.permute.xlu0 1
      %499 = vperm.xlu0 %498, %v349
      %v500 = vpop.permute.xlu0 %499
      %502 = vset.pattern.permute.xlu0 1
      %503 = vperm.xlu0 %502, %v350
      %v504 = vpop.permute.xlu0 %503
      %506 = vset.pattern.permute.xlu0 1
      %507 = vperm.xlu0 %506, %v351
      %v508 = vpop.permute.xlu0 %507
      %510 = vset.pattern.permute.xlu0 1
      %511 = vperm.xlu0 %510, %v352
      %v512 = vpop.permute.xlu0 %511
      %514 = vset.pattern.permute.xlu0 1
      %515 = vperm.xlu0 %514, %v353
      %v516 = vpop.permute.xlu0 %515
      %518 = vset.pattern.permute.xlu0 1
      %519 = vperm.xlu0 %518, %v354
      %v520 = vpop.permute.xlu0 %519
      %522 = vset.pattern.permute.xlu0 1
      %523 = vperm.xlu0 %522, %v355
      %v524 = vpop.permute.xlu0 %523
      %526 = vset.pattern.permute.xlu0 1
      %527 = vperm.xlu0 %526, %v356
      %v528 = vpop.permute.xlu0 %527
      %530 = vset.pattern.permute.xlu0 1
      %531 = vperm.xlu0 %530, %v357
      %v532 = vpop.permute.xlu0 %531
      %v534 = vadd.f32 %v438, %v472
      %v535 = vadd.f32 %v439, %v472
      %v536 = vadd.f32 %v440, %v476
      %v537 = vadd.f32 %v441, %v476
      %v538 = vadd.f32 %v442, %v480
      %v539 = vadd.f32 %v443, %v480
      %v540 = vadd.f32 %v444, %v484
      %v541 = vadd.f32 %v445, %v484
      %v542 = vadd.f32 %v446, %v488
      %v543 = vadd.f32 %v447, %v488
      %v544 = vadd.f32 %v448, %v492
      %v545 = vadd.f32 %v449, %v492
      %v546 = vadd.f32 %v450, %v496
      %v547 = vadd.f32 %v451, %v496
      %v548 = vadd.f32 %v452, %v500
      %v549 = vadd.f32 %v453, %v500
      %v550 = vadd.f32 %v454, %v504
      %v551 = vadd.f32 %v455, %v504
      %v552 = vadd.f32 %v456, %v508
      %v553 = vadd.f32 %v457, %v508
      %v554 = vadd.f32 %v458, %v512
      %v555 = vadd.f32 %v459, %v512
      %v556 = vadd.f32 %v460, %v516
      %v557 = vadd.f32 %v461, %v516
      %v558 = vadd.f32 %v462, %v520
      %v559 = vadd.f32 %v463, %v520
      %v560 = vadd.f32 %v464, %v524
      %v561 = vadd.f32 %v465, %v524
      %v562 = vadd.f32 %v466, %v528
      %v563 = vadd.f32 %v467, %v528
      %v564 = vadd.f32 %v468, %v532
      %v565 = vadd.f32 %v469, %v532
      %566 = vxpose.xlu0.b32.start [1/16] %v534, 128
      %567 = vxpose.xlu0.b32.cont [2/16] %v536, 128
      %568 = vxpose.xlu0.b32.cont [3/16] %v538, 128
      %569 = vxpose.xlu0.b32.cont [4/16] %v540, 128
      %570 = vxpose.xlu0.b32.cont [5/16] %v542, 128
      %571 = vxpose.xlu0.b32.cont [6/16] %v544, 128
      %572 = vxpose.xlu0.b32.cont [7/16] %v546, 128
      %573 = vxpose.xlu0.b32.cont [8/16] %v548, 128
      %574 = vxpose.xlu0.b32.cont [9/16] %v550, 128
      %575 = vxpose.xlu0.b32.cont [10/16] %v552, 128
      %576 = vxpose.xlu0.b32.cont [11/16] %v554, 128
      %577 = vxpose.xlu0.b32.cont [12/16] %v556, 128
      %578 = vxpose.xlu0.b32.cont [13/16] %v558, 128
      %579 = vxpose.xlu0.b32.cont [14/16] %v560, 128
      %580 = vxpose.xlu0.b32.cont [15/16] %v562, 128
      %581 = vxpose.xlu0.b32.end [16/16] %v564, 128
      %v582 = vpop.trf.xlu0
      %v583 = vpop.trf.xlu0
      %v584 = vpop.trf.xlu0
      %v585 = vpop.trf.xlu0
      %v586 = vpop.trf.xlu0
      %v587 = vpop.trf.xlu0
      %v588 = vpop.trf.xlu0
      %v589 = vpop.trf.xlu0
      %v590 = vpop.trf.xlu0
      %v591 = vpop.trf.xlu0
      %v592 = vpop.trf.xlu0
      %v593 = vpop.trf.xlu0
      %v594 = vpop.trf.xlu0
      %v595 = vpop.trf.xlu0
      %v596 = vpop.trf.xlu0
      %v597 = vpop.trf.xlu0
      %598 = vxpose.xlu0.b32.start [1/16] %v535, 128
      %599 = vxpose.xlu0.b32.cont [2/16] %v537, 128
      %600 = vxpose.xlu0.b32.cont [3/16] %v539, 128
      %601 = vxpose.xlu0.b32.cont [4/16] %v541, 128
      %602 = vxpose.xlu0.b32.cont [5/16] %v543, 128
      %603 = vxpose.xlu0.b32.cont [6/16] %v545, 128
      %604 = vxpose.xlu0.b32.cont [7/16] %v547, 128
      %605 = vxpose.xlu0.b32.cont [8/16] %v549, 128
      %606 = vxpose.xlu0.b32.cont [9/16] %v551, 128
      %607 = vxpose.xlu0.b32.cont [10/16] %v553, 128
      %608 = vxpose.xlu0.b32.cont [11/16] %v555, 128
      %609 = vxpose.xlu0.b32.cont [12/16] %v557, 128
      %610 = vxpose.xlu0.b32.cont [13/16] %v559, 128
      %611 = vxpose.xlu0.b32.cont [14/16] %v561, 128
      %612 = vxpose.xlu0.b32.cont [15/16] %v563, 128
      %613 = vxpose.xlu0.b32.end [16/16] %v565, 128
      %v614 = vpop.trf.xlu0
      %v615 = vpop.trf.xlu0
      %v616 = vpop.trf.xlu0
      %v617 = vpop.trf.xlu0
      %v618 = vpop.trf.xlu0
      %v619 = vpop.trf.xlu0
      %v620 = vpop.trf.xlu0
      %v621 = vpop.trf.xlu0
      %v622 = vpop.trf.xlu0
      %v623 = vpop.trf.xlu0
      %v624 = vpop.trf.xlu0
      %v625 = vpop.trf.xlu0
      %v626 = vpop.trf.xlu0
      %v627 = vpop.trf.xlu0
      %v628 = vpop.trf.xlu0
      %v629 = vpop.trf.xlu0
      %v630 = vpack.c.bf16 %v583, %v582
      %v631 = vpack.c.bf16 %v585, %v584
      %v632 = vpack.c.bf16 %v587, %v586
      %v633 = vpack.c.bf16 %v589, %v588
      %v634 = vpack.c.bf16 %v591, %v590
      %v635 = vpack.c.bf16 %v593, %v592
      %v636 = vpack.c.bf16 %v595, %v594
      %v637 = vpack.c.bf16 %v597, %v596
      %v638 = vpack.c.bf16 %v615, %v614
      %v639 = vpack.c.bf16 %v617, %v616
      %v640 = vpack.c.bf16 %v619, %v618
      %v641 = vpack.c.bf16 %v621, %v620
      %v642 = vpack.c.bf16 %v623, %v622
      %v643 = vpack.c.bf16 %v625, %v624
      %v644 = vpack.c.bf16 %v627, %v626
      %v645 = vpack.c.bf16 %v629, %v628
      %v646 = vld [vmem:[%s2] sm:$0xff]
      %v647 = vld [vmem:[%s2 + $0x8] sm:$0xf]
      %v648 = vld [vmem:[%s2 + $0xc] sm:$0xff]
      %v649 = vld [vmem:[%s2 + $0x14] sm:$0xf]
      %v650 = vld [vmem:[%s2 + $0x18] sm:$0xff]
      %v651 = vld [vmem:[%s2 + $0x20] sm:$0xf]
      %v652 = vld [vmem:[%s2 + $0x24] sm:$0xff]
      %v653 = vld [vmem:[%s2 + $0x2c] sm:$0xf]
      %v654 = vld [vmem:[%s2 + $0x30] sm:$0xff]
      %v655 = vld [vmem:[%s2 + $0x38] sm:$0xf]
      %v656 = vld [vmem:[%s2 + $0x3c] sm:$0xff]
      %v657 = vld [vmem:[%s2 + $0x44] sm:$0xf]
      %v658 = vld [vmem:[%s2 + $0x48] sm:$0xff]
      %v659 = vld [vmem:[%s2 + $0x50] sm:$0xf]
      %v660 = vld [vmem:[%s2 + $0x54] sm:$0xff]
      %v661 = vld [vmem:[%s2 + $0x5c] sm:$0xf]
      %v662 = vld [vmem:[%s2 + $0x60] sm:$0xff]
      %v663 = vld [vmem:[%s2 + $0x68] sm:$0xf]
      %v664 = vld [vmem:[%s2 + $0x6c] sm:$0xff]
      %v665 = vld [vmem:[%s2 + $0x74] sm:$0xf]
      %v666 = vld [vmem:[%s2 + $0x78] sm:$0xff]
      %v667 = vld [vmem:[%s2 + $0x80] sm:$0xf]
      %v668 = vld [vmem:[%s2 + $0x84] sm:$0xff]
      %v669 = vld [vmem:[%s2 + $0x8c] sm:$0xf]
      %v670 = vld [vmem:[%s2 + $0x90] sm:$0xff]
      %v671 = vld [vmem:[%s2 + $0x98] sm:$0xf]
      %v672 = vld [vmem:[%s2 + $0x9c] sm:$0xff]
      %v673 = vld [vmem:[%s2 + $0xa4] sm:$0xf]
      %v674 = vld [vmem:[%s2 + $0xa8] sm:$0xff]
      %v675 = vld [vmem:[%s2 + $0xb0] sm:$0xf]
      %v676 = vld [vmem:[%s2 + $0xb4] sm:$0xff]
      %v677 = vld [vmem:[%s2 + $0xbc] sm:$0xf]
      %v678 = vld [vmem:[%s3] sm:$0x7]
      %v680 = vperm.slane %v678, 0
      %v681 = vperm.slane %v678, 1
      %v682 = vperm.slane %v678, 2
      %v718 = vunpack.c.l.b16 %v646
      %v719 = vunpack.c.h.b16 %v646
      %v720 = vunpack.c.l.b16 %v647
      %v721 = vunpack.c.l.b16 %v648
      %v722 = vunpack.c.h.b16 %v648
      %v723 = vunpack.c.l.b16 %v649
      %v724 = vunpack.c.l.b16 %v650
      %v725 = vunpack.c.h.b16 %v650
      %v726 = vunpack.c.l.b16 %v651
      %v727 = vunpack.c.l.b16 %v652
      %v728 = vunpack.c.h.b16 %v652
      %v729 = vunpack.c.l.b16 %v653
      %v730 = vunpack.c.l.b16 %v654
      %v731 = vunpack.c.h.b16 %v654
      %v732 = vunpack.c.l.b16 %v655
      %v733 = vunpack.c.l.b16 %v656
      %v734 = vunpack.c.h.b16 %v656
      %v735 = vunpack.c.l.b16 %v657
      %v736 = vunpack.c.l.b16 %v658
      %v737 = vunpack.c.h.b16 %v658
      %v738 = vunpack.c.l.b16 %v659
      %v739 = vunpack.c.l.b16 %v660
      %v740 = vunpack.c.h.b16 %v660
      %v741 = vunpack.c.l.b16 %v661
      %v742 = vunpack.c.l.b16 %v662
      %v743 = vunpack.c.h.b16 %v662
      %v744 = vunpack.c.l.b16 %v663
      %v745 = vunpack.c.l.b16 %v664
      %v746 = vunpack.c.h.b16 %v664
      %v747 = vunpack.c.l.b16 %v665
      %v748 = vunpack.c.l.b16 %v666
      %v749 = vunpack.c.h.b16 %v666
      %v750 = vunpack.c.l.b16 %v667
      %v751 = vunpack.c.l.b16 %v668
      %v752 = vunpack.c.h.b16 %v668
      %v753 = vunpack.c.l.b16 %v669
      %v754 = vunpack.c.l.b16 %v670
      %v755 = vunpack.c.h.b16 %v670
      %v756 = vunpack.c.l.b16 %v671
      %v757 = vunpack.c.l.b16 %v672
      %v758 = vunpack.c.h.b16 %v672
      %v759 = vunpack.c.l.b16 %v673
      %v760 = vunpack.c.l.b16 %v674
      %v761 = vunpack.c.h.b16 %v674
      %v762 = vunpack.c.l.b16 %v675
      %v763 = vunpack.c.l.b16 %v676
      %v764 = vunpack.c.h.b16 %v676
      %v765 = vunpack.c.l.b16 %v677
      %v766 = vpack.c.b16 %v721, %v718
      %v767 = vpack.c.b16 %v722, %v719
      %v768 = vpack.c.b16 %v723, %v720
      %v769 = vpack.c.b16 %v727, %v724
      %v770 = vpack.c.b16 %v728, %v725
      %v771 = vpack.c.b16 %v729, %v726
      %v772 = vpack.c.b16 %v733, %v730
      %v773 = vpack.c.b16 %v734, %v731
      %v774 = vpack.c.b16 %v735, %v732
      %v775 = vpack.c.b16 %v739, %v736
      %v776 = vpack.c.b16 %v740, %v737
      %v777 = vpack.c.b16 %v741, %v738
      %v778 = vpack.c.b16 %v745, %v742
      %v779 = vpack.c.b16 %v746, %v743
      %v780 = vpack.c.b16 %v747, %v744
      %v781 = vpack.c.b16 %v751, %v748
      %v782 = vpack.c.b16 %v752, %v749
      %v783 = vpack.c.b16 %v753, %v750
      %v784 = vpack.c.b16 %v757, %v754
      %v785 = vpack.c.b16 %v758, %v755
      %v786 = vpack.c.b16 %v759, %v756
      %v787 = vpack.c.b16 %v763, %v760
      %v788 = vpack.c.b16 %v764, %v761
      %v789 = vpack.c.b16 %v765, %v762
      %814 = vmatpush.bf16.msra.mxu0 %v787
      %815 = vmatpush.bf16.msra.mxu0 %v784
      %816 = vmatpush.bf16.msra.mxu0 %v781
      %817 = vmatpush.bf16.msra.mxu0 %v778
      %818 = vmatpush.bf16.msra.mxu0 %v775
      %819 = vmatpush.bf16.msra.mxu0 %v772
      %820 = vmatpush.bf16.msra.mxu0 %v769
      %821 = vmatpush.bf16.msra.mxu0 %v766
      %822 = vmatmul.bf16.gmra.mxu0 %v630
      %v823 = vpop.f32.mrf.mxu0
      %v824 = vadd.f32 %v680, %v823
      %v825 = vpop.f32.mrf.mxu0
      %v826 = vadd.f32 %v680, %v825
      %827 = vmatmul.bf16.gmra.mxu0 %v631
      %v828 = vpop.f32.mrf.mxu0
      %v829 = vadd.f32 %v680, %v828
      %v830 = vpop.f32.mrf.mxu0
      %v831 = vadd.f32 %v680, %v830
      %832 = vmatmul.bf16.gmra.mxu0 %v632
      %v833 = vpop.f32.mrf.mxu0
      %v834 = vadd.f32 %v680, %v833
      %v835 = vpop.f32.mrf.mxu0
      %v836 = vadd.f32 %v680, %v835
      %837 = vmatmul.bf16.gmra.mxu0 %v633
      %v838 = vpop.f32.mrf.mxu0
      %v839 = vadd.f32 %v680, %v838
      %v840 = vpop.f32.mrf.mxu0
      %v841 = vadd.f32 %v680, %v840
      %842 = vmatmul.bf16.gmra.mxu0 %v634
      %v843 = vpop.f32.mrf.mxu0
      %v844 = vadd.f32 %v680, %v843
      %v845 = vpop.f32.mrf.mxu0
      %v846 = vadd.f32 %v680, %v845
      %847 = vmatmul.bf16.gmra.mxu0 %v635
      %v848 = vpop.f32.mrf.mxu0
      %v849 = vadd.f32 %v680, %v848
      %v850 = vpop.f32.mrf.mxu0
      %v851 = vadd.f32 %v680, %v850
      %852 = vmatmul.bf16.gmra.mxu0 %v636
      %v853 = vpop.f32.mrf.mxu0
      %v854 = vadd.f32 %v680, %v853
      %v855 = vpop.f32.mrf.mxu0
      %v856 = vadd.f32 %v680, %v855
      %857 = vmatmul.bf16.gmra.mxu0 %v637
      %v858 = vpop.f32.mrf.mxu0
      %v859 = vadd.f32 %v680, %v858
      %v860 = vpop.f32.mrf.mxu0
      %v861 = vadd.f32 %v680, %v860
      %862 = vmatmul.bf16.gmra.mxu0 %v638
      %v863 = vpop.f32.mrf.mxu0
      %v864 = vadd.f32 %v680, %v863
      %v865 = vpop.f32.mrf.mxu0
      %v866 = vadd.f32 %v680, %v865
      %867 = vmatmul.bf16.gmra.mxu0 %v639
      %v868 = vpop.f32.mrf.mxu0
      %v869 = vadd.f32 %v680, %v868
      %v870 = vpop.f32.mrf.mxu0
      %v871 = vadd.f32 %v680, %v870
      %872 = vmatmul.bf16.gmra.mxu0 %v640
      %v873 = vpop.f32.mrf.mxu0
      %v874 = vadd.f32 %v680, %v873
      %v875 = vpop.f32.mrf.mxu0
      %v876 = vadd.f32 %v680, %v875
      %877 = vmatmul.bf16.gmra.mxu0 %v641
      %v878 = vpop.f32.mrf.mxu0
      %v879 = vadd.f32 %v680, %v878
      %v880 = vpop.f32.mrf.mxu0
      %v881 = vadd.f32 %v680, %v880
      %882 = vmatmul.bf16.gmra.mxu0 %v642
      %v883 = vpop.f32.mrf.mxu0
      %v884 = vadd.f32 %v680, %v883
      %v885 = vpop.f32.mrf.mxu0
      %v886 = vadd.f32 %v680, %v885
      %887 = vmatmul.bf16.gmra.mxu0 %v643
      %v888 = vpop.f32.mrf.mxu0
      %v889 = vadd.f32 %v680, %v888
      %v890 = vpop.f32.mrf.mxu0
      %v891 = vadd.f32 %v680, %v890
      %892 = vmatmul.bf16.gmra.mxu0 %v644
      %v893 = vpop.f32.mrf.mxu0
      %v894 = vadd.f32 %v680, %v893
      %v895 = vpop.f32.mrf.mxu0
      %v896 = vadd.f32 %v680, %v895
      %897 = vmatmul.bf16.gmra.mxu0 %v645
      %v898 = vpop.f32.mrf.mxu0
      %v899 = vadd.f32 %v680, %v898
      %v900 = vpop.f32.mrf.mxu0
      %v901 = vadd.f32 %v680, %v900
      %902 = vdwg.mxu0
      %903 = vmatpush.bf16.msra.mxu0 %v788
      %904 = vmatpush.bf16.msra.mxu0 %v785
      %905 = vmatpush.bf16.msra.mxu0 %v782
      %906 = vmatpush.bf16.msra.mxu0 %v779
      %907 = vmatpush.bf16.msra.mxu0 %v776
      %908 = vmatpush.bf16.msra.mxu0 %v773
      %909 = vmatpush.bf16.msra.mxu0 %v770
      %910 = vmatpush.bf16.msra.mxu0 %v767
      %911 = vmatmul.bf16.gmra.mxu0 %v630
      %v912 = vpop.f32.mrf.mxu0
      %v913 = vadd.f32 %v681, %v912
      %v914 = vpop.f32.mrf.mxu0
      %v915 = vadd.f32 %v681, %v914
      %916 = vmatmul.bf16.gmra.mxu0 %v631
      %v917 = vpop.f32.mrf.mxu0
      %v918 = vadd.f32 %v681, %v917
      %v919 = vpop.f32.mrf.mxu0
      %v920 = vadd.f32 %v681, %v919
      %921 = vmatmul.bf16.gmra.mxu0 %v632
      %v922 = vpop.f32.mrf.mxu0
      %v923 = vadd.f32 %v681, %v922
      %v924 = vpop.f32.mrf.mxu0
      %v925 = vadd.f32 %v681, %v924
      %926 = vmatmul.bf16.gmra.mxu0 %v633
      %v927 = vpop.f32.mrf.mxu0
      %v928 = vadd.f32 %v681, %v927
      %v929 = vpop.f32.mrf.mxu0
      %v930 = vadd.f32 %v681, %v929
      %931 = vmatmul.bf16.gmra.mxu0 %v634
      %v932 = vpop.f32.mrf.mxu0
      %v933 = vadd.f32 %v681, %v932
      %v934 = vpop.f32.mrf.mxu0
      %v935 = vadd.f32 %v681, %v934
      %936 = vmatmul.bf16.gmra.mxu0 %v635
      %v937 = vpop.f32.mrf.mxu0
      %v938 = vadd.f32 %v681, %v937
      %v939 = vpop.f32.mrf.mxu0
      %v940 = vadd.f32 %v681, %v939
      %941 = vmatmul.bf16.gmra.mxu0 %v636
      %v942 = vpop.f32.mrf.mxu0
      %v943 = vadd.f32 %v681, %v942
      %v944 = vpop.f32.mrf.mxu0
      %v945 = vadd.f32 %v681, %v944
      %946 = vmatmul.bf16.gmra.mxu0 %v637
      %v947 = vpop.f32.mrf.mxu0
      %v948 = vadd.f32 %v681, %v947
      %v949 = vpop.f32.mrf.mxu0
      %v950 = vadd.f32 %v681, %v949
      %951 = vmatmul.bf16.gmra.mxu0 %v638
      %v952 = vpop.f32.mrf.mxu0
      %v953 = vadd.f32 %v681, %v952
      %v954 = vpop.f32.mrf.mxu0
      %v955 = vadd.f32 %v681, %v954
      %956 = vmatmul.bf16.gmra.mxu0 %v639
      %v957 = vpop.f32.mrf.mxu0
      %v958 = vadd.f32 %v681, %v957
      %v959 = vpop.f32.mrf.mxu0
      %v960 = vadd.f32 %v681, %v959
      %961 = vmatmul.bf16.gmra.mxu0 %v640
      %v962 = vpop.f32.mrf.mxu0
      %v963 = vadd.f32 %v681, %v962
      %v964 = vpop.f32.mrf.mxu0
      %v965 = vadd.f32 %v681, %v964
      %966 = vmatmul.bf16.gmra.mxu0 %v641
      %v967 = vpop.f32.mrf.mxu0
      %v968 = vadd.f32 %v681, %v967
      %v969 = vpop.f32.mrf.mxu0
      %v970 = vadd.f32 %v681, %v969
      %971 = vmatmul.bf16.gmra.mxu0 %v642
      %v972 = vpop.f32.mrf.mxu0
      %v973 = vadd.f32 %v681, %v972
      %v974 = vpop.f32.mrf.mxu0
      %v975 = vadd.f32 %v681, %v974
      %976 = vmatmul.bf16.gmra.mxu0 %v643
      %v977 = vpop.f32.mrf.mxu0
      %v978 = vadd.f32 %v681, %v977
      %v979 = vpop.f32.mrf.mxu0
      %v980 = vadd.f32 %v681, %v979
      %981 = vmatmul.bf16.gmra.mxu0 %v644
      %v982 = vpop.f32.mrf.mxu0
      %v983 = vadd.f32 %v681, %v982
      %v984 = vpop.f32.mrf.mxu0
      %v985 = vadd.f32 %v681, %v984
      %986 = vmatmul.bf16.gmra.mxu0 %v645
      %v987 = vpop.f32.mrf.mxu0
      %v988 = vadd.f32 %v681, %v987
      %v989 = vpop.f32.mrf.mxu0
      %v990 = vadd.f32 %v681, %v989
      %991 = vdwg.mxu0
      %992 = vmatpush.bf16.msra.mxu0 %v789
      %993 = vmatpush.bf16.msra.mxu0 %v786
      %994 = vmatpush.bf16.msra.mxu0 %v783
      %995 = vmatpush.bf16.msra.mxu0 %v780
      %996 = vmatpush.bf16.msra.mxu0 %v777
      %997 = vmatpush.bf16.msra.mxu0 %v774
      %998 = vmatpush.bf16.msra.mxu0 %v771
      %999 = vmatpush.bf16.msra.mxu0 %v768
      %1000 = vmatmul.bf16.gmra.mxu0 %v630
      %v1001 = vpop.f32.mrf.mxu0
      %v1002 = vadd.f32 %v682, %v1001
      %v1003 = vpop.f32.mrf.mxu0
      %v1004 = vadd.f32 %v682, %v1003
      %1005 = vmatmul.bf16.gmra.mxu0 %v631
      %v1006 = vpop.f32.mrf.mxu0
      %v1007 = vadd.f32 %v682, %v1006
      %v1008 = vpop.f32.mrf.mxu0
      %v1009 = vadd.f32 %v682, %v1008
      %1010 = vmatmul.bf16.gmra.mxu0 %v632
      %v1011 = vpop.f32.mrf.mxu0
      %v1012 = vadd.f32 %v682, %v1011
      %v1013 = vpop.f32.mrf.mxu0
      %v1014 = vadd.f32 %v682, %v1013
      %1015 = vmatmul.bf16.gmra.mxu0 %v633
      %v1016 = vpop.f32.mrf.mxu0
      %v1017 = vadd.f32 %v682, %v1016
      %v1018 = vpop.f32.mrf.mxu0
      %v1019 = vadd.f32 %v682, %v1018
      %1020 = vmatmul.bf16.gmra.mxu0 %v634
      %v1021 = vpop.f32.mrf.mxu0
      %v1022 = vadd.f32 %v682, %v1021
      %v1023 = vpop.f32.mrf.mxu0
      %v1024 = vadd.f32 %v682, %v1023
      %1025 = vmatmul.bf16.gmra.mxu0 %v635
      %v1026 = vpop.f32.mrf.mxu0
      %v1027 = vadd.f32 %v682, %v1026
      %v1028 = vpop.f32.mrf.mxu0
      %v1029 = vadd.f32 %v682, %v1028
      %1030 = vmatmul.bf16.gmra.mxu0 %v636
      %v1031 = vpop.f32.mrf.mxu0
      %v1032 = vadd.f32 %v682, %v1031
      %v1033 = vpop.f32.mrf.mxu0
      %v1034 = vadd.f32 %v682, %v1033
      %1035 = vmatmul.bf16.gmra.mxu0 %v637
      %v1036 = vpop.f32.mrf.mxu0
      %v1037 = vadd.f32 %v682, %v1036
      %v1038 = vpop.f32.mrf.mxu0
      %v1039 = vadd.f32 %v682, %v1038
      %1040 = vmatmul.bf16.gmra.mxu0 %v638
      %v1041 = vpop.f32.mrf.mxu0
      %v1042 = vadd.f32 %v682, %v1041
      %v1043 = vpop.f32.mrf.mxu0
      %v1044 = vadd.f32 %v682, %v1043
      %1045 = vmatmul.bf16.gmra.mxu0 %v639
      %v1046 = vpop.f32.mrf.mxu0
      %v1047 = vadd.f32 %v682, %v1046
      %v1048 = vpop.f32.mrf.mxu0
      %v1049 = vadd.f32 %v682, %v1048
      %1050 = vmatmul.bf16.gmra.mxu0 %v640
      %v1051 = vpop.f32.mrf.mxu0
      %v1052 = vadd.f32 %v682, %v1051
      %v1053 = vpop.f32.mrf.mxu0
      %v1054 = vadd.f32 %v682, %v1053
      %1055 = vmatmul.bf16.gmra.mxu0 %v641
      %v1056 = vpop.f32.mrf.mxu0
      %v1057 = vadd.f32 %v682, %v1056
      %v1058 = vpop.f32.mrf.mxu0
      %v1059 = vadd.f32 %v682, %v1058
      %1060 = vmatmul.bf16.gmra.mxu0 %v642
      %v1061 = vpop.f32.mrf.mxu0
      %v1062 = vadd.f32 %v682, %v1061
      %v1063 = vpop.f32.mrf.mxu0
      %v1064 = vadd.f32 %v682, %v1063
      %1065 = vmatmul.bf16.gmra.mxu0 %v643
      %v1066 = vpop.f32.mrf.mxu0
      %v1067 = vadd.f32 %v682, %v1066
      %v1068 = vpop.f32.mrf.mxu0
      %v1069 = vadd.f32 %v682, %v1068
      %1070 = vmatmul.bf16.gmra.mxu0 %v644
      %v1071 = vpop.f32.mrf.mxu0
      %v1072 = vadd.f32 %v682, %v1071
      %v1073 = vpop.f32.mrf.mxu0
      %v1074 = vadd.f32 %v682, %v1073
      %1075 = vmatmul.bf16.gmra.mxu0 %v645
      %v1076 = vpop.f32.mrf.mxu0
      %v1077 = vadd.f32 %v682, %v1076
      %v1078 = vpop.f32.mrf.mxu0
      %v1079 = vadd.f32 %v682, %v1078
      %1080 = vdwg.mxu0
      %v1081 = vpack.c.bf16 %v824, %v824
      %v1082 = vpack.c.bf16 %v826, %v826
      %v1083 = vpack.c.bf16 %v829, %v829
      %v1084 = vpack.c.bf16 %v831, %v831
      %v1085 = vpack.c.bf16 %v834, %v834
      %v1086 = vpack.c.bf16 %v836, %v836
      %v1087 = vpack.c.bf16 %v839, %v839
      %v1088 = vpack.c.bf16 %v841, %v841
      %v1089 = vpack.c.bf16 %v844, %v844
      %v1090 = vpack.c.bf16 %v846, %v846
      %v1091 = vpack.c.bf16 %v849, %v849
      %v1092 = vpack.c.bf16 %v851, %v851
      %v1093 = vpack.c.bf16 %v854, %v854
      %v1094 = vpack.c.bf16 %v856, %v856
      %v1095 = vpack.c.bf16 %v859, %v859
      %v1096 = vpack.c.bf16 %v861, %v861
      %v1097 = vpack.c.bf16 %v864, %v864
      %v1098 = vpack.c.bf16 %v866, %v866
      %v1099 = vpack.c.bf16 %v869, %v869
      %v1100 = vpack.c.bf16 %v871, %v871
      %v1101 = vpack.c.bf16 %v874, %v874
      %v1102 = vpack.c.bf16 %v876, %v876
      %v1103 = vpack.c.bf16 %v879, %v879
      %v1104 = vpack.c.bf16 %v881, %v881
      %v1105 = vpack.c.bf16 %v884, %v884
      %v1106 = vpack.c.bf16 %v886, %v886
      %v1107 = vpack.c.bf16 %v889, %v889
      %v1108 = vpack.c.bf16 %v891, %v891
      %v1109 = vpack.c.bf16 %v894, %v894
      %v1110 = vpack.c.bf16 %v896, %v896
      %v1111 = vpack.c.bf16 %v899, %v899
      %v1112 = vpack.c.bf16 %v901, %v901
      %1113 = vst [vmem:[%s297] sm:$0xf] %v1081
      %1114 = vst [vmem:[%s297 + $0x4] sm:$0xf] %v1082
      %1115 = vst [vmem:[%s297 + $0x8] sm:$0xf] %v1083
      %1116 = vst [vmem:[%s297 + $0xc] sm:$0xf] %v1084
      %1117 = vst [vmem:[%s297 + $0x10] sm:$0xf] %v1085
      %1118 = vst [vmem:[%s297 + $0x14] sm:$0xf] %v1086
      %1119 = vst [vmem:[%s297 + $0x18] sm:$0xf] %v1087
      %1120 = vst [vmem:[%s297 + $0x1c] sm:$0xf] %v1088
      %1121 = vst [vmem:[%s297 + $0x20] sm:$0xf] %v1089
      %1122 = vst [vmem:[%s297 + $0x24] sm:$0xf] %v1090
      %1123 = vst [vmem:[%s297 + $0x28] sm:$0xf] %v1091
      %1124 = vst [vmem:[%s297 + $0x2c] sm:$0xf] %v1092
      %1125 = vst [vmem:[%s297 + $0x30] sm:$0xf] %v1093
      %1126 = vst [vmem:[%s297 + $0x34] sm:$0xf] %v1094
      %1127 = vst [vmem:[%s297 + $0x38] sm:$0xf] %v1095
      %1128 = vst [vmem:[%s297 + $0x3c] sm:$0xf] %v1096
      %1129 = vst [vmem:[%s297 + $0x40] sm:$0xf] %v1097
      %1130 = vst [vmem:[%s297 + $0x44] sm:$0xf] %v1098
      %1131 = vst [vmem:[%s297 + $0x48] sm:$0xf] %v1099
      %1132 = vst [vmem:[%s297 + $0x4c] sm:$0xf] %v1100
      %1133 = vst [vmem:[%s297 + $0x50] sm:$0xf] %v1101
      %1134 = vst [vmem:[%s297 + $0x54] sm:$0xf] %v1102
      %1135 = vst [vmem:[%s297 + $0x58] sm:$0xf] %v1103
      %1136 = vst [vmem:[%s297 + $0x5c] sm:$0xf] %v1104
      %1137 = vst [vmem:[%s297 + $0x60] sm:$0xf] %v1105
      %1138 = vst [vmem:[%s297 + $0x64] sm:$0xf] %v1106
      %1139 = vst [vmem:[%s297 + $0x68] sm:$0xf] %v1107
      %1140 = vst [vmem:[%s297 + $0x6c] sm:$0xf] %v1108
      %1141 = vst [vmem:[%s297 + $0x70] sm:$0xf] %v1109
      %1142 = vst [vmem:[%s297 + $0x74] sm:$0xf] %v1110
      %1143 = vst [vmem:[%s297 + $0x78] sm:$0xf] %v1111
      %1144 = vst [vmem:[%s297 + $0x7c] sm:$0xf] %v1112
      %v1145 = vpack.c.bf16 %v1002, %v913
      %v1146 = vpack.c.bf16 %v1004, %v915
      %v1147 = vpack.c.bf16 %v1007, %v918
      %v1148 = vpack.c.bf16 %v1009, %v920
      %v1149 = vpack.c.bf16 %v1012, %v923
      %v1150 = vpack.c.bf16 %v1014, %v925
      %v1151 = vpack.c.bf16 %v1017, %v928
      %v1152 = vpack.c.bf16 %v1019, %v930
      %v1153 = vpack.c.bf16 %v1022, %v933
      %v1154 = vpack.c.bf16 %v1024, %v935
      %v1155 = vpack.c.bf16 %v1027, %v938
      %v1156 = vpack.c.bf16 %v1029, %v940
      %v1157 = vpack.c.bf16 %v1032, %v943
      %v1158 = vpack.c.bf16 %v1034, %v945
      %v1159 = vpack.c.bf16 %v1037, %v948
      %v1160 = vpack.c.bf16 %v1039, %v950
      %v1161 = vpack.c.bf16 %v1042, %v953
      %v1162 = vpack.c.bf16 %v1044, %v955
      %v1163 = vpack.c.bf16 %v1047, %v958
      %v1164 = vpack.c.bf16 %v1049, %v960
      %v1165 = vpack.c.bf16 %v1052, %v963
      %v1166 = vpack.c.bf16 %v1054, %v965
      %v1167 = vpack.c.bf16 %v1057, %v968
      %v1168 = vpack.c.bf16 %v1059, %v970
      %v1169 = vpack.c.bf16 %v1062, %v973
      %v1170 = vpack.c.bf16 %v1064, %v975
      %v1171 = vpack.c.bf16 %v1067, %v978
      %v1172 = vpack.c.bf16 %v1069, %v980
      %v1173 = vpack.c.bf16 %v1072, %v983
      %v1174 = vpack.c.bf16 %v1074, %v985
      %v1175 = vpack.c.bf16 %v1077, %v988
      %v1176 = vpack.c.bf16 %v1079, %v990
      %1177 = vst [vmem:[%s308] sm:$0xff] %v1145
      %1178 = vst [vmem:[%s308 + $0x8] sm:$0xff] %v1146
      %1179 = vst [vmem:[%s308 + $0x10] sm:$0xff] %v1147
      %1180 = vst [vmem:[%s308 + $0x18] sm:$0xff] %v1148
      %1181 = vst [vmem:[%s308 + $0x20] sm:$0xff] %v1149
      %1182 = vst [vmem:[%s308 + $0x28] sm:$0xff] %v1150
      %1183 = vst [vmem:[%s308 + $0x30] sm:$0xff] %v1151
      %1184 = vst [vmem:[%s308 + $0x38] sm:$0xff] %v1152
      %1185 = vst [vmem:[%s308 + $0x40] sm:$0xff] %v1153
      %1186 = vst [vmem:[%s308 + $0x48] sm:$0xff] %v1154
      %1187 = vst [vmem:[%s308 + $0x50] sm:$0xff] %v1155
      %1188 = vst [vmem:[%s308 + $0x58] sm:$0xff] %v1156
      %1189 = vst [vmem:[%s308 + $0x60] sm:$0xff] %v1157
      %1190 = vst [vmem:[%s308 + $0x68] sm:$0xff] %v1158
      %1191 = vst [vmem:[%s308 + $0x70] sm:$0xff] %v1159
      %1192 = vst [vmem:[%s308 + $0x78] sm:$0xff] %v1160
      %1193 = vst [vmem:[%s308 + $0x80] sm:$0xff] %v1161
      %1194 = vst [vmem:[%s308 + $0x88] sm:$0xff] %v1162
      %1195 = vst [vmem:[%s308 + $0x90] sm:$0xff] %v1163
      %1196 = vst [vmem:[%s308 + $0x98] sm:$0xff] %v1164
      %1197 = vst [vmem:[%s308 + $0xa0] sm:$0xff] %v1165
      %1198 = vst [vmem:[%s308 + $0xa8] sm:$0xff] %v1166
      %1199 = vst [vmem:[%s308 + $0xb0] sm:$0xff] %v1167
      %1200 = vst [vmem:[%s308 + $0xb8] sm:$0xff] %v1168
      %1201 = vst [vmem:[%s308 + $0xc0] sm:$0xff] %v1169
      %1202 = vst [vmem:[%s308 + $0xc8] sm:$0xff] %v1170
      %1203 = vst [vmem:[%s308 + $0xd0] sm:$0xff] %v1171
      %1204 = vst [vmem:[%s308 + $0xd8] sm:$0xff] %v1172
      %1205 = vst [vmem:[%s308 + $0xe0] sm:$0xff] %v1173
      %1206 = vst [vmem:[%s308 + $0xe8] sm:$0xff] %v1174
      %1207 = vst [vmem:[%s308 + $0xf0] sm:$0xff] %v1175
      %1208 = vst [vmem:[%s308 + $0xf8] sm:$0xff] %v1176
      %s1209 = smul.u32 32, %s22
      %p1210 = scmp.lt.s32.totalorder %s21, 1
      %s1211 = scalar_select %p1210, %s21, 1
      %p1212 = scmp.lt.s32.totalorder %s1209, 31
      %s1213 = scalar_select %p1212, %s1209, 31
      %s1214 = smul.addr %s1211, 32
      %s1215 = sadd.s32 %s1213, %s1214
      %s1216 = smul.addr %s1215, 4
      %s1217 = scalar_lea.vmem %s4, %s1216
      %s1218 = smul.u32 32, %s22
      %p1219 = scmp.lt.s32.totalorder %s21, 1
      %s1220 = scalar_select %p1219, %s21, 1
      %p1221 = scmp.lt.s32.totalorder %s1218, 31
      %s1222 = scalar_select %p1221, %s1218, 31
      %s1223 = smul.addr %s1222, 2
      %s1224 = smul.addr %s1220, 64
      %s1225 = sadd.s32 %s1223, %s1224
      %s1226 = smul.addr %s1225, 4
      %s1227 = scalar_lea.vmem %s5, %s1226
      // Predicated region
      $region37: #{attn_block.4} parent=35 // pred_check
        %p1228 = pneg %p145
      $region38: #{attn_block.4} parent=35 // pred_check_branch
        %1230 = sbr.rel (%p1228) target = $region40
      $region39: #{attn_block.4} parent=35 // pred_region
        %s1231 = smul.u32 32, %s22
      $region40: #{attn_block.4} parent=35 // pred_fallthru
        _
      // Predicated region
      $region41: #{attn_block.4} parent=35 // pred_check
        %p1232 = pneg %p173
      $region42: #{attn_block.4} parent=35 // pred_check_branch
        %1234 = sbr.rel (%p1232) target = $region44
      $region43: #{attn_block.4} parent=35 // pred_region
        %s1235 = smul.u32 32, %s22
      $region44: #{attn_block.4} parent=35 // pred_fallthru
        _
    $region36: #{attn_block.4} parent=5 // pred_fallthru
      _
    %p1236 = scmp.le.s32.totalorder 2, %s12
    // Predicated region
    $region45: #{attn_block.4} parent=5 // pred_check
      %p1237 = pneg %p1236
    $region46: #{attn_block.4} parent=5 // pred_check_branch
      %1239 = sbr.rel (%p1237) target = $region48
    $region47: #{attn_block.4} parent=5 // pred_region
      %s1240 = ssub.s32 %s12, 2
      // Predicated region
      $region49: #{attn_block.4} parent=47 // pred_check
        %p1241 = pneg %p151
      $region50: #{attn_block.4} parent=47 // pred_check_branch
        %1243 = sbr.rel (%p1241) target = $region52
      $region51: #{attn_block.4} parent=47 // pred_region
        %s1244 = smul.u32 32, %s24
        %p1245 = scmp.lt.s32.totalorder %s23, 1
        %s1246 = scalar_select %p1245, %s23, 1
        %p1247 = scmp.lt.s32.totalorder %s1244, 31
        %s1248 = scalar_select %p1247, %s1244, 31
        %s1249 = smul.addr %s1246, 32
        %s1250 = sadd.s32 %s1248, %s1249
        %s1251 = smul.addr %s1250, 4
        %s1252 = scalar_lea.vmem %s4, %s1251
      $region52: #{attn_block.4} parent=47 // pred_fallthru
        _
      // Predicated region
      $region53: #{attn_block.4} parent=47 // pred_check
        %p1253 = pneg %p179
      $region54: #{attn_block.4} parent=47 // pred_check_branch
        %1255 = sbr.rel (%p1253) target = $region56
      $region55: #{attn_block.4} parent=47 // pred_region
        %s1256 = smul.u32 32, %s24
        %p1257 = scmp.lt.s32.totalorder %s23, 1
        %s1258 = scalar_select %p1257, %s23, 1
        %p1259 = scmp.lt.s32.totalorder %s1256, 31
        %s1260 = scalar_select %p1259, %s1256, 31
        %s1261 = smul.addr %s1260, 2
        %s1262 = smul.addr %s1258, 64
        %s1263 = sadd.s32 %s1261, %s1262
        %s1264 = smul.addr %s1263, 4
        %s1265 = scalar_lea.vmem %s5, %s1264
      $region56: #{attn_block.4} parent=47 // pred_fallthru
        _
    $region48: #{attn_block.4} parent=5 // pred_fallthru
      _
  $region6: #{attn_block.4} parent=0 // loop_footer
    %s16 = sadd.s32 1, %s12
  $region7: #{attn_block.4} parent=0 // loop_footer_branch
    %11 = sbr.rel target = $region3
  $region8: #{attn_block.4} parent=0 // loop_exit
    _

// kernel: attn_block.5
$region0: #{attn_block.5}
  #allocation0 [shape = 'u32[]', space=smem, size = 0x4, offset = 0x4, fixed_abs, tag = 'smem constant byte address 0x4 - core index']
  #allocation1 [shape = 'u32[72,128]{1,0:T(1,128)}', space=vmem, size = 0x9000, scoped, tag = 'internal scratch']
  #allocation2 [shape = 'f32[256,1]{1,0:T(8,128)}', space=vmem, size = 0x20000, scoped, tag = 'scratch operand']
  #allocation3 [shape = 'f32[256,1]{1,0:T(8,128)}', space=vmem, size = 0x20000, scoped, tag = 'scratch operand']
  #allocation4 [shape = 'f32[256,128]{1,0:T(8,128)}', space=vmem, size = 0x20000, scoped, tag = 'scratch operand']
  %s0 = inlined_call_operand.vmem [shape: bf16[2,256,128], index: 0, kind: input, shape index: {}]
  %s1 = inlined_call_operand.vmem [shape: bf16[2,256,256], index: 1, kind: input, shape index: {}]
  %s2 = inlined_call_operand.vmem [shape: f32[2,128,256], index: 2, kind: input, shape index: {}]
  %s3 = inlined_call_operand.vmem [shape: bf16[128,128], index: 3, kind: input, shape index: {}]
  %s4 = inlined_call_operand.vmem [shape: f32[128,1], index: 4, kind: input, shape index: {}]
  %s5 = inlined_call_operand.vmem [shape: f32[2,128,256], index: 5, kind: output, shape index: {}]
  %s6 = sld [smem:[#allocation0]]
  $region61: #{attn_block.5} parent=0
    _
  %s8 = ssub.s32 1, %s6
  %s9 = scalar_select 0, %s8, %s6
  loop: start=0, step=1, limit=4
  $region2: #{attn_block.5} parent=0 // loop_pre_header
    _
  $region3: #{attn_block.5} parent=0 // loop_header
    %s11 = sphi 0, %s15
    %p12 = scmp.ge.s32.totalorder %s11, 4
    %s18 = sphi 0, %s37
    %s19 = sphi 0, %s33
    %s20 = sphi 0, %s29
    %s21 = sphi 0, %s18
    %s22 = sphi 0, %s19
    %s23 = sphi 0, %s20
    %s24 = sphi 0, %s21
    %s25 = sphi 0, %s22
    %s26 = sphi 0, %s23
    %s42 = sphi 0, %s44
    %s45 = sphi 0, %s42
    %s46 = sphi 0, %s45
    %s62 = sphi 0, %s46
    %s70 = sphi 0, %s72
    %s73 = sphi 0, %s70
    %s74 = sphi 0, %s73
    %s90 = sphi 0, %s74
    %s98 = sphi 0, %s100
    %s101 = sphi 0, %s98
    %s102 = sphi 0, %s101
    %s118 = sphi 0, %s102
    %s122 = sphi 0, %s122
    %s124 = sphi 0, %s122
    %s125 = sphi 0, %s124
    %s139 = sphi 0, %s125
    %s143 = sphi 0, %s143
    %s145 = sphi 0, %s143
    %s146 = sphi 0, %s145
    %s160 = sphi 0, %s146
    %s168 = sphi 0, %s170
    %s171 = sphi 0, %s168
    %s172 = sphi 0, %s171
    %s188 = sphi 0, %s172
  $region4: #{attn_block.5} parent=0 // loop_header_branch
    %14 = sbr.rel (%p12) target = $region8
  $region5: #{attn_block.5} parent=0 // loop_body
    %s16 = ssub.s32 %s11, 1
    %s17 = ssub.s32 %s11, 2
    %s27 = sadd.s32 1, %s20
    %p28 = scmp.ge.s32.totalorder %s27, 1
    %s29 = scalar_select %p28, 0, %s27
    %s30 = sadd.s32 1, %s19
    %s31 = scalar_select %p28, %s30, %s19
    %p32 = scmp.ge.s32.totalorder %s31, 1
    %s33 = scalar_select %p32, 0, %s31
    %s34 = sadd.s32 1, %s18
    %s35 = scalar_select %p32, %s34, %s18
    %p36 = scmp.ge.s32.totalorder %s35, 2
    %s37 = scalar_select %p36, 0, %s35
    %s38 = ssub.s32 %s18, %s37
    %s39 = ssub.s32 %s19, %s33
    %s40 = sor.u32 %s38, %s39
    %p41 = scmp.eq.s32.totalorder %s40, 0
    %s43 = sadd.s32 %s42, 1
    %s44 = scalar_select %p41, %s42, %s43
    %p47 = pneg %p41
    %p48 = scmp.eq.s32.totalorder %s11, 1
    %p49 = por %p47, %p48
    %p50 = scmp.ne.s32.totalorder %s42, %s45
    %p51 = scmp.eq.s32.totalorder %s11, 0
    %p52 = por %p50, %p51
    %p53 = scmp.ne.s32.totalorder %s42, %s45
    %p54 = scmp.eq.s32.totalorder %s16, 1
    %p55 = por %p53, %p54
    %p56 = scmp.ne.s32.totalorder %s45, %s46
    %p57 = scmp.eq.s32.totalorder %s16, 0
    %p58 = por %p56, %p57
    %p59 = scmp.ne.s32.totalorder %s45, %s46
    %p60 = scmp.eq.s32.totalorder %s17, 1
    %p61 = por %p59, %p60
    %p63 = scmp.ne.s32.totalorder %s46, %s62
    %p64 = scmp.eq.s32.totalorder %s17, 0
    %p65 = por %p63, %p64
    %s66 = ssub.s32 %s18, %s37
    %s67 = ssub.s32 %s20, %s29
    %s68 = sor.u32 %s66, %s67
    %p69 = scmp.eq.s32.totalorder %s68, 0
    %s71 = sadd.s32 %s70, 1
    %s72 = scalar_select %p69, %s70, %s71
    %p75 = pneg %p69
    %p76 = scmp.eq.s32.totalorder %s11, 1
    %p77 = por %p75, %p76
    %p78 = scmp.ne.s32.totalorder %s70, %s73
    %p79 = scmp.eq.s32.totalorder %s11, 0
    %p80 = por %p78, %p79
    %p81 = scmp.ne.s32.totalorder %s70, %s73
    %p82 = scmp.eq.s32.totalorder %s16, 1
    %p83 = por %p81, %p82
    %p84 = scmp.ne.s32.totalorder %s73, %s74
    %p85 = scmp.eq.s32.totalorder %s16, 0
    %p86 = por %p84, %p85
    %p87 = scmp.ne.s32.totalorder %s73, %s74
    %p88 = scmp.eq.s32.totalorder %s17, 1
    %p89 = por %p87, %p88
    %p91 = scmp.ne.s32.totalorder %s74, %s90
    %p92 = scmp.eq.s32.totalorder %s17, 0
    %p93 = por %p91, %p92
    %s94 = ssub.s32 %s18, %s37
    %s95 = ssub.s32 %s19, %s33
    %s96 = sor.u32 %s94, %s95
    %p97 = scmp.eq.s32.totalorder %s96, 0
    %s99 = sadd.s32 %s98, 1
    %s100 = scalar_select %p97, %s98, %s99
    %p103 = pneg %p97
    %p104 = scmp.eq.s32.totalorder %s11, 1
    %p105 = por %p103, %p104
    %p106 = scmp.ne.s32.totalorder %s98, %s101
    %p107 = scmp.eq.s32.totalorder %s11, 0
    %p108 = por %p106, %p107
    %p109 = scmp.ne.s32.totalorder %s98, %s101
    %p110 = scmp.eq.s32.totalorder %s16, 1
    %p111 = por %p109, %p110
    %p112 = scmp.ne.s32.totalorder %s101, %s102
    %p113 = scmp.eq.s32.totalorder %s16, 0
    %p114 = por %p112, %p113
    %p115 = scmp.ne.s32.totalorder %s101, %s102
    %p116 = scmp.eq.s32.totalorder %s17, 1
    %p117 = por %p115, %p116
    %p119 = scmp.ne.s32.totalorder %s102, %s118
    %p120 = scmp.eq.s32.totalorder %s17, 0
    %p121 = por %p119, %p120
    %s123 = sadd.s32 %s122, 1
    %p126 = scmp.eq.s32.totalorder %s11, 1
    %p127 = scmp.ne.s32.totalorder %s122, %s124
    %p128 = scmp.eq.s32.totalorder %s11, 0
    %p129 = por %p127, %p128
    %p130 = scmp.ne.s32.totalorder %s122, %s124
    %p131 = scmp.eq.s32.totalorder %s16, 1
    %p132 = por %p130, %p131
    %p133 = scmp.ne.s32.totalorder %s124, %s125
    %p134 = scmp.eq.s32.totalorder %s16, 0
    %p135 = por %p133, %p134
    %p136 = scmp.ne.s32.totalorder %s124, %s125
    %p137 = scmp.eq.s32.totalorder %s17, 1
    %p138 = por %p136, %p137
    %p140 = scmp.ne.s32.totalorder %s125, %s139
    %p141 = scmp.eq.s32.totalorder %s17, 0
    %p142 = por %p140, %p141
    %s144 = sadd.s32 %s143, 1
    %p147 = scmp.eq.s32.totalorder %s11, 1
    %p148 = scmp.ne.s32.totalorder %s143, %s145
    %p149 = scmp.eq.s32.totalorder %s11, 0
    %p150 = por %p148, %p149
    %p151 = scmp.ne.s32.totalorder %s143, %s145
    %p152 = scmp.eq.s32.totalorder %s16, 1
    %p153 = por %p151, %p152
    %p154 = scmp.ne.s32.totalorder %s145, %s146
    %p155 = scmp.eq.s32.totalorder %s16, 0
    %p156 = por %p154, %p155
    %p157 = scmp.ne.s32.totalorder %s145, %s146
    %p158 = scmp.eq.s32.totalorder %s17, 1
    %p159 = por %p157, %p158
    %p161 = scmp.ne.s32.totalorder %s146, %s160
    %p162 = scmp.eq.s32.totalorder %s17, 0
    %p163 = por %p161, %p162
    %s164 = ssub.s32 %s18, %s37
    %s165 = ssub.s32 %s19, %s33
    %s166 = sor.u32 %s164, %s165
    %p167 = scmp.eq.s32.totalorder %s166, 0
    %s169 = sadd.s32 %s168, 1
    %s170 = scalar_select %p167, %s168, %s169
    %p173 = pneg %p167
    %p174 = scmp.eq.s32.totalorder %s11, 1
    %p175 = por %p173, %p174
    %p176 = scmp.ne.s32.totalorder %s168, %s171
    %p177 = scmp.eq.s32.totalorder %s11, 0
    %p178 = por %p176, %p177
    %p179 = scmp.ne.s32.totalorder %s168, %s171
    %p180 = scmp.eq.s32.totalorder %s16, 1
    %p181 = por %p179, %p180
    %p182 = scmp.ne.s32.totalorder %s171, %s172
    %p183 = scmp.eq.s32.totalorder %s16, 0
    %p184 = por %p182, %p183
    %p185 = scmp.ne.s32.totalorder %s171, %s172
    %p186 = scmp.eq.s32.totalorder %s17, 1
    %p187 = por %p185, %p186
    %p189 = scmp.ne.s32.totalorder %s172, %s188
    %p190 = scmp.eq.s32.totalorder %s17, 0
    %p191 = por %p189, %p190
    %p192 = scmp.le.s32.totalorder 1, %s11
    %p193 = scmp.lt.s32.totalorder %s11, 3
    %p194 = pnand %p192, %p193
    %p195 = pneg %p194
    // Predicated region
    $region9: #{attn_block.5} parent=5 // pred_check
      _
    $region10: #{attn_block.5} parent=5 // pred_check_branch
      %197 = sbr.rel (%p194) target = $region12
    $region11: #{attn_block.5} parent=5 // pred_region
      %s198 = ssub.s32 %s11, 1
      // Predicated region
      $region13: #{attn_block.5} parent=11 // pred_check
        %p199 = pneg %p135
      $region14: #{attn_block.5} parent=11 // pred_check_branch
        %201 = sbr.rel (%p199) target = $region16
      $region15: #{attn_block.5} parent=11 // pred_region
        _
      $region16: #{attn_block.5} parent=11 // pred_fallthru
        _
      // Predicated region
      $region17: #{attn_block.5} parent=11 // pred_check
        %p202 = pneg %p156
      $region18: #{attn_block.5} parent=11 // pred_check_branch
        %204 = sbr.rel (%p202) target = $region20
      $region19: #{attn_block.5} parent=11 // pred_region
        _
      $region20: #{attn_block.5} parent=11 // pred_fallthru
        _
    $region12: #{attn_block.5} parent=5 // pred_fallthru
      _
    %p205 = scmp.lt.s32.totalorder %s11, 2
    // Predicated region
    $region21: #{attn_block.5} parent=5 // pred_check
      %p206 = pneg %p205
    $region22: #{attn_block.5} parent=5 // pred_check_branch
      %208 = sbr.rel (%p206) target = $region24
    $region23: #{attn_block.5} parent=5 // pred_region
      // Predicated region
      $region25: #{attn_block.5} parent=23 // pred_check
        %p209 = pneg %p52
      $region26: #{attn_block.5} parent=23 // pred_check_branch
        %211 = sbr.rel (%p209) target = $region28
      $region27: #{attn_block.5} parent=23 // pred_region
        %s212 = smul.u32 32, %s19
        %p213 = scmp.lt.s32.totalorder %s18, 1
        %s214 = scalar_select %p213, %s18, 1
        %p215 = scmp.lt.s32.totalorder %s212, 31
        %s216 = scalar_select %p215, %s212, 31
        %s217 = smul.addr %s214, 32
        %s218 = sadd.s32 %s216, %s217
        %s219 = smul.addr %s218, 4
        %s220 = scalar_lea.vmem %s0, %s219
        %s221 = smul.u32 32, %s19
      $region28: #{attn_block.5} parent=23 // pred_fallthru
        _
      // Predicated region
      $region29: #{attn_block.5} parent=23 // pred_check
        %p222 = pneg %p80
      $region30: #{attn_block.5} parent=23 // pred_check_branch
        %224 = sbr.rel (%p222) target = $region32
      $region31: #{attn_block.5} parent=23 // pred_region
        %s225 = smul.u32 32, %s20
        %p226 = scmp.lt.s32.totalorder %s18, 1
        %s227 = scalar_select %p226, %s18, 1
        %p228 = scmp.lt.s32.totalorder %s225, 31
        %s229 = scalar_select %p228, %s225, 31
        %s230 = smul.addr %s229, 2
        %s231 = smul.addr %s227, 64
        %s232 = sadd.s32 %s230, %s231
        %s233 = smul.addr %s232, 4
        %s234 = scalar_lea.vmem %s1, %s233
        %s235 = smul.u32 32, %s20
      $region32: #{attn_block.5} parent=23 // pred_fallthru
        _
      // Predicated region
      $region33: #{attn_block.5} parent=23 // pred_check
        %p236 = pneg %p108
      $region34: #{attn_block.5} parent=23 // pred_check_branch
        %238 = sbr.rel (%p236) target = $region36
      $region35: #{attn_block.5} parent=23 // pred_region
        %s239 = smul.u32 2, %s19
        %p240 = scmp.lt.s32.totalorder %s18, 1
        %s241 = scalar_select %p240, %s18, 1
        %p242 = scmp.lt.s32.totalorder %s239, 1
        %s243 = scalar_select %p242, %s239, 1
        %s244 = smul.addr %s241, 32
        %s245 = sadd.s32 %s243, %s244
        %s246 = smul.addr %s245, 8
        %s247 = scalar_lea.vmem %s2, %s246
        %s248 = smul.u32 2, %s19
      $region36: #{attn_block.5} parent=23 // pred_fallthru
        _
    $region24: #{attn_block.5} parent=5 // pred_fallthru
      _
    %p249 = scmp.le.s32.totalorder 1, %s11
    %p250 = scmp.lt.s32.totalorder %s11, 3
    %p251 = pnand %p249, %p250
    %p252 = pneg %p251
    // Predicated region
    $region37: #{attn_block.5} parent=5 // pred_check
      _
    $region38: #{attn_block.5} parent=5 // pred_check_branch
      %254 = sbr.rel (%p251) target = $region40
    $region39: #{attn_block.5} parent=5 // pred_region
      %s255 = ssub.s32 %s11, 1
      %s256 = smul.u32 32, %s22
      %p257 = scmp.lt.s32.totalorder %s21, 1
      %s258 = scalar_select %p257, %s21, 1
      %p259 = scmp.lt.s32.totalorder %s256, 31
      %s260 = scalar_select %p259, %s256, 31
      %s261 = smul.addr %s258, 32
      %s262 = sadd.s32 %s260, %s261
      %s263 = smul.addr %s262, 4
      %s264 = scalar_lea.vmem %s0, %s263
      %p265 = pneg %p58
      %p266 = pneg %p55
      %s267 = smul.u32 32, %s23
      %p268 = scmp.lt.s32.totalorder %s21, 1
      %s269 = scalar_select %p268, %s21, 1
      %p270 = scmp.lt.s32.totalorder %s267, 31
      %s271 = scalar_select %p270, %s267, 31
      %s272 = smul.addr %s271, 2
      %s273 = smul.addr %s269, 64
      %s274 = sadd.s32 %s272, %s273
      %s275 = smul.addr %s274, 4
      %s276 = scalar_lea.vmem %s1, %s275
      %p277 = pneg %p86
      %p278 = pneg %p83
      %s279 = smul.u32 2, %s22
      %p280 = scmp.lt.s32.totalorder %s21, 1
      %s281 = scalar_select %p280, %s21, 1
      %p282 = scmp.lt.s32.totalorder %s279, 1
      %s283 = scalar_select %p282, %s279, 1
      %s284 = smul.addr %s281, 32
      %s285 = sadd.s32 %s283, %s284
      %s286 = smul.addr %s285, 8
      %s287 = scalar_lea.vmem %s2, %s286
      %p288 = pneg %p114
      %p289 = pneg %p111
      %p290 = pneg %p135
      %p291 = pneg %p132
      %p292 = pneg %p156
      %p293 = pneg %p153
      %p294 = pneg %p184
      %p295 = pneg %p181
      %s296 = smul.u32 2, %s22
      %p297 = scmp.lt.s32.totalorder %s21, 1
      %s298 = scalar_select %p297, %s21, 1
      %p299 = scmp.lt.s32.totalorder %s296, 1
      %s300 = scalar_select %p299, %s296, 1
      %s301 = smul.addr %s298, 32
      %s302 = sadd.s32 %s300, %s301
      %s303 = smul.addr %s302, 8
      %s304 = scalar_lea.vmem %s5, %s303
      %s305 = smul.u32 32, %s22
      %p306 = scmp.lt.s32.totalorder %s21, 1
      %s307 = scalar_select %p306, %s21, 1
      %p308 = scmp.lt.s32.totalorder %s305, 31
      %s309 = scalar_select %p308, %s305, 31
      %s310 = smul.addr %s307, 32
      %s311 = sadd.s32 %s309, %s310
      %s312 = smul.addr %s311, 4
      %s313 = scalar_lea.vmem %s0, %s312
      %s314 = smul.u32 32, %s22
      %s315 = smul.u32 32, %s23
      %p316 = scmp.lt.s32.totalorder %s21, 1
      %s317 = scalar_select %p316, %s21, 1
      %p318 = scmp.lt.s32.totalorder %s315, 31
      %s319 = scalar_select %p318, %s315, 31
      %s320 = smul.addr %s319, 2
      %s321 = smul.addr %s317, 64
      %s322 = sadd.s32 %s320, %s321
      %s323 = smul.addr %s322, 4
      %s324 = scalar_lea.vmem %s1, %s323
      %s325 = smul.u32 32, %s23
      %s326 = smul.u32 2, %s22
      %p327 = scmp.lt.s32.totalorder %s21, 1
      %s328 = scalar_select %p327, %s21, 1
      %p329 = scmp.lt.s32.totalorder %s326, 1
      %s330 = scalar_select %p329, %s326, 1
      %s331 = smul.addr %s328, 32
      %s332 = sadd.s32 %s330, %s331
      %s333 = smul.addr %s332, 8
      %s334 = scalar_lea.vmem %s2, %s333
      %s335 = smul.u32 2, %s22
      %s336 = smul.u32 2, %s22
      %p337 = scmp.lt.s32.totalorder %s21, 1
      %s338 = scalar_select %p337, %s21, 1
      %p339 = scmp.lt.s32.totalorder %s336, 1
      %s340 = scalar_select %p339, %s336, 1
      %s341 = smul.addr %s338, 32
      %s342 = sadd.s32 %s340, %s341
      %s343 = smul.addr %s342, 8
      %s344 = scalar_lea.vmem %s5, %s343
      %s345 = smul.u32 2, %s22
      %p346 = scmp.eq.s32.totalorder %s23, 0
      // Predicated region
      $region41: #{attn_block.5} parent=39 // pred_check
        %p347 = pneg %p346
      $region42: #{attn_block.5} parent=39 // pred_check_branch
        %349 = sbr.rel (%p347) target = $region44
      $region43: #{attn_block.5} parent=39 // pred_region
        %vm350 = vcmask 7168
        %351 = vst.msk [vmem:[#allocation2] sm:$0xff] %vm350, -inf
        %352 = vst.msk [vmem:[#allocation2 + $0x8] sm:$0xff] %vm350, -inf
        %353 = vst.msk [vmem:[#allocation2 + $0x10] sm:$0xff] %vm350, -inf
        %354 = vst.msk [vmem:[#allocation2 + $0x18] sm:$0xff] %vm350, -inf
        %355 = vst.msk [vmem:[#allocation2 + $0x20] sm:$0xff] %vm350, -inf
        %356 = vst.msk [vmem:[#allocation2 + $0x28] sm:$0xff] %vm350, -inf
        %357 = vst.msk [vmem:[#allocation2 + $0x30] sm:$0xff] %vm350, -inf
        %358 = vst.msk [vmem:[#allocation2 + $0x38] sm:$0xff] %vm350, -inf
        %359 = vst.msk [vmem:[#allocation2 + $0x40] sm:$0xff] %vm350, -inf
        %360 = vst.msk [vmem:[#allocation2 + $0x48] sm:$0xff] %vm350, -inf
        %361 = vst.msk [vmem:[#allocation2 + $0x50] sm:$0xff] %vm350, -inf
        %362 = vst.msk [vmem:[#allocation2 + $0x58] sm:$0xff] %vm350, -inf
        %363 = vst.msk [vmem:[#allocation2 + $0x60] sm:$0xff] %vm350, -inf
        %364 = vst.msk [vmem:[#allocation2 + $0x68] sm:$0xff] %vm350, -inf
        %365 = vst.msk [vmem:[#allocation2 + $0x70] sm:$0xff] %vm350, -inf
        %366 = vst.msk [vmem:[#allocation2 + $0x78] sm:$0xff] %vm350, -inf
        %367 = vst.msk [vmem:[#allocation2 + $0x80] sm:$0xff] %vm350, -inf
        %368 = vst.msk [vmem:[#allocation2 + $0x88] sm:$0xff] %vm350, -inf
        %369 = vst.msk [vmem:[#allocation2 + $0x90] sm:$0xff] %vm350, -inf
        %370 = vst.msk [vmem:[#allocation2 + $0x98] sm:$0xff] %vm350, -inf
        %371 = vst.msk [vmem:[#allocation2 + $0xa0] sm:$0xff] %vm350, -inf
        %372 = vst.msk [vmem:[#allocation2 + $0xa8] sm:$0xff] %vm350, -inf
        %373 = vst.msk [vmem:[#allocation2 + $0xb0] sm:$0xff] %vm350, -inf
        %374 = vst.msk [vmem:[#allocation2 + $0xb8] sm:$0xff] %vm350, -inf
        %375 = vst.msk [vmem:[#allocation2 + $0xc0] sm:$0xff] %vm350, -inf
        %376 = vst.msk [vmem:[#allocation2 + $0xc8] sm:$0xff] %vm350, -inf
        %377 = vst.msk [vmem:[#allocation2 + $0xd0] sm:$0xff] %vm350, -inf
        %378 = vst.msk [vmem:[#allocation2 + $0xd8] sm:$0xff] %vm350, -inf
        %379 = vst.msk [vmem:[#allocation2 + $0xe0] sm:$0xff] %vm350, -inf
        %380 = vst.msk [vmem:[#allocation2 + $0xe8] sm:$0xff] %vm350, -inf
        %381 = vst.msk [vmem:[#allocation2 + $0xf0] sm:$0xff] %vm350, -inf
        %382 = vst.msk [vmem:[#allocation2 + $0xf8] sm:$0xff] %vm350, -inf
        %383 = vst.msk [vmem:[#allocation3] sm:$0xff] %vm350, 0.0
        %384 = vst.msk [vmem:[#allocation3 + $0x8] sm:$0xff] %vm350, 0.0
        %385 = vst.msk [vmem:[#allocation3 + $0x10] sm:$0xff] %vm350, 0.0
        %386 = vst.msk [vmem:[#allocation3 + $0x18] sm:$0xff] %vm350, 0.0
        %387 = vst.msk [vmem:[#allocation3 + $0x20] sm:$0xff] %vm350, 0.0
        %388 = vst.msk [vmem:[#allocation3 + $0x28] sm:$0xff] %vm350, 0.0
        %389 = vst.msk [vmem:[#allocation3 + $0x30] sm:$0xff] %vm350, 0.0
        %390 = vst.msk [vmem:[#allocation3 + $0x38] sm:$0xff] %vm350, 0.0
        %391 = vst.msk [vmem:[#allocation3 + $0x40] sm:$0xff] %vm350, 0.0
        %392 = vst.msk [vmem:[#allocation3 + $0x48] sm:$0xff] %vm350, 0.0
        %393 = vst.msk [vmem:[#allocation3 + $0x50] sm:$0xff] %vm350, 0.0
        %394 = vst.msk [vmem:[#allocation3 + $0x58] sm:$0xff] %vm350, 0.0
        %395 = vst.msk [vmem:[#allocation3 + $0x60] sm:$0xff] %vm350, 0.0
        %396 = vst.msk [vmem:[#allocation3 + $0x68] sm:$0xff] %vm350, 0.0
        %397 = vst.msk [vmem:[#allocation3 + $0x70] sm:$0xff] %vm350, 0.0
        %398 = vst.msk [vmem:[#allocation3 + $0x78] sm:$0xff] %vm350, 0.0
        %399 = vst.msk [vmem:[#allocation3 + $0x80] sm:$0xff] %vm350, 0.0
        %400 = vst.msk [vmem:[#allocation3 + $0x88] sm:$0xff] %vm350, 0.0
        %401 = vst.msk [vmem:[#allocation3 + $0x90] sm:$0xff] %vm350, 0.0
        %402 = vst.msk [vmem:[#allocation3 + $0x98] sm:$0xff] %vm350, 0.0
        %403 = vst.msk [vmem:[#allocation3 + $0xa0] sm:$0xff] %vm350, 0.0
        %404 = vst.msk [vmem:[#allocation3 + $0xa8] sm:$0xff] %vm350, 0.0
        %405 = vst.msk [vmem:[#allocation3 + $0xb0] sm:$0xff] %vm350, 0.0
        %406 = vst.msk [vmem:[#allocation3 + $0xb8] sm:$0xff] %vm350, 0.0
        %407 = vst.msk [vmem:[#allocation3 + $0xc0] sm:$0xff] %vm350, 0.0
        %408 = vst.msk [vmem:[#allocation3 + $0xc8] sm:$0xff] %vm350, 0.0
        %409 = vst.msk [vmem:[#allocation3 + $0xd0] sm:$0xff] %vm350, 0.0
        %410 = vst.msk [vmem:[#allocation3 + $0xd8] sm:$0xff] %vm350, 0.0
        %411 = vst.msk [vmem:[#allocation3 + $0xe0] sm:$0xff] %vm350, 0.0
        %412 = vst.msk [vmem:[#allocation3 + $0xe8] sm:$0xff] %vm350, 0.0
        %413 = vst.msk [vmem:[#allocation3 + $0xf0] sm:$0xff] %vm350, 0.0
        %414 = vst.msk [vmem:[#allocation3 + $0xf8] sm:$0xff] %vm350, 0.0
        %415 = vst [vmem:[#allocation4] sm:$0xff] 0.0
        %416 = vst [vmem:[#allocation4 + $0x8] sm:$0xff] 0.0
        %417 = vst [vmem:[#allocation4 + $0x10] sm:$0xff] 0.0
        %418 = vst [vmem:[#allocation4 + $0x18] sm:$0xff] 0.0
        %419 = vst [vmem:[#allocation4 + $0x20] sm:$0xff] 0.0
        %420 = vst [vmem:[#allocation4 + $0x28] sm:$0xff] 0.0
        %421 = vst [vmem:[#allocation4 + $0x30] sm:$0xff] 0.0
        %422 = vst [vmem:[#allocation4 + $0x38] sm:$0xff] 0.0
        %423 = vst [vmem:[#allocation4 + $0x40] sm:$0xff] 0.0
        %424 = vst [vmem:[#allocation4 + $0x48] sm:$0xff] 0.0
        %425 = vst [vmem:[#allocation4 + $0x50] sm:$0xff] 0.0
        %426 = vst [vmem:[#allocation4 + $0x58] sm:$0xff] 0.0
        %427 = vst [vmem:[#allocation4 + $0x60] sm:$0xff] 0.0
        %428 = vst [vmem:[#allocation4 + $0x68] sm:$0xff] 0.0
        %429 = vst [vmem:[#allocation4 + $0x70] sm:$0xff] 0.0
        %430 = vst [vmem:[#allocation4 + $0x78] sm:$0xff] 0.0
        %431 = vst [vmem:[#allocation4 + $0x80] sm:$0xff] 0.0
        %432 = vst [vmem:[#allocation4 + $0x88] sm:$0xff] 0.0
        %433 = vst [vmem:[#allocation4 + $0x90] sm:$0xff] 0.0
        %434 = vst [vmem:[#allocation4 + $0x98] sm:$0xff] 0.0
        %435 = vst [vmem:[#allocation4 + $0xa0] sm:$0xff] 0.0
        %436 = vst [vmem:[#allocation4 + $0xa8] sm:$0xff] 0.0
        %437 = vst [vmem:[#allocation4 + $0xb0] sm:$0xff] 0.0
        %438 = vst [vmem:[#allocation4 + $0xb8] sm:$0xff] 0.0
        %439 = vst [vmem:[#allocation4 + $0xc0] sm:$0xff] 0.0
        %440 = vst [vmem:[#allocation4 + $0xc8] sm:$0xff] 0.0
        %441 = vst [vmem:[#allocation4 + $0xd0] sm:$0xff] 0.0
        %442 = vst [vmem:[#allocation4 + $0xd8] sm:$0xff] 0.0
        %443 = vst [vmem:[#allocation4 + $0xe0] sm:$0xff] 0.0
        %444 = vst [vmem:[#allocation4 + $0xe8] sm:$0xff] 0.0
        %445 = vst [vmem:[#allocation4 + $0xf0] sm:$0xff] 0.0
        %446 = vst [vmem:[#allocation4 + $0xf8] sm:$0xff] 0.0
      $region44: #{attn_block.5} parent=39 // pred_fallthru
        _
      %v447 = vld [vmem:[%s313] sm:$0xf]
      %v448 = vld [vmem:[%s313 + $0x4] sm:$0xf]
      %v449 = vld [vmem:[%s313 + $0x8] sm:$0xf]
      %v450 = vld [vmem:[%s313 + $0xc] sm:$0xf]
      %v451 = vld [vmem:[%s313 + $0x10] sm:$0xf]
      %v452 = vld [vmem:[%s313 + $0x14] sm:$0xf]
      %v453 = vld [vmem:[%s313 + $0x18] sm:$0xf]
      %v454 = vld [vmem:[%s313 + $0x1c] sm:$0xf]
      %v455 = vld [vmem:[%s313 + $0x20] sm:$0xf]
      %v456 = vld [vmem:[%s313 + $0x24] sm:$0xf]
      %v457 = vld [vmem:[%s313 + $0x28] sm:$0xf]
      %v458 = vld [vmem:[%s313 + $0x2c] sm:$0xf]
      %v459 = vld [vmem:[%s313 + $0x30] sm:$0xf]
      %v460 = vld [vmem:[%s313 + $0x34] sm:$0xf]
      %v461 = vld [vmem:[%s313 + $0x38] sm:$0xf]
      %v462 = vld [vmem:[%s313 + $0x3c] sm:$0xf]
      %v463 = vld [vmem:[%s313 + $0x40] sm:$0xf]
      %v464 = vld [vmem:[%s313 + $0x44] sm:$0xf]
      %v465 = vld [vmem:[%s313 + $0x48] sm:$0xf]
      %v466 = vld [vmem:[%s313 + $0x4c] sm:$0xf]
      %v467 = vld [vmem:[%s313 + $0x50] sm:$0xf]
      %v468 = vld [vmem:[%s313 + $0x54] sm:$0xf]
      %v469 = vld [vmem:[%s313 + $0x58] sm:$0xf]
      %v470 = vld [vmem:[%s313 + $0x5c] sm:$0xf]
      %v471 = vld [vmem:[%s313 + $0x60] sm:$0xf]
      %v472 = vld [vmem:[%s313 + $0x64] sm:$0xf]
      %v473 = vld [vmem:[%s313 + $0x68] sm:$0xf]
      %v474 = vld [vmem:[%s313 + $0x6c] sm:$0xf]
      %v475 = vld [vmem:[%s313 + $0x70] sm:$0xf]
      %v476 = vld [vmem:[%s313 + $0x74] sm:$0xf]
      %v477 = vld [vmem:[%s313 + $0x78] sm:$0xf]
      %v478 = vld [vmem:[%s313 + $0x7c] sm:$0xf]
      %v479 = vld [vmem:[%s324] sm:$0xf]
      %v480 = vld [vmem:[%s324 + $0x8] sm:$0xf]
      %v481 = vld [vmem:[%s324 + $0x10] sm:$0xf]
      %v482 = vld [vmem:[%s324 + $0x18] sm:$0xf]
      %v483 = vld [vmem:[%s324 + $0x20] sm:$0xf]
      %v484 = vld [vmem:[%s324 + $0x28] sm:$0xf]
      %v485 = vld [vmem:[%s324 + $0x30] sm:$0xf]
      %v486 = vld [vmem:[%s324 + $0x38] sm:$0xf]
      %v487 = vld [vmem:[%s324 + $0x40] sm:$0xf]
      %v488 = vld [vmem:[%s324 + $0x48] sm:$0xf]
      %v489 = vld [vmem:[%s324 + $0x50] sm:$0xf]
      %v490 = vld [vmem:[%s324 + $0x58] sm:$0xf]
      %v491 = vld [vmem:[%s324 + $0x60] sm:$0xf]
      %v492 = vld [vmem:[%s324 + $0x68] sm:$0xf]
      %v493 = vld [vmem:[%s324 + $0x70] sm:$0xf]
      %v494 = vld [vmem:[%s324 + $0x78] sm:$0xf]
      %v495 = vld [vmem:[%s324 + $0x80] sm:$0xf]
      %v496 = vld [vmem:[%s324 + $0x88] sm:$0xf]
      %v497 = vld [vmem:[%s324 + $0x90] sm:$0xf]
      %v498 = vld [vmem:[%s324 + $0x98] sm:$0xf]
      %v499 = vld [vmem:[%s324 + $0xa0] sm:$0xf]
      %v500 = vld [vmem:[%s324 + $0xa8] sm:$0xf]
      %v501 = vld [vmem:[%s324 + $0xb0] sm:$0xf]
      %v502 = vld [vmem:[%s324 + $0xb8] sm:$0xf]
      %v503 = vld [vmem:[%s324 + $0xc0] sm:$0xf]
      %v504 = vld [vmem:[%s324 + $0xc8] sm:$0xf]
      %v505 = vld [vmem:[%s324 + $0xd0] sm:$0xf]
      %v506 = vld [vmem:[%s324 + $0xd8] sm:$0xf]
      %v507 = vld [vmem:[%s324 + $0xe0] sm:$0xf]
      %v508 = vld [vmem:[%s324 + $0xe8] sm:$0xf]
      %v509 = vld [vmem:[%s324 + $0xf0] sm:$0xf]
      %v510 = vld [vmem:[%s324 + $0xf8] sm:$0xf]
      %v511 = vld [vmem:[%s324 + $0x4] sm:$0xf]
      %v512 = vld [vmem:[%s324 + $0xc] sm:$0xf]
      %v513 = vld [vmem:[%s324 + $0x14] sm:$0xf]
      %v514 = vld [vmem:[%s324 + $0x1c] sm:$0xf]
      %v515 = vld [vmem:[%s324 + $0x24] sm:$0xf]
      %v516 = vld [vmem:[%s324 + $0x2c] sm:$0xf]
      %v517 = vld [vmem:[%s324 + $0x34] sm:$0xf]
      %v518 = vld [vmem:[%s324 + $0x3c] sm:$0xf]
      %v519 = vld [vmem:[%s324 + $0x44] sm:$0xf]
      %v520 = vld [vmem:[%s324 + $0x4c] sm:$0xf]
      %v521 = vld [vmem:[%s324 + $0x54] sm:$0xf]
      %v522 = vld [vmem:[%s324 + $0x5c] sm:$0xf]
      %v523 = vld [vmem:[%s324 + $0x64] sm:$0xf]
      %v524 = vld [vmem:[%s324 + $0x6c] sm:$0xf]
      %v525 = vld [vmem:[%s324 + $0x74] sm:$0xf]
      %v526 = vld [vmem:[%s324 + $0x7c] sm:$0xf]
      %v527 = vld [vmem:[%s324 + $0x84] sm:$0xf]
      %v528 = vld [vmem:[%s324 + $0x8c] sm:$0xf]
      %v529 = vld [vmem:[%s324 + $0x94] sm:$0xf]
      %v530 = vld [vmem:[%s324 + $0x9c] sm:$0xf]
      %v531 = vld [vmem:[%s324 + $0xa4] sm:$0xf]
      %v532 = vld [vmem:[%s324 + $0xac] sm:$0xf]
      %v533 = vld [vmem:[%s324 + $0xb4] sm:$0xf]
      %v534 = vld [vmem:[%s324 + $0xbc] sm:$0xf]
      %v535 = vld [vmem:[%s324 + $0xc4] sm:$0xf]
      %v536 = vld [vmem:[%s324 + $0xcc] sm:$0xf]
      %v537 = vld [vmem:[%s324 + $0xd4] sm:$0xf]
      %v538 = vld [vmem:[%s324 + $0xdc] sm:$0xf]
      %v539 = vld [vmem:[%s324 + $0xe4] sm:$0xf]
      %v540 = vld [vmem:[%s324 + $0xec] sm:$0xf]
      %v541 = vld [vmem:[%s324 + $0xf4] sm:$0xf]
      %v542 = vld [vmem:[%s324 + $0xfc] sm:$0xf]
      %v575 = vunpack.c.l.b16 %v447
      %v576 = vunpack.c.l.b16 %v448
      %v577 = vunpack.c.l.b16 %v449
      %v578 = vunpack.c.l.b16 %v450
      %v579 = vunpack.c.l.b16 %v451
      %v580 = vunpack.c.l.b16 %v452
      %v581 = vunpack.c.l.b16 %v453
      %v582 = vunpack.c.l.b16 %v454
      %v583 = vunpack.c.l.b16 %v455
      %v584 = vunpack.c.l.b16 %v456
      %v585 = vunpack.c.l.b16 %v457
      %v586 = vunpack.c.l.b16 %v458
      %v587 = vunpack.c.l.b16 %v459
      %v588 = vunpack.c.l.b16 %v460
      %v589 = vunpack.c.l.b16 %v461
      %v590 = vunpack.c.l.b16 %v462
      %v591 = vunpack.c.l.b16 %v463
      %v592 = vunpack.c.l.b16 %v464
      %v593 = vunpack.c.l.b16 %v465
      %v594 = vunpack.c.l.b16 %v466
      %v595 = vunpack.c.l.b16 %v467
      %v596 = vunpack.c.l.b16 %v468
      %v597 = vunpack.c.l.b16 %v469
      %v598 = vunpack.c.l.b16 %v470
      %v599 = vunpack.c.l.b16 %v471
      %v600 = vunpack.c.l.b16 %v472
      %v601 = vunpack.c.l.b16 %v473
      %v602 = vunpack.c.l.b16 %v474
      %v603 = vunpack.c.l.b16 %v475
      %v604 = vunpack.c.l.b16 %v476
      %v605 = vunpack.c.l.b16 %v477
      %v606 = vunpack.c.l.b16 %v478
      %v607 = vpack.c.b16 %v576, %v575
      %v608 = vpack.c.b16 %v578, %v577
      %v609 = vpack.c.b16 %v580, %v579
      %v610 = vpack.c.b16 %v582, %v581
      %v611 = vpack.c.b16 %v584, %v583
      %v612 = vpack.c.b16 %v586, %v585
      %v613 = vpack.c.b16 %v588, %v587
      %v614 = vpack.c.b16 %v590, %v589
      %v615 = vpack.c.b16 %v592, %v591
      %v616 = vpack.c.b16 %v594, %v593
      %v617 = vpack.c.b16 %v596, %v595
      %v618 = vpack.c.b16 %v598, %v597
      %v619 = vpack.c.b16 %v600, %v599
      %v620 = vpack.c.b16 %v602, %v601
      %v621 = vpack.c.b16 %v604, %v603
      %v622 = vpack.c.b16 %v606, %v605
      %v671 = vunpack.c.l.b16 %v479
      %v672 = vunpack.c.l.b16 %v480
      %v673 = vunpack.c.l.b16 %v481
      %v674 = vunpack.c.l.b16 %v482
      %v675 = vunpack.c.l.b16 %v483
      %v676 = vunpack.c.l.b16 %v484
      %v677 = vunpack.c.l.b16 %v485
      %v678 = vunpack.c.l.b16 %v486
      %v679 = vunpack.c.l.b16 %v487
      %v680 = vunpack.c.l.b16 %v488
      %v681 = vunpack.c.l.b16 %v489
      %v682 = vunpack.c.l.b16 %v490
      %v683 = vunpack.c.l.b16 %v491
      %v684 = vunpack.c.l.b16 %v492
      %v685 = vunpack.c.l.b16 %v493
      %v686 = vunpack.c.l.b16 %v494
      %v687 = vunpack.c.l.b16 %v495
      %v688 = vunpack.c.l.b16 %v496
      %v689 = vunpack.c.l.b16 %v497
      %v690 = vunpack.c.l.b16 %v498
      %v691 = vunpack.c.l.b16 %v499
      %v692 = vunpack.c.l.b16 %v500
      %v693 = vunpack.c.l.b16 %v501
      %v694 = vunpack.c.l.b16 %v502
      %v695 = vunpack.c.l.b16 %v503
      %v696 = vunpack.c.l.b16 %v504
      %v697 = vunpack.c.l.b16 %v505
      %v698 = vunpack.c.l.b16 %v506
      %v699 = vunpack.c.l.b16 %v507
      %v700 = vunpack.c.l.b16 %v508
      %v701 = vunpack.c.l.b16 %v509
      %v702 = vunpack.c.l.b16 %v510
      %v703 = vpack.c.b16 %v672, %v671
      %v704 = vpack.c.b16 %v674, %v673
      %v705 = vpack.c.b16 %v676, %v675
      %v706 = vpack.c.b16 %v678, %v677
      %v707 = vpack.c.b16 %v680, %v679
      %v708 = vpack.c.b16 %v682, %v681
      %v709 = vpack.c.b16 %v684, %v683
      %v710 = vpack.c.b16 %v686, %v685
      %v711 = vpack.c.b16 %v688, %v687
      %v712 = vpack.c.b16 %v690, %v689
      %v713 = vpack.c.b16 %v692, %v691
      %v714 = vpack.c.b16 %v694, %v693
      %v715 = vpack.c.b16 %v696, %v695
      %v716 = vpack.c.b16 %v698, %v697
      %v717 = vpack.c.b16 %v700, %v699
      %v718 = vpack.c.b16 %v702, %v701
      %735 = vmatpush.bf16.xpose.msra.mxu0 %v710
      %736 = vmatpush.bf16.xpose.msra.mxu0 %v709
      %737 = vmatpush.bf16.xpose.msra.mxu0 %v708
      %738 = vmatpush.bf16.xpose.msra.mxu0 %v707
      %739 = vmatpush.bf16.xpose.msra.mxu0 %v706
      %740 = vmatpush.bf16.xpose.msra.mxu0 %v705
      %741 = vmatpush.bf16.xpose.msra.mxu0 %v704
      %742 = vmatpush.bf16.xpose.msra.mxu0 %v703
      %743 = vmatmul.bf16.gmra.mxu0 %v607
      %v744 = vpop.f32.mrf.mxu0
      %v745 = vadd.f32 0.0, %v744
      %v746 = vpop.f32.mrf.mxu0
      %v747 = vadd.f32 0.0, %v746
      %748 = vmatmul.bf16.gmra.mxu0 %v608
      %v749 = vpop.f32.mrf.mxu0
      %v750 = vadd.f32 0.0, %v749
      %v751 = vpop.f32.mrf.mxu0
      %v752 = vadd.f32 0.0, %v751
      %753 = vmatmul.bf16.gmra.mxu0 %v609
      %v754 = vpop.f32.mrf.mxu0
      %v755 = vadd.f32 0.0, %v754
      %v756 = vpop.f32.mrf.mxu0
      %v757 = vadd.f32 0.0, %v756
      %758 = vmatmul.bf16.gmra.mxu0 %v610
      %v759 = vpop.f32.mrf.mxu0
      %v760 = vadd.f32 0.0, %v759
      %v761 = vpop.f32.mrf.mxu0
      %v762 = vadd.f32 0.0, %v761
      %763 = vmatmul.bf16.gmra.mxu0 %v611
      %v764 = vpop.f32.mrf.mxu0
      %v765 = vadd.f32 0.0, %v764
      %v766 = vpop.f32.mrf.mxu0
      %v767 = vadd.f32 0.0, %v766
      %768 = vmatmul.bf16.gmra.mxu0 %v612
      %v769 = vpop.f32.mrf.mxu0
      %v770 = vadd.f32 0.0, %v769
      %v771 = vpop.f32.mrf.mxu0
      %v772 = vadd.f32 0.0, %v771
      %773 = vmatmul.bf16.gmra.mxu0 %v613
      %v774 = vpop.f32.mrf.mxu0
      %v775 = vadd.f32 0.0, %v774
      %v776 = vpop.f32.mrf.mxu0
      %v777 = vadd.f32 0.0, %v776
      %778 = vmatmul.bf16.gmra.mxu0 %v614
      %v779 = vpop.f32.mrf.mxu0
      %v780 = vadd.f32 0.0, %v779
      %v781 = vpop.f32.mrf.mxu0
      %v782 = vadd.f32 0.0, %v781
      %783 = vmatmul.bf16.gmra.mxu0 %v615
      %v784 = vpop.f32.mrf.mxu0
      %v785 = vadd.f32 0.0, %v784
      %v786 = vpop.f32.mrf.mxu0
      %v787 = vadd.f32 0.0, %v786
      %788 = vmatmul.bf16.gmra.mxu0 %v616
      %v789 = vpop.f32.mrf.mxu0
      %v790 = vadd.f32 0.0, %v789
      %v791 = vpop.f32.mrf.mxu0
      %v792 = vadd.f32 0.0, %v791
      %793 = vmatmul.bf16.gmra.mxu0 %v617
      %v794 = vpop.f32.mrf.mxu0
      %v795 = vadd.f32 0.0, %v794
      %v796 = vpop.f32.mrf.mxu0
      %v797 = vadd.f32 0.0, %v796
      %798 = vmatmul.bf16.gmra.mxu0 %v618
      %v799 = vpop.f32.mrf.mxu0
      %v800 = vadd.f32 0.0, %v799
      %v801 = vpop.f32.mrf.mxu0
      %v802 = vadd.f32 0.0, %v801
      %803 = vmatmul.bf16.gmra.mxu0 %v619
      %v804 = vpop.f32.mrf.mxu0
      %v805 = vadd.f32 0.0, %v804
      %v806 = vpop.f32.mrf.mxu0
      %v807 = vadd.f32 0.0, %v806
      %808 = vmatmul.bf16.gmra.mxu0 %v620
      %v809 = vpop.f32.mrf.mxu0
      %v810 = vadd.f32 0.0, %v809
      %v811 = vpop.f32.mrf.mxu0
      %v812 = vadd.f32 0.0, %v811
      %813 = vmatmul.bf16.gmra.mxu0 %v621
      %v814 = vpop.f32.mrf.mxu0
      %v815 = vadd.f32 0.0, %v814
      %v816 = vpop.f32.mrf.mxu0
      %v817 = vadd.f32 0.0, %v816
      %818 = vmatmul.bf16.gmra.mxu0 %v622
      %v819 = vpop.f32.mrf.mxu0
      %v820 = vadd.f32 0.0, %v819
      %v821 = vpop.f32.mrf.mxu0
      %v822 = vadd.f32 0.0, %v821
      %823 = vdwg.mxu0
      %824 = vmatpush.bf16.xpose.msra.mxu0 %v718
      %825 = vmatpush.bf16.xpose.msra.mxu0 %v717
      %826 = vmatpush.bf16.xpose.msra.mxu0 %v716
      %827 = vmatpush.bf16.xpose.msra.mxu0 %v715
      %828 = vmatpush.bf16.xpose.msra.mxu0 %v714
      %829 = vmatpush.bf16.xpose.msra.mxu0 %v713
      %830 = vmatpush.bf16.xpose.msra.mxu0 %v712
      %831 = vmatpush.bf16.xpose.msra.mxu0 %v711
      %832 = vmatmul.bf16.gmra.mxu0 %v607
      %v833 = vpop.f32.mrf.mxu0
      %v834 = vadd.f32 0.0, %v833
      %v835 = vpop.f32.mrf.mxu0
      %v836 = vadd.f32 0.0, %v835
      %837 = vmatmul.bf16.gmra.mxu0 %v608
      %v838 = vpop.f32.mrf.mxu0
      %v839 = vadd.f32 0.0, %v838
      %v840 = vpop.f32.mrf.mxu0
      %v841 = vadd.f32 0.0, %v840
      %842 = vmatmul.bf16.gmra.mxu0 %v609
      %v843 = vpop.f32.mrf.mxu0
      %v844 = vadd.f32 0.0, %v843
      %v845 = vpop.f32.mrf.mxu0
      %v846 = vadd.f32 0.0, %v845
      %847 = vmatmul.bf16.gmra.mxu0 %v610
      %v848 = vpop.f32.mrf.mxu0
      %v849 = vadd.f32 0.0, %v848
      %v850 = vpop.f32.mrf.mxu0
      %v851 = vadd.f32 0.0, %v850
      %852 = vmatmul.bf16.gmra.mxu0 %v611
      %v853 = vpop.f32.mrf.mxu0
      %v854 = vadd.f32 0.0, %v853
      %v855 = vpop.f32.mrf.mxu0
      %v856 = vadd.f32 0.0, %v855
      %857 = vmatmul.bf16.gmra.mxu0 %v612
      %v858 = vpop.f32.mrf.mxu0
      %v859 = vadd.f32 0.0, %v858
      %v860 = vpop.f32.mrf.mxu0
      %v861 = vadd.f32 0.0, %v860
      %862 = vmatmul.bf16.gmra.mxu0 %v613
      %v863 = vpop.f32.mrf.mxu0
      %v864 = vadd.f32 0.0, %v863
      %v865 = vpop.f32.mrf.mxu0
      %v866 = vadd.f32 0.0, %v865
      %867 = vmatmul.bf16.gmra.mxu0 %v614
      %v868 = vpop.f32.mrf.mxu0
      %v869 = vadd.f32 0.0, %v868
      %v870 = vpop.f32.mrf.mxu0
      %v871 = vadd.f32 0.0, %v870
      %872 = vmatmul.bf16.gmra.mxu0 %v615
      %v873 = vpop.f32.mrf.mxu0
      %v874 = vadd.f32 0.0, %v873
      %v875 = vpop.f32.mrf.mxu0
      %v876 = vadd.f32 0.0, %v875
      %877 = vmatmul.bf16.gmra.mxu0 %v616
      %v878 = vpop.f32.mrf.mxu0
      %v879 = vadd.f32 0.0, %v878
      %v880 = vpop.f32.mrf.mxu0
      %v881 = vadd.f32 0.0, %v880
      %882 = vmatmul.bf16.gmra.mxu0 %v617
      %v883 = vpop.f32.mrf.mxu0
      %v884 = vadd.f32 0.0, %v883
      %v885 = vpop.f32.mrf.mxu0
      %v886 = vadd.f32 0.0, %v885
      %887 = vmatmul.bf16.gmra.mxu0 %v618
      %v888 = vpop.f32.mrf.mxu0
      %v889 = vadd.f32 0.0, %v888
      %v890 = vpop.f32.mrf.mxu0
      %v891 = vadd.f32 0.0, %v890
      %892 = vmatmul.bf16.gmra.mxu0 %v619
      %v893 = vpop.f32.mrf.mxu0
      %v894 = vadd.f32 0.0, %v893
      %v895 = vpop.f32.mrf.mxu0
      %v896 = vadd.f32 0.0, %v895
      %897 = vmatmul.bf16.gmra.mxu0 %v620
      %v898 = vpop.f32.mrf.mxu0
      %v899 = vadd.f32 0.0, %v898
      %v900 = vpop.f32.mrf.mxu0
      %v901 = vadd.f32 0.0, %v900
      %902 = vmatmul.bf16.gmra.mxu0 %v621
      %v903 = vpop.f32.mrf.mxu0
      %v904 = vadd.f32 0.0, %v903
      %v905 = vpop.f32.mrf.mxu0
      %v906 = vadd.f32 0.0, %v905
      %907 = vmatmul.bf16.gmra.mxu0 %v622
      %v908 = vpop.f32.mrf.mxu0
      %v909 = vadd.f32 0.0, %v908
      %v910 = vpop.f32.mrf.mxu0
      %v911 = vadd.f32 0.0, %v910
      %912 = vdwg.mxu0
      %v913 = vld [vmem:[#allocation2] sm:$0xff]
      %v914 = vld [vmem:[#allocation2 + $0x8] sm:$0xff]
      %v915 = vld [vmem:[#allocation2 + $0x10] sm:$0xff]
      %v916 = vld [vmem:[#allocation2 + $0x18] sm:$0xff]
      %v917 = vld [vmem:[#allocation2 + $0x20] sm:$0xff]
      %v918 = vld [vmem:[#allocation2 + $0x28] sm:$0xff]
      %v919 = vld [vmem:[#allocation2 + $0x30] sm:$0xff]
      %v920 = vld [vmem:[#allocation2 + $0x38] sm:$0xff]
      %v921 = vld [vmem:[#allocation2 + $0x40] sm:$0xff]
      %v922 = vld [vmem:[#allocation2 + $0x48] sm:$0xff]
      %v923 = vld [vmem:[#allocation2 + $0x50] sm:$0xff]
      %v924 = vld [vmem:[#allocation2 + $0x58] sm:$0xff]
      %v925 = vld [vmem:[#allocation2 + $0x60] sm:$0xff]
      %v926 = vld [vmem:[#allocation2 + $0x68] sm:$0xff]
      %v927 = vld [vmem:[#allocation2 + $0x70] sm:$0xff]
      %v928 = vld [vmem:[#allocation2 + $0x78] sm:$0xff]
      %v929 = vld [vmem:[#allocation2 + $0x80] sm:$0xff]
      %v930 = vld [vmem:[#allocation2 + $0x88] sm:$0xff]
      %v931 = vld [vmem:[#allocation2 + $0x90] sm:$0xff]
      %v932 = vld [vmem:[#allocation2 + $0x98] sm:$0xff]
      %v933 = vld [vmem:[#allocation2 + $0xa0] sm:$0xff]
      %v934 = vld [vmem:[#allocation2 + $0xa8] sm:$0xff]
      %v935 = vld [vmem:[#allocation2 + $0xb0] sm:$0xff]
      %v936 = vld [vmem:[#allocation2 + $0xb8] sm:$0xff]
      %v937 = vld [vmem:[#allocation2 + $0xc0] sm:$0xff]
      %v938 = vld [vmem:[#allocation2 + $0xc8] sm:$0xff]
      %v939 = vld [vmem:[#allocation2 + $0xd0] sm:$0xff]
      %v940 = vld [vmem:[#allocation2 + $0xd8] sm:$0xff]
      %v941 = vld [vmem:[#allocation2 + $0xe0] sm:$0xff]
      %v942 = vld [vmem:[#allocation2 + $0xe8] sm:$0xff]
      %v943 = vld [vmem:[#allocation2 + $0xf0] sm:$0xff]
      %v944 = vld [vmem:[#allocation2 + $0xf8] sm:$0xff]
      %v945 = vmax.f32 %v745, %v834
      %946 = vmax.xlane.f32.xlu0 %v945
      %v947 = vpop.xlane.xlu0 %946
      %v948 = vmax.f32 %v747, %v836
      %949 = vmax.xlane.f32.xlu0 %v948
      %v950 = vpop.xlane.xlu0 %949
      %v951 = vmax.f32 %v750, %v839
      %952 = vmax.xlane.f32.xlu0 %v951
      %v953 = vpop.xlane.xlu0 %952
      %v954 = vmax.f32 %v752, %v841
      %955 = vmax.xlane.f32.xlu0 %v954
      %v956 = vpop.xlane.xlu0 %955
      %v957 = vmax.f32 %v755, %v844
      %958 = vmax.xlane.f32.xlu0 %v957
      %v959 = vpop.xlane.xlu0 %958
      %v960 = vmax.f32 %v757, %v846
      %961 = vmax.xlane.f32.xlu0 %v960
      %v962 = vpop.xlane.xlu0 %961
      %v963 = vmax.f32 %v760, %v849
      %964 = vmax.xlane.f32.xlu0 %v963
      %v965 = vpop.xlane.xlu0 %964
      %v966 = vmax.f32 %v762, %v851
      %967 = vmax.xlane.f32.xlu0 %v966
      %v968 = vpop.xlane.xlu0 %967
      %v969 = vmax.f32 %v765, %v854
      %970 = vmax.xlane.f32.xlu0 %v969
      %v971 = vpop.xlane.xlu0 %970
      %v972 = vmax.f32 %v767, %v856
      %973 = vmax.xlane.f32.xlu0 %v972
      %v974 = vpop.xlane.xlu0 %973
      %v975 = vmax.f32 %v770, %v859
      %976 = vmax.xlane.f32.xlu0 %v975
      %v977 = vpop.xlane.xlu0 %976
      %v978 = vmax.f32 %v772, %v861
      %979 = vmax.xlane.f32.xlu0 %v978
      %v980 = vpop.xlane.xlu0 %979
      %v981 = vmax.f32 %v775, %v864
      %982 = vmax.xlane.f32.xlu0 %v981
      %v983 = vpop.xlane.xlu0 %982
      %v984 = vmax.f32 %v777, %v866
      %985 = vmax.xlane.f32.xlu0 %v984
      %v986 = vpop.xlane.xlu0 %985
      %v987 = vmax.f32 %v780, %v869
      %988 = vmax.xlane.f32.xlu0 %v987
      %v989 = vpop.xlane.xlu0 %988
      %v990 = vmax.f32 %v782, %v871
      %991 = vmax.xlane.f32.xlu0 %v990
      %v992 = vpop.xlane.xlu0 %991
      %v993 = vmax.f32 %v785, %v874
      %994 = vmax.xlane.f32.xlu0 %v993
      %v995 = vpop.xlane.xlu0 %994
      %v996 = vmax.f32 %v787, %v876
      %997 = vmax.xlane.f32.xlu0 %v996
      %v998 = vpop.xlane.xlu0 %997
      %v999 = vmax.f32 %v790, %v879
      %1000 = vmax.xlane.f32.xlu0 %v999
      %v1001 = vpop.xlane.xlu0 %1000
      %v1002 = vmax.f32 %v792, %v881
      %1003 = vmax.xlane.f32.xlu0 %v1002
      %v1004 = vpop.xlane.xlu0 %1003
      %v1005 = vmax.f32 %v795, %v884
      %1006 = vmax.xlane.f32.xlu0 %v1005
      %v1007 = vpop.xlane.xlu0 %1006
      %v1008 = vmax.f32 %v797, %v886
      %1009 = vmax.xlane.f32.xlu0 %v1008
      %v1010 = vpop.xlane.xlu0 %1009
      %v1011 = vmax.f32 %v800, %v889
      %1012 = vmax.xlane.f32.xlu0 %v1011
      %v1013 = vpop.xlane.xlu0 %1012
      %v1014 = vmax.f32 %v802, %v891
      %1015 = vmax.xlane.f32.xlu0 %v1014
      %v1016 = vpop.xlane.xlu0 %1015
      %v1017 = vmax.f32 %v805, %v894
      %1018 = vmax.xlane.f32.xlu0 %v1017
      %v1019 = vpop.xlane.xlu0 %1018
      %v1020 = vmax.f32 %v807, %v896
      %1021 = vmax.xlane.f32.xlu0 %v1020
      %v1022 = vpop.xlane.xlu0 %1021
      %v1023 = vmax.f32 %v810, %v899
      %1024 = vmax.xlane.f32.xlu0 %v1023
      %v1025 = vpop.xlane.xlu0 %1024
      %v1026 = vmax.f32 %v812, %v901
      %1027 = vmax.xlane.f32.xlu0 %v1026
      %v1028 = vpop.xlane.xlu0 %1027
      %v1029 = vmax.f32 %v815, %v904
      %1030 = vmax.xlane.f32.xlu0 %v1029
      %v1031 = vpop.xlane.xlu0 %1030
      %v1032 = vmax.f32 %v817, %v906
      %1033 = vmax.xlane.f32.xlu0 %v1032
      %v1034 = vpop.xlane.xlu0 %1033
      %v1035 = vmax.f32 %v820, %v909
      %1036 = vmax.xlane.f32.xlu0 %v1035
      %v1037 = vpop.xlane.xlu0 %1036
      %v1038 = vmax.f32 %v822, %v911
      %1039 = vmax.xlane.f32.xlu0 %v1038
      %v1040 = vpop.xlane.xlu0 %1039
      %v1041 = vmax.f32 %v913, %v947
      %v1042 = vmax.f32 %v914, %v950
      %v1043 = vmax.f32 %v915, %v953
      %v1044 = vmax.f32 %v916, %v956
      %v1045 = vmax.f32 %v917, %v959
      %v1046 = vmax.f32 %v918, %v962
      %v1047 = vmax.f32 %v919, %v965
      %v1048 = vmax.f32 %v920, %v968
      %v1049 = vmax.f32 %v921, %v971
      %v1050 = vmax.f32 %v922, %v974
      %v1051 = vmax.f32 %v923, %v977
      %v1052 = vmax.f32 %v924, %v980
      %v1053 = vmax.f32 %v925, %v983
      %v1054 = vmax.f32 %v926, %v986
      %v1055 = vmax.f32 %v927, %v989
      %v1056 = vmax.f32 %v928, %v992
      %v1057 = vmax.f32 %v929, %v995
      %v1058 = vmax.f32 %v930, %v998
      %v1059 = vmax.f32 %v931, %v1001
      %v1060 = vmax.f32 %v932, %v1004
      %v1061 = vmax.f32 %v933, %v1007
      %v1062 = vmax.f32 %v934, %v1010
      %v1063 = vmax.f32 %v935, %v1013
      %v1064 = vmax.f32 %v936, %v1016
      %v1065 = vmax.f32 %v937, %v1019
      %v1066 = vmax.f32 %v938, %v1022
      %v1067 = vmax.f32 %v939, %v1025
      %v1068 = vmax.f32 %v940, %v1028
      %v1069 = vmax.f32 %v941, %v1031
      %v1070 = vmax.f32 %v942, %v1034
      %v1071 = vmax.f32 %v943, %v1037
      %v1072 = vmax.f32 %v944, %v1040
      %v1073 = vsub.f32 %v913, %v1041
      %v1074 = vsub.f32 %v914, %v1042
      %v1075 = vsub.f32 %v915, %v1043
      %v1076 = vsub.f32 %v916, %v1044
      %v1077 = vsub.f32 %v917, %v1045
      %v1078 = vsub.f32 %v918, %v1046
      %v1079 = vsub.f32 %v919, %v1047
      %v1080 = vsub.f32 %v920, %v1048
      %v1081 = vsub.f32 %v921, %v1049
      %v1082 = vsub.f32 %v922, %v1050
      %v1083 = vsub.f32 %v923, %v1051
      %v1084 = vsub.f32 %v924, %v1052
      %v1085 = vsub.f32 %v925, %v1053
      %v1086 = vsub.f32 %v926, %v1054
      %v1087 = vsub.f32 %v927, %v1055
      %v1088 = vsub.f32 %v928, %v1056
      %v1089 = vsub.f32 %v929, %v1057
      %v1090 = vsub.f32 %v930, %v1058
      %v1091 = vsub.f32 %v931, %v1059
      %v1092 = vsub.f32 %v932, %v1060
      %v1093 = vsub.f32 %v933, %v1061
      %v1094 = vsub.f32 %v934, %v1062
      %v1095 = vsub.f32 %v935, %v1063
      %v1096 = vsub.f32 %v936, %v1064
      %v1097 = vsub.f32 %v937, %v1065
      %v1098 = vsub.f32 %v938, %v1066
      %v1099 = vsub.f32 %v939, %v1067
      %v1100 = vsub.f32 %v940, %v1068
      %v1101 = vsub.f32 %v941, %v1069
      %v1102 = vsub.f32 %v942, %v1070
      %v1103 = vsub.f32 %v943, %v1071
      %v1104 = vsub.f32 %v944, %v1072
      %v1105 = vpow.pop %v1073
      %v1106 = vpow.pop %v1074
      %v1107 = vpow.pop %v1075
      %v1108 = vpow.pop %v1076
      %v1109 = vpow.pop %v1077
      %v1110 = vpow.pop %v1078
      %v1111 = vpow.pop %v1079
      %v1112 = vpow.pop %v1080
      %v1113 = vpow.pop %v1081
      %v1114 = vpow.pop %v1082
      %v1115 = vpow.pop %v1083
      %v1116 = vpow.pop %v1084
      %v1117 = vpow.pop %v1085
      %v1118 = vpow.pop %v1086
      %v1119 = vpow.pop %v1087
      %v1120 = vpow.pop %v1088
      %v1121 = vpow.pop %v1089
      %v1122 = vpow.pop %v1090
      %v1123 = vpow.pop %v1091
      %v1124 = vpow.pop %v1092
      %v1125 = vpow.pop %v1093
      %v1126 = vpow.pop %v1094
      %v1127 = vpow.pop %v1095
      %v1128 = vpow.pop %v1096
      %v1129 = vpow.pop %v1097
      %v1130 = vpow.pop %v1098
      %v1131 = vpow.pop %v1099
      %v1132 = vpow.pop %v1100
      %v1133 = vpow.pop %v1101
      %v1134 = vpow.pop %v1102
      %v1135 = vpow.pop %v1103
      %v1136 = vpow.pop %v1104
      %1138 = vset.pattern.permute.xlu0 0
      %1139 = vperm.xlu0 %1138, %v1041
      %v1140 = vpop.permute.xlu0 %1139
      %1143 = vset.pattern.permute.xlu0 0
      %1144 = vperm.xlu0 %1143, %v1042
      %v1145 = vpop.permute.xlu0 %1144
      %1148 = vset.pattern.permute.xlu0 0
      %1149 = vperm.xlu0 %1148, %v1043
      %v1150 = vpop.permute.xlu0 %1149
      %1153 = vset.pattern.permute.xlu0 0
      %1154 = vperm.xlu0 %1153, %v1044
      %v1155 = vpop.permute.xlu0 %1154
      %1158 = vset.pattern.permute.xlu0 0
      %1159 = vperm.xlu0 %1158, %v1045
      %v1160 = vpop.permute.xlu0 %1159
      %1163 = vset.pattern.permute.xlu0 0
      %1164 = vperm.xlu0 %1163, %v1046
      %v1165 = vpop.permute.xlu0 %1164
      %1168 = vset.pattern.permute.xlu0 0
      %1169 = vperm.xlu0 %1168, %v1047
      %v1170 = vpop.permute.xlu0 %1169
      %1173 = vset.pattern.permute.xlu0 0
      %1174 = vperm.xlu0 %1173, %v1048
      %v1175 = vpop.permute.xlu0 %1174
      %1178 = vset.pattern.permute.xlu0 0
      %1179 = vperm.xlu0 %1178, %v1049
      %v1180 = vpop.permute.xlu0 %1179
      %1183 = vset.pattern.permute.xlu0 0
      %1184 = vperm.xlu0 %1183, %v1050
      %v1185 = vpop.permute.xlu0 %1184
      %1188 = vset.pattern.permute.xlu0 0
      %1189 = vperm.xlu0 %1188, %v1051
      %v1190 = vpop.permute.xlu0 %1189
      %1193 = vset.pattern.permute.xlu0 0
      %1194 = vperm.xlu0 %1193, %v1052
      %v1195 = vpop.permute.xlu0 %1194
      %1198 = vset.pattern.permute.xlu0 0
      %1199 = vperm.xlu0 %1198, %v1053
      %v1200 = vpop.permute.xlu0 %1199
      %1203 = vset.pattern.permute.xlu0 0
      %1204 = vperm.xlu0 %1203, %v1054
      %v1205 = vpop.permute.xlu0 %1204
      %1208 = vset.pattern.permute.xlu0 0
      %1209 = vperm.xlu0 %1208, %v1055
      %v1210 = vpop.permute.xlu0 %1209
      %1213 = vset.pattern.permute.xlu0 0
      %1214 = vperm.xlu0 %1213, %v1056
      %v1215 = vpop.permute.xlu0 %1214
      %1218 = vset.pattern.permute.xlu0 0
      %1219 = vperm.xlu0 %1218, %v1057
      %v1220 = vpop.permute.xlu0 %1219
      %1223 = vset.pattern.permute.xlu0 0
      %1224 = vperm.xlu0 %1223, %v1058
      %v1225 = vpop.permute.xlu0 %1224
      %1228 = vset.pattern.permute.xlu0 0
      %1229 = vperm.xlu0 %1228, %v1059
      %v1230 = vpop.permute.xlu0 %1229
      %1233 = vset.pattern.permute.xlu0 0
      %1234 = vperm.xlu0 %1233, %v1060
      %v1235 = vpop.permute.xlu0 %1234
      %1238 = vset.pattern.permute.xlu0 0
      %1239 = vperm.xlu0 %1238, %v1061
      %v1240 = vpop.permute.xlu0 %1239
      %1243 = vset.pattern.permute.xlu0 0
      %1244 = vperm.xlu0 %1243, %v1062
      %v1245 = vpop.permute.xlu0 %1244
      %1248 = vset.pattern.permute.xlu0 0
      %1249 = vperm.xlu0 %1248, %v1063
      %v1250 = vpop.permute.xlu0 %1249
      %1253 = vset.pattern.permute.xlu0 0
      %1254 = vperm.xlu0 %1253, %v1064
      %v1255 = vpop.permute.xlu0 %1254
      %1258 = vset.pattern.permute.xlu0 0
      %1259 = vperm.xlu0 %1258, %v1065
      %v1260 = vpop.permute.xlu0 %1259
      %1263 = vset.pattern.permute.xlu0 0
      %1264 = vperm.xlu0 %1263, %v1066
      %v1265 = vpop.permute.xlu0 %1264
      %1268 = vset.pattern.permute.xlu0 0
      %1269 = vperm.xlu0 %1268, %v1067
      %v1270 = vpop.permute.xlu0 %1269
      %1273 = vset.pattern.permute.xlu0 0
      %1274 = vperm.xlu0 %1273, %v1068
      %v1275 = vpop.permute.xlu0 %1274
      %1278 = vset.pattern.permute.xlu0 0
      %1279 = vperm.xlu0 %1278, %v1069
      %v1280 = vpop.permute.xlu0 %1279
      %1283 = vset.pattern.permute.xlu0 0
      %1284 = vperm.xlu0 %1283, %v1070
      %v1285 = vpop.permute.xlu0 %1284
      %1288 = vset.pattern.permute.xlu0 0
      %1289 = vperm.xlu0 %1288, %v1071
      %v1290 = vpop.permute.xlu0 %1289
      %1293 = vset.pattern.permute.xlu0 0
      %1294 = vperm.xlu0 %1293, %v1072
      %v1295 = vpop.permute.xlu0 %1294
      %v1297 = vsub.f32 %v745, %v1140
      %v1298 = vsub.f32 %v834, %v1140
      %v1299 = vsub.f32 %v747, %v1145
      %v1300 = vsub.f32 %v836, %v1145
      %v1301 = vsub.f32 %v750, %v1150
      %v1302 = vsub.f32 %v839, %v1150
      %v1303 = vsub.f32 %v752, %v1155
      %v1304 = vsub.f32 %v841, %v1155
      %v1305 = vsub.f32 %v755, %v1160
      %v1306 = vsub.f32 %v844, %v1160
      %v1307 = vsub.f32 %v757, %v1165
      %v1308 = vsub.f32 %v846, %v1165
      %v1309 = vsub.f32 %v760, %v1170
      %v1310 = vsub.f32 %v849, %v1170
      %v1311 = vsub.f32 %v762, %v1175
      %v1312 = vsub.f32 %v851, %v1175
      %v1313 = vsub.f32 %v765, %v1180
      %v1314 = vsub.f32 %v854, %v1180
      %v1315 = vsub.f32 %v767, %v1185
      %v1316 = vsub.f32 %v856, %v1185
      %v1317 = vsub.f32 %v770, %v1190
      %v1318 = vsub.f32 %v859, %v1190
      %v1319 = vsub.f32 %v772, %v1195
      %v1320 = vsub.f32 %v861, %v1195
      %v1321 = vsub.f32 %v775, %v1200
      %v1322 = vsub.f32 %v864, %v1200
      %v1323 = vsub.f32 %v777, %v1205
      %v1324 = vsub.f32 %v866, %v1205
      %v1325 = vsub.f32 %v780, %v1210
      %v1326 = vsub.f32 %v869, %v1210
      %v1327 = vsub.f32 %v782, %v1215
      %v1328 = vsub.f32 %v871, %v1215
      %v1329 = vsub.f32 %v785, %v1220
      %v1330 = vsub.f32 %v874, %v1220
      %v1331 = vsub.f32 %v787, %v1225
      %v1332 = vsub.f32 %v876, %v1225
      %v1333 = vsub.f32 %v790, %v1230
      %v1334 = vsub.f32 %v879, %v1230
      %v1335 = vsub.f32 %v792, %v1235
      %v1336 = vsub.f32 %v881, %v1235
      %v1337 = vsub.f32 %v795, %v1240
      %v1338 = vsub.f32 %v884, %v1240
      %v1339 = vsub.f32 %v797, %v1245
      %v1340 = vsub.f32 %v886, %v1245
      %v1341 = vsub.f32 %v800, %v1250
      %v1342 = vsub.f32 %v889, %v1250
      %v1343 = vsub.f32 %v802, %v1255
      %v1344 = vsub.f32 %v891, %v1255
      %v1345 = vsub.f32 %v805, %v1260
      %v1346 = vsub.f32 %v894, %v1260
      %v1347 = vsub.f32 %v807, %v1265
      %v1348 = vsub.f32 %v896, %v1265
      %v1349 = vsub.f32 %v810, %v1270
      %v1350 = vsub.f32 %v899, %v1270
      %v1351 = vsub.f32 %v812, %v1275
      %v1352 = vsub.f32 %v901, %v1275
      %v1353 = vsub.f32 %v815, %v1280
      %v1354 = vsub.f32 %v904, %v1280
      %v1355 = vsub.f32 %v817, %v1285
      %v1356 = vsub.f32 %v906, %v1285
      %v1357 = vsub.f32 %v820, %v1290
      %v1358 = vsub.f32 %v909, %v1290
      %v1359 = vsub.f32 %v822, %v1295
      %v1360 = vsub.f32 %v911, %v1295
      %v1361 = vpow.pop %v1297
      %v1362 = vpow.pop %v1298
      %v1363 = vpow.pop %v1299
      %v1364 = vpow.pop %v1300
      %v1365 = vpow.pop %v1301
      %v1366 = vpow.pop %v1302
      %v1367 = vpow.pop %v1303
      %v1368 = vpow.pop %v1304
      %v1369 = vpow.pop %v1305
      %v1370 = vpow.pop %v1306
      %v1371 = vpow.pop %v1307
      %v1372 = vpow.pop %v1308
      %v1373 = vpow.pop %v1309
      %v1374 = vpow.pop %v1310
      %v1375 = vpow.pop %v1311
      %v1376 = vpow.pop %v1312
      %v1377 = vpow.pop %v1313
      %v1378 = vpow.pop %v1314
      %v1379 = vpow.pop %v1315
      %v1380 = vpow.pop %v1316
      %v1381 = vpow.pop %v1317
      %v1382 = vpow.pop %v1318
      %v1383 = vpow.pop %v1319
      %v1384 = vpow.pop %v1320
      %v1385 = vpow.pop %v1321
      %v1386 = vpow.pop %v1322
      %v1387 = vpow.pop %v1323
      %v1388 = vpow.pop %v1324
      %v1389 = vpow.pop %v1325
      %v1390 = vpow.pop %v1326
      %v1391 = vpow.pop %v1327
      %v1392 = vpow.pop %v1328
      %v1393 = vpow.pop %v1329
      %v1394 = vpow.pop %v1330
      %v1395 = vpow.pop %v1331
      %v1396 = vpow.pop %v1332
      %v1397 = vpow.pop %v1333
      %v1398 = vpow.pop %v1334
      %v1399 = vpow.pop %v1335
      %v1400 = vpow.pop %v1336
      %v1401 = vpow.pop %v1337
      %v1402 = vpow.pop %v1338
      %v1403 = vpow.pop %v1339
      %v1404 = vpow.pop %v1340
      %v1405 = vpow.pop %v1341
      %v1406 = vpow.pop %v1342
      %v1407 = vpow.pop %v1343
      %v1408 = vpow.pop %v1344
      %v1409 = vpow.pop %v1345
      %v1410 = vpow.pop %v1346
      %v1411 = vpow.pop %v1347
      %v1412 = vpow.pop %v1348
      %v1413 = vpow.pop %v1349
      %v1414 = vpow.pop %v1350
      %v1415 = vpow.pop %v1351
      %v1416 = vpow.pop %v1352
      %v1417 = vpow.pop %v1353
      %v1418 = vpow.pop %v1354
      %v1419 = vpow.pop %v1355
      %v1420 = vpow.pop %v1356
      %v1421 = vpow.pop %v1357
      %v1422 = vpow.pop %v1358
      %v1423 = vpow.pop %v1359
      %v1424 = vpow.pop %v1360
      %v1425 = vld [vmem:[#allocation3] sm:$0xff]
      %v1426 = vld [vmem:[#allocation3 + $0x8] sm:$0xff]
      %v1427 = vld [vmem:[#allocation3 + $0x10] sm:$0xff]
      %v1428 = vld [vmem:[#allocation3 + $0x18] sm:$0xff]
      %v1429 = vld [vmem:[#allocation3 + $0x20] sm:$0xff]
      %v1430 = vld [vmem:[#allocation3 + $0x28] sm:$0xff]
      %v1431 = vld [vmem:[#allocation3 + $0x30] sm:$0xff]
      %v1432 = vld [vmem:[#allocation3 + $0x38] sm:$0xff]
      %v1433 = vld [vmem:[#allocation3 + $0x40] sm:$0xff]
      %v1434 = vld [vmem:[#allocation3 + $0x48] sm:$0xff]
      %v1435 = vld [vmem:[#allocation3 + $0x50] sm:$0xff]
      %v1436 = vld [vmem:[#allocation3 + $0x58] sm:$0xff]
      %v1437 = vld [vmem:[#allocation3 + $0x60] sm:$0xff]
      %v1438 = vld [vmem:[#allocation3 + $0x68] sm:$0xff]
      %v1439 = vld [vmem:[#allocation3 + $0x70] sm:$0xff]
      %v1440 = vld [vmem:[#allocation3 + $0x78] sm:$0xff]
      %v1441 = vld [vmem:[#allocation3 + $0x80] sm:$0xff]
      %v1442 = vld [vmem:[#allocation3 + $0x88] sm:$0xff]
      %v1443 = vld [vmem:[#allocation3 + $0x90] sm:$0xff]
      %v1444 = vld [vmem:[#allocation3 + $0x98] sm:$0xff]
      %v1445 = vld [vmem:[#allocation3 + $0xa0] sm:$0xff]
      %v1446 = vld [vmem:[#allocation3 + $0xa8] sm:$0xff]
      %v1447 = vld [vmem:[#allocation3 + $0xb0] sm:$0xff]
      %v1448 = vld [vmem:[#allocation3 + $0xb8] sm:$0xff]
      %v1449 = vld [vmem:[#allocation3 + $0xc0] sm:$0xff]
      %v1450 = vld [vmem:[#allocation3 + $0xc8] sm:$0xff]
      %v1451 = vld [vmem:[#allocation3 + $0xd0] sm:$0xff]
      %v1452 = vld [vmem:[#allocation3 + $0xd8] sm:$0xff]
      %v1453 = vld [vmem:[#allocation3 + $0xe0] sm:$0xff]
      %v1454 = vld [vmem:[#allocation3 + $0xe8] sm:$0xff]
      %v1455 = vld [vmem:[#allocation3 + $0xf0] sm:$0xff]
      %v1456 = vld [vmem:[#allocation3 + $0xf8] sm:$0xff]
      %v1457 = vmul.f32 %v1105, %v1425
      %v1458 = vmul.f32 %v1106, %v1426
      %v1459 = vmul.f32 %v1107, %v1427
      %v1460 = vmul.f32 %v1108, %v1428
      %v1461 = vmul.f32 %v1109, %v1429
      %v1462 = vmul.f32 %v1110, %v1430
      %v1463 = vmul.f32 %v1111, %v1431
      %v1464 = vmul.f32 %v1112, %v1432
      %v1465 = vmul.f32 %v1113, %v1433
      %v1466 = vmul.f32 %v1114, %v1434
      %v1467 = vmul.f32 %v1115, %v1435
      %v1468 = vmul.f32 %v1116, %v1436
      %v1469 = vmul.f32 %v1117, %v1437
      %v1470 = vmul.f32 %v1118, %v1438
      %v1471 = vmul.f32 %v1119, %v1439
      %v1472 = vmul.f32 %v1120, %v1440
      %v1473 = vmul.f32 %v1121, %v1441
      %v1474 = vmul.f32 %v1122, %v1442
      %v1475 = vmul.f32 %v1123, %v1443
      %v1476 = vmul.f32 %v1124, %v1444
      %v1477 = vmul.f32 %v1125, %v1445
      %v1478 = vmul.f32 %v1126, %v1446
      %v1479 = vmul.f32 %v1127, %v1447
      %v1480 = vmul.f32 %v1128, %v1448
      %v1481 = vmul.f32 %v1129, %v1449
      %v1482 = vmul.f32 %v1130, %v1450
      %v1483 = vmul.f32 %v1131, %v1451
      %v1484 = vmul.f32 %v1132, %v1452
      %v1485 = vmul.f32 %v1133, %v1453
      %v1486 = vmul.f32 %v1134, %v1454
      %v1487 = vmul.f32 %v1135, %v1455
      %v1488 = vmul.f32 %v1136, %v1456
      %v1489 = vadd.f32 %v1361, %v1362
      %1490 = vadd.xlane.f32.xlu0 %v1489
      %v1491 = vpop.xlane.xlu0 %1490
      %v1492 = vadd.f32 %v1363, %v1364
      %1493 = vadd.xlane.f32.xlu0 %v1492
      %v1494 = vpop.xlane.xlu0 %1493
      %v1495 = vadd.f32 %v1365, %v1366
      %1496 = vadd.xlane.f32.xlu0 %v1495
      %v1497 = vpop.xlane.xlu0 %1496
      %v1498 = vadd.f32 %v1367, %v1368
      %1499 = vadd.xlane.f32.xlu0 %v1498
      %v1500 = vpop.xlane.xlu0 %1499
      %v1501 = vadd.f32 %v1369, %v1370
      %1502 = vadd.xlane.f32.xlu0 %v1501
      %v1503 = vpop.xlane.xlu0 %1502
      %v1504 = vadd.f32 %v1371, %v1372
      %1505 = vadd.xlane.f32.xlu0 %v1504
      %v1506 = vpop.xlane.xlu0 %1505
      %v1507 = vadd.f32 %v1373, %v1374
      %1508 = vadd.xlane.f32.xlu0 %v1507
      %v1509 = vpop.xlane.xlu0 %1508
      %v1510 = vadd.f32 %v1375, %v1376
      %1511 = vadd.xlane.f32.xlu0 %v1510
      %v1512 = vpop.xlane.xlu0 %1511
      %v1513 = vadd.f32 %v1377, %v1378
      %1514 = vadd.xlane.f32.xlu0 %v1513
      %v1515 = vpop.xlane.xlu0 %1514
      %v1516 = vadd.f32 %v1379, %v1380
      %1517 = vadd.xlane.f32.xlu0 %v1516
      %v1518 = vpop.xlane.xlu0 %1517
      %v1519 = vadd.f32 %v1381, %v1382
      %1520 = vadd.xlane.f32.xlu0 %v1519
      %v1521 = vpop.xlane.xlu0 %1520
      %v1522 = vadd.f32 %v1383, %v1384
      %1523 = vadd.xlane.f32.xlu0 %v1522
      %v1524 = vpop.xlane.xlu0 %1523
      %v1525 = vadd.f32 %v1385, %v1386
      %1526 = vadd.xlane.f32.xlu0 %v1525
      %v1527 = vpop.xlane.xlu0 %1526
      %v1528 = vadd.f32 %v1387, %v1388
      %1529 = vadd.xlane.f32.xlu0 %v1528
      %v1530 = vpop.xlane.xlu0 %1529
      %v1531 = vadd.f32 %v1389, %v1390
      %1532 = vadd.xlane.f32.xlu0 %v1531
      %v1533 = vpop.xlane.xlu0 %1532
      %v1534 = vadd.f32 %v1391, %v1392
      %1535 = vadd.xlane.f32.xlu0 %v1534
      %v1536 = vpop.xlane.xlu0 %1535
      %v1537 = vadd.f32 %v1393, %v1394
      %1538 = vadd.xlane.f32.xlu0 %v1537
      %v1539 = vpop.xlane.xlu0 %1538
      %v1540 = vadd.f32 %v1395, %v1396
      %1541 = vadd.xlane.f32.xlu0 %v1540
      %v1542 = vpop.xlane.xlu0 %1541
      %v1543 = vadd.f32 %v1397, %v1398
      %1544 = vadd.xlane.f32.xlu0 %v1543
      %v1545 = vpop.xlane.xlu0 %1544
      %v1546 = vadd.f32 %v1399, %v1400
      %1547 = vadd.xlane.f32.xlu0 %v1546
      %v1548 = vpop.xlane.xlu0 %1547
      %v1549 = vadd.f32 %v1401, %v1402
      %1550 = vadd.xlane.f32.xlu0 %v1549
      %v1551 = vpop.xlane.xlu0 %1550
      %v1552 = vadd.f32 %v1403, %v1404
      %1553 = vadd.xlane.f32.xlu0 %v1552
      %v1554 = vpop.xlane.xlu0 %1553
      %v1555 = vadd.f32 %v1405, %v1406
      %1556 = vadd.xlane.f32.xlu0 %v1555
      %v1557 = vpop.xlane.xlu0 %1556
      %v1558 = vadd.f32 %v1407, %v1408
      %1559 = vadd.xlane.f32.xlu0 %v1558
      %v1560 = vpop.xlane.xlu0 %1559
      %v1561 = vadd.f32 %v1409, %v1410
      %1562 = vadd.xlane.f32.xlu0 %v1561
      %v1563 = vpop.xlane.xlu0 %1562
      %v1564 = vadd.f32 %v1411, %v1412
      %1565 = vadd.xlane.f32.xlu0 %v1564
      %v1566 = vpop.xlane.xlu0 %1565
      %v1567 = vadd.f32 %v1413, %v1414
      %1568 = vadd.xlane.f32.xlu0 %v1567
      %v1569 = vpop.xlane.xlu0 %1568
      %v1570 = vadd.f32 %v1415, %v1416
      %1571 = vadd.xlane.f32.xlu0 %v1570
      %v1572 = vpop.xlane.xlu0 %1571
      %v1573 = vadd.f32 %v1417, %v1418
      %1574 = vadd.xlane.f32.xlu0 %v1573
      %v1575 = vpop.xlane.xlu0 %1574
      %v1576 = vadd.f32 %v1419, %v1420
      %1577 = vadd.xlane.f32.xlu0 %v1576
      %v1578 = vpop.xlane.xlu0 %1577
      %v1579 = vadd.f32 %v1421, %v1422
      %1580 = vadd.xlane.f32.xlu0 %v1579
      %v1581 = vpop.xlane.xlu0 %1580
      %v1582 = vadd.f32 %v1423, %v1424
      %1583 = vadd.xlane.f32.xlu0 %v1582
      %v1584 = vpop.xlane.xlu0 %1583
      %v1585 = vadd.f32 %v1457, %v1491
      %v1586 = vadd.f32 %v1458, %v1494
      %v1587 = vadd.f32 %v1459, %v1497
      %v1588 = vadd.f32 %v1460, %v1500
      %v1589 = vadd.f32 %v1461, %v1503
      %v1590 = vadd.f32 %v1462, %v1506
      %v1591 = vadd.f32 %v1463, %v1509
      %v1592 = vadd.f32 %v1464, %v1512
      %v1593 = vadd.f32 %v1465, %v1515
      %v1594 = vadd.f32 %v1466, %v1518
      %v1595 = vadd.f32 %v1467, %v1521
      %v1596 = vadd.f32 %v1468, %v1524
      %v1597 = vadd.f32 %v1469, %v1527
      %v1598 = vadd.f32 %v1470, %v1530
      %v1599 = vadd.f32 %v1471, %v1533
      %v1600 = vadd.f32 %v1472, %v1536
      %v1601 = vadd.f32 %v1473, %v1539
      %v1602 = vadd.f32 %v1474, %v1542
      %v1603 = vadd.f32 %v1475, %v1545
      %v1604 = vadd.f32 %v1476, %v1548
      %v1605 = vadd.f32 %v1477, %v1551
      %v1606 = vadd.f32 %v1478, %v1554
      %v1607 = vadd.f32 %v1479, %v1557
      %v1608 = vadd.f32 %v1480, %v1560
      %v1609 = vadd.f32 %v1481, %v1563
      %v1610 = vadd.f32 %v1482, %v1566
      %v1611 = vadd.f32 %v1483, %v1569
      %v1612 = vadd.f32 %v1484, %v1572
      %v1613 = vadd.f32 %v1485, %v1575
      %v1614 = vadd.f32 %v1486, %v1578
      %v1615 = vadd.f32 %v1487, %v1581
      %v1616 = vadd.f32 %v1488, %v1584
      %vm1617 = vcmask 7168
      %1618 = vst.msk [vmem:[#allocation3] sm:$0xff] %vm1617, %v1585
      %1619 = vst.msk [vmem:[#allocation3 + $0x8] sm:$0xff] %vm1617, %v1586
      %1620 = vst.msk [vmem:[#allocation3 + $0x10] sm:$0xff] %vm1617, %v1587
      %1621 = vst.msk [vmem:[#allocation3 + $0x18] sm:$0xff] %vm1617, %v1588
      %1622 = vst.msk [vmem:[#allocation3 + $0x20] sm:$0xff] %vm1617, %v1589
      %1623 = vst.msk [vmem:[#allocation3 + $0x28] sm:$0xff] %vm1617, %v1590
      %1624 = vst.msk [vmem:[#allocation3 + $0x30] sm:$0xff] %vm1617, %v1591
      %1625 = vst.msk [vmem:[#allocation3 + $0x38] sm:$0xff] %vm1617, %v1592
      %1626 = vst.msk [vmem:[#allocation3 + $0x40] sm:$0xff] %vm1617, %v1593
      %1627 = vst.msk [vmem:[#allocation3 + $0x48] sm:$0xff] %vm1617, %v1594
      %1628 = vst.msk [vmem:[#allocation3 + $0x50] sm:$0xff] %vm1617, %v1595
      %1629 = vst.msk [vmem:[#allocation3 + $0x58] sm:$0xff] %vm1617, %v1596
      %1630 = vst.msk [vmem:[#allocation3 + $0x60] sm:$0xff] %vm1617, %v1597
      %1631 = vst.msk [vmem:[#allocation3 + $0x68] sm:$0xff] %vm1617, %v1598
      %1632 = vst.msk [vmem:[#allocation3 + $0x70] sm:$0xff] %vm1617, %v1599
      %1633 = vst.msk [vmem:[#allocation3 + $0x78] sm:$0xff] %vm1617, %v1600
      %1634 = vst.msk [vmem:[#allocation3 + $0x80] sm:$0xff] %vm1617, %v1601
      %1635 = vst.msk [vmem:[#allocation3 + $0x88] sm:$0xff] %vm1617, %v1602
      %1636 = vst.msk [vmem:[#allocation3 + $0x90] sm:$0xff] %vm1617, %v1603
      %1637 = vst.msk [vmem:[#allocation3 + $0x98] sm:$0xff] %vm1617, %v1604
      %1638 = vst.msk [vmem:[#allocation3 + $0xa0] sm:$0xff] %vm1617, %v1605
      %1639 = vst.msk [vmem:[#allocation3 + $0xa8] sm:$0xff] %vm1617, %v1606
      %1640 = vst.msk [vmem:[#allocation3 + $0xb0] sm:$0xff] %vm1617, %v1607
      %1641 = vst.msk [vmem:[#allocation3 + $0xb8] sm:$0xff] %vm1617, %v1608
      %1642 = vst.msk [vmem:[#allocation3 + $0xc0] sm:$0xff] %vm1617, %v1609
      %1643 = vst.msk [vmem:[#allocation3 + $0xc8] sm:$0xff] %vm1617, %v1610
      %1644 = vst.msk [vmem:[#allocation3 + $0xd0] sm:$0xff] %vm1617, %v1611
      %1645 = vst.msk [vmem:[#allocation3 + $0xd8] sm:$0xff] %vm1617, %v1612
      %1646 = vst.msk [vmem:[#allocation3 + $0xe0] sm:$0xff] %vm1617, %v1613
      %1647 = vst.msk [vmem:[#allocation3 + $0xe8] sm:$0xff] %vm1617, %v1614
      %1648 = vst.msk [vmem:[#allocation3 + $0xf0] sm:$0xff] %vm1617, %v1615
      %1649 = vst.msk [vmem:[#allocation3 + $0xf8] sm:$0xff] %vm1617, %v1616
      %v1650 = vld [vmem:[#allocation4] sm:$0xff]
      %v1651 = vld [vmem:[#allocation4 + $0x8] sm:$0xff]
      %v1652 = vld [vmem:[#allocation4 + $0x10] sm:$0xff]
      %v1653 = vld [vmem:[#allocation4 + $0x18] sm:$0xff]
      %v1654 = vld [vmem:[#allocation4 + $0x20] sm:$0xff]
      %v1655 = vld [vmem:[#allocation4 + $0x28] sm:$0xff]
      %v1656 = vld [vmem:[#allocation4 + $0x30] sm:$0xff]
      %v1657 = vld [vmem:[#allocation4 + $0x38] sm:$0xff]
      %v1658 = vld [vmem:[#allocation4 + $0x40] sm:$0xff]
      %v1659 = vld [vmem:[#allocation4 + $0x48] sm:$0xff]
      %v1660 = vld [vmem:[#allocation4 + $0x50] sm:$0xff]
      %v1661 = vld [vmem:[#allocation4 + $0x58] sm:$0xff]
      %v1662 = vld [vmem:[#allocation4 + $0x60] sm:$0xff]
      %v1663 = vld [vmem:[#allocation4 + $0x68] sm:$0xff]
      %v1664 = vld [vmem:[#allocation4 + $0x70] sm:$0xff]
      %v1665 = vld [vmem:[#allocation4 + $0x78] sm:$0xff]
      %v1666 = vld [vmem:[#allocation4 + $0x80] sm:$0xff]
      %v1667 = vld [vmem:[#allocation4 + $0x88] sm:$0xff]
      %v1668 = vld [vmem:[#allocation4 + $0x90] sm:$0xff]
      %v1669 = vld [vmem:[#allocation4 + $0x98] sm:$0xff]
      %v1670 = vld [vmem:[#allocation4 + $0xa0] sm:$0xff]
      %v1671 = vld [vmem:[#allocation4 + $0xa8] sm:$0xff]
      %v1672 = vld [vmem:[#allocation4 + $0xb0] sm:$0xff]
      %v1673 = vld [vmem:[#allocation4 + $0xb8] sm:$0xff]
      %v1674 = vld [vmem:[#allocation4 + $0xc0] sm:$0xff]
      %v1675 = vld [vmem:[#allocation4 + $0xc8] sm:$0xff]
      %v1676 = vld [vmem:[#allocation4 + $0xd0] sm:$0xff]
      %v1677 = vld [vmem:[#allocation4 + $0xd8] sm:$0xff]
      %v1678 = vld [vmem:[#allocation4 + $0xe0] sm:$0xff]
      %v1679 = vld [vmem:[#allocation4 + $0xe8] sm:$0xff]
      %v1680 = vld [vmem:[#allocation4 + $0xf0] sm:$0xff]
      %v1681 = vld [vmem:[#allocation4 + $0xf8] sm:$0xff]
      %1683 = vset.pattern.permute.xlu0 0
      %1684 = vperm.xlu0 %1683, %v1105
      %v1685 = vpop.permute.xlu0 %1684
      %1688 = vset.pattern.permute.xlu0 0
      %1689 = vperm.xlu0 %1688, %v1106
      %v1690 = vpop.permute.xlu0 %1689
      %1693 = vset.pattern.permute.xlu0 0
      %1694 = vperm.xlu0 %1693, %v1107
      %v1695 = vpop.permute.xlu0 %1694
      %1698 = vset.pattern.permute.xlu0 0
      %1699 = vperm.xlu0 %1698, %v1108
      %v1700 = vpop.permute.xlu0 %1699
      %1703 = vset.pattern.permute.xlu0 0
      %1704 = vperm.xlu0 %1703, %v1109
      %v1705 = vpop.permute.xlu0 %1704
      %1708 = vset.pattern.permute.xlu0 0
      %1709 = vperm.xlu0 %1708, %v1110
      %v1710 = vpop.permute.xlu0 %1709
      %1713 = vset.pattern.permute.xlu0 0
      %1714 = vperm.xlu0 %1713, %v1111
      %v1715 = vpop.permute.xlu0 %1714
      %1718 = vset.pattern.permute.xlu0 0
      %1719 = vperm.xlu0 %1718, %v1112
      %v1720 = vpop.permute.xlu0 %1719
      %1723 = vset.pattern.permute.xlu0 0
      %1724 = vperm.xlu0 %1723, %v1113
      %v1725 = vpop.permute.xlu0 %1724
      %1728 = vset.pattern.permute.xlu0 0
      %1729 = vperm.xlu0 %1728, %v1114
      %v1730 = vpop.permute.xlu0 %1729
      %1733 = vset.pattern.permute.xlu0 0
      %1734 = vperm.xlu0 %1733, %v1115
      %v1735 = vpop.permute.xlu0 %1734
      %1738 = vset.pattern.permute.xlu0 0
      %1739 = vperm.xlu0 %1738, %v1116
      %v1740 = vpop.permute.xlu0 %1739
      %1743 = vset.pattern.permute.xlu0 0
      %1744 = vperm.xlu0 %1743, %v1117
      %v1745 = vpop.permute.xlu0 %1744
      %1748 = vset.pattern.permute.xlu0 0
      %1749 = vperm.xlu0 %1748, %v1118
      %v1750 = vpop.permute.xlu0 %1749
      %1753 = vset.pattern.permute.xlu0 0
      %1754 = vperm.xlu0 %1753, %v1119
      %v1755 = vpop.permute.xlu0 %1754
      %1758 = vset.pattern.permute.xlu0 0
      %1759 = vperm.xlu0 %1758, %v1120
      %v1760 = vpop.permute.xlu0 %1759
      %1763 = vset.pattern.permute.xlu0 0
      %1764 = vperm.xlu0 %1763, %v1121
      %v1765 = vpop.permute.xlu0 %1764
      %1768 = vset.pattern.permute.xlu0 0
      %1769 = vperm.xlu0 %1768, %v1122
      %v1770 = vpop.permute.xlu0 %1769
      %1773 = vset.pattern.permute.xlu0 0
      %1774 = vperm.xlu0 %1773, %v1123
      %v1775 = vpop.permute.xlu0 %1774
      %1778 = vset.pattern.permute.xlu0 0
      %1779 = vperm.xlu0 %1778, %v1124
      %v1780 = vpop.permute.xlu0 %1779
      %1783 = vset.pattern.permute.xlu0 0
      %1784 = vperm.xlu0 %1783, %v1125
      %v1785 = vpop.permute.xlu0 %1784
      %1788 = vset.pattern.permute.xlu0 0
      %1789 = vperm.xlu0 %1788, %v1126
      %v1790 = vpop.permute.xlu0 %1789
      %1793 = vset.pattern.permute.xlu0 0
      %1794 = vperm.xlu0 %1793, %v1127
      %v1795 = vpop.permute.xlu0 %1794
      %1798 = vset.pattern.permute.xlu0 0
      %1799 = vperm.xlu0 %1798, %v1128
      %v1800 = vpop.permute.xlu0 %1799
      %1803 = vset.pattern.permute.xlu0 0
      %1804 = vperm.xlu0 %1803, %v1129
      %v1805 = vpop.permute.xlu0 %1804
      %1808 = vset.pattern.permute.xlu0 0
      %1809 = vperm.xlu0 %1808, %v1130
      %v1810 = vpop.permute.xlu0 %1809
      %1813 = vset.pattern.permute.xlu0 0
      %1814 = vperm.xlu0 %1813, %v1131
      %v1815 = vpop.permute.xlu0 %1814
      %1818 = vset.pattern.permute.xlu0 0
      %1819 = vperm.xlu0 %1818, %v1132
      %v1820 = vpop.permute.xlu0 %1819
      %1823 = vset.pattern.permute.xlu0 0
      %1824 = vperm.xlu0 %1823, %v1133
      %v1825 = vpop.permute.xlu0 %1824
      %1828 = vset.pattern.permute.xlu0 0
      %1829 = vperm.xlu0 %1828, %v1134
      %v1830 = vpop.permute.xlu0 %1829
      %1833 = vset.pattern.permute.xlu0 0
      %1834 = vperm.xlu0 %1833, %v1135
      %v1835 = vpop.permute.xlu0 %1834
      %1838 = vset.pattern.permute.xlu0 0
      %1839 = vperm.xlu0 %1838, %v1136
      %v1840 = vpop.permute.xlu0 %1839
      %v1842 = vmul.f32 %v1685, %v1650
      %v1843 = vmul.f32 %v1690, %v1651
      %v1844 = vmul.f32 %v1695, %v1652
      %v1845 = vmul.f32 %v1700, %v1653
      %v1846 = vmul.f32 %v1705, %v1654
      %v1847 = vmul.f32 %v1710, %v1655
      %v1848 = vmul.f32 %v1715, %v1656
      %v1849 = vmul.f32 %v1720, %v1657
      %v1850 = vmul.f32 %v1725, %v1658
      %v1851 = vmul.f32 %v1730, %v1659
      %v1852 = vmul.f32 %v1735, %v1660
      %v1853 = vmul.f32 %v1740, %v1661
      %v1854 = vmul.f32 %v1745, %v1662
      %v1855 = vmul.f32 %v1750, %v1663
      %v1856 = vmul.f32 %v1755, %v1664
      %v1857 = vmul.f32 %v1760, %v1665
      %v1858 = vmul.f32 %v1765, %v1666
      %v1859 = vmul.f32 %v1770, %v1667
      %v1860 = vmul.f32 %v1775, %v1668
      %v1861 = vmul.f32 %v1780, %v1669
      %v1862 = vmul.f32 %v1785, %v1670
      %v1863 = vmul.f32 %v1790, %v1671
      %v1864 = vmul.f32 %v1795, %v1672
      %v1865 = vmul.f32 %v1800, %v1673
      %v1866 = vmul.f32 %v1805, %v1674
      %v1867 = vmul.f32 %v1810, %v1675
      %v1868 = vmul.f32 %v1815, %v1676
      %v1869 = vmul.f32 %v1820, %v1677
      %v1870 = vmul.f32 %v1825, %v1678
      %v1871 = vmul.f32 %v1830, %v1679
      %v1872 = vmul.f32 %v1835, %v1680
      %v1873 = vmul.f32 %v1840, %v1681
      %v1874 = vpack.c.bf16 %v1363, %v1361
      %v1875 = vpack.c.bf16 %v1364, %v1362
      %v1876 = vpack.c.bf16 %v1367, %v1365
      %v1877 = vpack.c.bf16 %v1368, %v1366
      %v1878 = vpack.c.bf16 %v1371, %v1369
      %v1879 = vpack.c.bf16 %v1372, %v1370
      %v1880 = vpack.c.bf16 %v1375, %v1373
      %v1881 = vpack.c.bf16 %v1376, %v1374
      %v1882 = vpack.c.bf16 %v1379, %v1377
      %v1883 = vpack.c.bf16 %v1380, %v1378
      %v1884 = vpack.c.bf16 %v1383, %v1381
      %v1885 = vpack.c.bf16 %v1384, %v1382
      %v1886 = vpack.c.bf16 %v1387, %v1385
      %v1887 = vpack.c.bf16 %v1388, %v1386
      %v1888 = vpack.c.bf16 %v1391, %v1389
      %v1889 = vpack.c.bf16 %v1392, %v1390
      %v1890 = vpack.c.bf16 %v1395, %v1393
      %v1891 = vpack.c.bf16 %v1396, %v1394
      %v1892 = vpack.c.bf16 %v1399, %v1397
      %v1893 = vpack.c.bf16 %v1400, %v1398
      %v1894 = vpack.c.bf16 %v1403, %v1401
      %v1895 = vpack.c.bf16 %v1404, %v1402
      %v1896 = vpack.c.bf16 %v1407, %v1405
      %v1897 = vpack.c.bf16 %v1408, %v1406
      %v1898 = vpack.c.bf16 %v1411, %v1409
      %v1899 = vpack.c.bf16 %v1412, %v1410
      %v1900 = vpack.c.bf16 %v1415, %v1413
      %v1901 = vpack.c.bf16 %v1416, %v1414
      %v1902 = vpack.c.bf16 %v1419, %v1417
      %v1903 = vpack.c.bf16 %v1420, %v1418
      %v1904 = vpack.c.bf16 %v1423, %v1421
      %v1905 = vpack.c.bf16 %v1424, %v1422
      %v1938 = vunpack.c.l.b16 %v511
      %v1939 = vunpack.c.l.b16 %v512
      %v1940 = vunpack.c.l.b16 %v513
      %v1941 = vunpack.c.l.b16 %v514
      %v1942 = vunpack.c.l.b16 %v515
      %v1943 = vunpack.c.l.b16 %v516
      %v1944 = vunpack.c.l.b16 %v517
      %v1945 = vunpack.c.l.b16 %v518
      %v1946 = vunpack.c.l.b16 %v519
      %v1947 = vunpack.c.l.b16 %v520
      %v1948 = vunpack.c.l.b16 %v521
      %v1949 = vunpack.c.l.b16 %v522
      %v1950 = vunpack.c.l.b16 %v523
      %v1951 = vunpack.c.l.b16 %v524
      %v1952 = vunpack.c.l.b16 %v525
      %v1953 = vunpack.c.l.b16 %v526
      %v1954 = vunpack.c.l.b16 %v527
      %v1955 = vunpack.c.l.b16 %v528
      %v1956 = vunpack.c.l.b16 %v529
      %v1957 = vunpack.c.l.b16 %v530
      %v1958 = vunpack.c.l.b16 %v531
      %v1959 = vunpack.c.l.b16 %v532
      %v1960 = vunpack.c.l.b16 %v533
      %v1961 = vunpack.c.l.b16 %v534
      %v1962 = vunpack.c.l.b16 %v535
      %v1963 = vunpack.c.l.b16 %v536
      %v1964 = vunpack.c.l.b16 %v537
      %v1965 = vunpack.c.l.b16 %v538
      %v1966 = vunpack.c.l.b16 %v539
      %v1967 = vunpack.c.l.b16 %v540
      %v1968 = vunpack.c.l.b16 %v541
      %v1969 = vunpack.c.l.b16 %v542
      %v1970 = vpack.c.b16 %v1939, %v1938
      %v1971 = vpack.c.b16 %v1941, %v1940
      %v1972 = vpack.c.b16 %v1943, %v1942
      %v1973 = vpack.c.b16 %v1945, %v1944
      %v1974 = vpack.c.b16 %v1947, %v1946
      %v1975 = vpack.c.b16 %v1949, %v1948
      %v1976 = vpack.c.b16 %v1951, %v1950
      %v1977 = vpack.c.b16 %v1953, %v1952
      %v1978 = vpack.c.b16 %v1955, %v1954
      %v1979 = vpack.c.b16 %v1957, %v1956
      %v1980 = vpack.c.b16 %v1959, %v1958
      %v1981 = vpack.c.b16 %v1961, %v1960
      %v1982 = vpack.c.b16 %v1963, %v1962
      %v1983 = vpack.c.b16 %v1965, %v1964
      %v1984 = vpack.c.b16 %v1967, %v1966
      %v1985 = vpack.c.b16 %v1969, %v1968
      %2002 = vmatpush.bf16.msra.mxu0 %v1977
      %2003 = vmatpush.bf16.msra.mxu0 %v1976
      %2004 = vmatpush.bf16.msra.mxu0 %v1975
      %2005 = vmatpush.bf16.msra.mxu0 %v1974
      %2006 = vmatpush.bf16.msra.mxu0 %v1973
      %2007 = vmatpush.bf16.msra.mxu0 %v1972
      %2008 = vmatpush.bf16.msra.mxu0 %v1971
      %2009 = vmatpush.bf16.msra.mxu0 %v1970
      %2010 = vmatmul.bf16.gmra.mxu0 %v1874
      %v2011 = vpop.f32.mrf.mxu0
      %v2012 = vadd.f32 0.0, %v2011
      %v2013 = vpop.f32.mrf.mxu0
      %v2014 = vadd.f32 0.0, %v2013
      %2015 = vmatmul.bf16.gmra.mxu0 %v1876
      %v2016 = vpop.f32.mrf.mxu0
      %v2017 = vadd.f32 0.0, %v2016
      %v2018 = vpop.f32.mrf.mxu0
      %v2019 = vadd.f32 0.0, %v2018
      %2020 = vmatmul.bf16.gmra.mxu0 %v1878
      %v2021 = vpop.f32.mrf.mxu0
      %v2022 = vadd.f32 0.0, %v2021
      %v2023 = vpop.f32.mrf.mxu0
      %v2024 = vadd.f32 0.0, %v2023
      %2025 = vmatmul.bf16.gmra.mxu0 %v1880
      %v2026 = vpop.f32.mrf.mxu0
      %v2027 = vadd.f32 0.0, %v2026
      %v2028 = vpop.f32.mrf.mxu0
      %v2029 = vadd.f32 0.0, %v2028
      %2030 = vmatmul.bf16.gmra.mxu0 %v1882
      %v2031 = vpop.f32.mrf.mxu0
      %v2032 = vadd.f32 0.0, %v2031
      %v2033 = vpop.f32.mrf.mxu0
      %v2034 = vadd.f32 0.0, %v2033
      %2035 = vmatmul.bf16.gmra.mxu0 %v1884
      %v2036 = vpop.f32.mrf.mxu0
      %v2037 = vadd.f32 0.0, %v2036
      %v2038 = vpop.f32.mrf.mxu0
      %v2039 = vadd.f32 0.0, %v2038
      %2040 = vmatmul.bf16.gmra.mxu0 %v1886
      %v2041 = vpop.f32.mrf.mxu0
      %v2042 = vadd.f32 0.0, %v2041
      %v2043 = vpop.f32.mrf.mxu0
      %v2044 = vadd.f32 0.0, %v2043
      %2045 = vmatmul.bf16.gmra.mxu0 %v1888
      %v2046 = vpop.f32.mrf.mxu0
      %v2047 = vadd.f32 0.0, %v2046
      %v2048 = vpop.f32.mrf.mxu0
      %v2049 = vadd.f32 0.0, %v2048
      %2050 = vmatmul.bf16.gmra.mxu0 %v1890
      %v2051 = vpop.f32.mrf.mxu0
      %v2052 = vadd.f32 0.0, %v2051
      %v2053 = vpop.f32.mrf.mxu0
      %v2054 = vadd.f32 0.0, %v2053
      %2055 = vmatmul.bf16.gmra.mxu0 %v1892
      %v2056 = vpop.f32.mrf.mxu0
      %v2057 = vadd.f32 0.0, %v2056
      %v2058 = vpop.f32.mrf.mxu0
      %v2059 = vadd.f32 0.0, %v2058
      %2060 = vmatmul.bf16.gmra.mxu0 %v1894
      %v2061 = vpop.f32.mrf.mxu0
      %v2062 = vadd.f32 0.0, %v2061
      %v2063 = vpop.f32.mrf.mxu0
      %v2064 = vadd.f32 0.0, %v2063
      %2065 = vmatmul.bf16.gmra.mxu0 %v1896
      %v2066 = vpop.f32.mrf.mxu0
      %v2067 = vadd.f32 0.0, %v2066
      %v2068 = vpop.f32.mrf.mxu0
      %v2069 = vadd.f32 0.0, %v2068
      %2070 = vmatmul.bf16.gmra.mxu0 %v1898
      %v2071 = vpop.f32.mrf.mxu0
      %v2072 = vadd.f32 0.0, %v2071
      %v2073 = vpop.f32.mrf.mxu0
      %v2074 = vadd.f32 0.0, %v2073
      %2075 = vmatmul.bf16.gmra.mxu0 %v1900
      %v2076 = vpop.f32.mrf.mxu0
      %v2077 = vadd.f32 0.0, %v2076
      %v2078 = vpop.f32.mrf.mxu0
      %v2079 = vadd.f32 0.0, %v2078
      %2080 = vmatmul.bf16.gmra.mxu0 %v1902
      %v2081 = vpop.f32.mrf.mxu0
      %v2082 = vadd.f32 0.0, %v2081
      %v2083 = vpop.f32.mrf.mxu0
      %v2084 = vadd.f32 0.0, %v2083
      %2085 = vmatmul.bf16.gmra.mxu0 %v1904
      %v2086 = vpop.f32.mrf.mxu0
      %v2087 = vadd.f32 0.0, %v2086
      %v2088 = vpop.f32.mrf.mxu0
      %v2089 = vadd.f32 0.0, %v2088
      %2090 = vdwg.mxu0
      %2091 = vmatpush.bf16.msra.mxu0 %v1985
      %2092 = vmatpush.bf16.msra.mxu0 %v1984
      %2093 = vmatpush.bf16.msra.mxu0 %v1983
      %2094 = vmatpush.bf16.msra.mxu0 %v1982
      %2095 = vmatpush.bf16.msra.mxu0 %v1981
      %2096 = vmatpush.bf16.msra.mxu0 %v1980
      %2097 = vmatpush.bf16.msra.mxu0 %v1979
      %2098 = vmatpush.bf16.msra.mxu0 %v1978
      %2099 = vmatmul.bf16.gmra.mxu0 %v1875
      %v2100 = vpop.f32.mrf.mxu0
      %v2101 = vadd.f32 %v2012, %v2100
      %v2102 = vpop.f32.mrf.mxu0
      %v2103 = vadd.f32 %v2014, %v2102
      %2104 = vmatmul.bf16.gmra.mxu0 %v1877
      %v2105 = vpop.f32.mrf.mxu0
      %v2106 = vadd.f32 %v2017, %v2105
      %v2107 = vpop.f32.mrf.mxu0
      %v2108 = vadd.f32 %v2019, %v2107
      %2109 = vmatmul.bf16.gmra.mxu0 %v1879
      %v2110 = vpop.f32.mrf.mxu0
      %v2111 = vadd.f32 %v2022, %v2110
      %v2112 = vpop.f32.mrf.mxu0
      %v2113 = vadd.f32 %v2024, %v2112
      %2114 = vmatmul.bf16.gmra.mxu0 %v1881
      %v2115 = vpop.f32.mrf.mxu0
      %v2116 = vadd.f32 %v2027, %v2115
      %v2117 = vpop.f32.mrf.mxu0
      %v2118 = vadd.f32 %v2029, %v2117
      %2119 = vmatmul.bf16.gmra.mxu0 %v1883
      %v2120 = vpop.f32.mrf.mxu0
      %v2121 = vadd.f32 %v2032, %v2120
      %v2122 = vpop.f32.mrf.mxu0
      %v2123 = vadd.f32 %v2034, %v2122
      %2124 = vmatmul.bf16.gmra.mxu0 %v1885
      %v2125 = vpop.f32.mrf.mxu0
      %v2126 = vadd.f32 %v2037, %v2125
      %v2127 = vpop.f32.mrf.mxu0
      %v2128 = vadd.f32 %v2039, %v2127
      %2129 = vmatmul.bf16.gmra.mxu0 %v1887
      %v2130 = vpop.f32.mrf.mxu0
      %v2131 = vadd.f32 %v2042, %v2130
      %v2132 = vpop.f32.mrf.mxu0
      %v2133 = vadd.f32 %v2044, %v2132
      %2134 = vmatmul.bf16.gmra.mxu0 %v1889
      %v2135 = vpop.f32.mrf.mxu0
      %v2136 = vadd.f32 %v2047, %v2135
      %v2137 = vpop.f32.mrf.mxu0
      %v2138 = vadd.f32 %v2049, %v2137
      %2139 = vmatmul.bf16.gmra.mxu0 %v1891
      %v2140 = vpop.f32.mrf.mxu0
      %v2141 = vadd.f32 %v2052, %v2140
      %v2142 = vpop.f32.mrf.mxu0
      %v2143 = vadd.f32 %v2054, %v2142
      %2144 = vmatmul.bf16.gmra.mxu0 %v1893
      %v2145 = vpop.f32.mrf.mxu0
      %v2146 = vadd.f32 %v2057, %v2145
      %v2147 = vpop.f32.mrf.mxu0
      %v2148 = vadd.f32 %v2059, %v2147
      %2149 = vmatmul.bf16.gmra.mxu0 %v1895
      %v2150 = vpop.f32.mrf.mxu0
      %v2151 = vadd.f32 %v2062, %v2150
      %v2152 = vpop.f32.mrf.mxu0
      %v2153 = vadd.f32 %v2064, %v2152
      %2154 = vmatmul.bf16.gmra.mxu0 %v1897
      %v2155 = vpop.f32.mrf.mxu0
      %v2156 = vadd.f32 %v2067, %v2155
      %v2157 = vpop.f32.mrf.mxu0
      %v2158 = vadd.f32 %v2069, %v2157
      %2159 = vmatmul.bf16.gmra.mxu0 %v1899
      %v2160 = vpop.f32.mrf.mxu0
      %v2161 = vadd.f32 %v2072, %v2160
      %v2162 = vpop.f32.mrf.mxu0
      %v2163 = vadd.f32 %v2074, %v2162
      %2164 = vmatmul.bf16.gmra.mxu0 %v1901
      %v2165 = vpop.f32.mrf.mxu0
      %v2166 = vadd.f32 %v2077, %v2165
      %v2167 = vpop.f32.mrf.mxu0
      %v2168 = vadd.f32 %v2079, %v2167
      %2169 = vmatmul.bf16.gmra.mxu0 %v1903
      %v2170 = vpop.f32.mrf.mxu0
      %v2171 = vadd.f32 %v2082, %v2170
      %v2172 = vpop.f32.mrf.mxu0
      %v2173 = vadd.f32 %v2084, %v2172
      %2174 = vmatmul.bf16.gmra.mxu0 %v1905
      %v2175 = vpop.f32.mrf.mxu0
      %v2176 = vadd.f32 %v2087, %v2175
      %v2177 = vpop.f32.mrf.mxu0
      %v2178 = vadd.f32 %v2089, %v2177
      %2179 = vdwg.mxu0
      %v2180 = vadd.f32 %v1842, %v2101
      %v2181 = vadd.f32 %v1843, %v2103
      %v2182 = vadd.f32 %v1844, %v2106
      %v2183 = vadd.f32 %v1845, %v2108
      %v2184 = vadd.f32 %v1846, %v2111
      %v2185 = vadd.f32 %v1847, %v2113
      %v2186 = vadd.f32 %v1848, %v2116
      %v2187 = vadd.f32 %v1849, %v2118
      %v2188 = vadd.f32 %v1850, %v2121
      %v2189 = vadd.f32 %v1851, %v2123
      %v2190 = vadd.f32 %v1852, %v2126
      %v2191 = vadd.f32 %v1853, %v2128
      %v2192 = vadd.f32 %v1854, %v2131
      %v2193 = vadd.f32 %v1855, %v2133
      %v2194 = vadd.f32 %v1856, %v2136
      %v2195 = vadd.f32 %v1857, %v2138
      %v2196 = vadd.f32 %v1858, %v2141
      %v2197 = vadd.f32 %v1859, %v2143
      %v2198 = vadd.f32 %v1860, %v2146
      %v2199 = vadd.f32 %v1861, %v2148
      %v2200 = vadd.f32 %v1862, %v2151
      %v2201 = vadd.f32 %v1863, %v2153
      %v2202 = vadd.f32 %v1864, %v2156
      %v2203 = vadd.f32 %v1865, %v2158
      %v2204 = vadd.f32 %v1866, %v2161
      %v2205 = vadd.f32 %v1867, %v2163
      %v2206 = vadd.f32 %v1868, %v2166
      %v2207 = vadd.f32 %v1869, %v2168
      %v2208 = vadd.f32 %v1870, %v2171
      %v2209 = vadd.f32 %v1871, %v2173
      %v2210 = vadd.f32 %v1872, %v2176
      %v2211 = vadd.f32 %v1873, %v2178
      %2212 = vst [vmem:[#allocation4] sm:$0xff] %v2180
      %2213 = vst [vmem:[#allocation4 + $0x8] sm:$0xff] %v2181
      %2214 = vst [vmem:[#allocation4 + $0x10] sm:$0xff] %v2182
      %2215 = vst [vmem:[#allocation4 + $0x18] sm:$0xff] %v2183
      %2216 = vst [vmem:[#allocation4 + $0x20] sm:$0xff] %v2184
      %2217 = vst [vmem:[#allocation4 + $0x28] sm:$0xff] %v2185
      %2218 = vst [vmem:[#allocation4 + $0x30] sm:$0xff] %v2186
      %2219 = vst [vmem:[#allocation4 + $0x38] sm:$0xff] %v2187
      %2220 = vst [vmem:[#allocation4 + $0x40] sm:$0xff] %v2188
      %2221 = vst [vmem:[#allocation4 + $0x48] sm:$0xff] %v2189
      %2222 = vst [vmem:[#allocation4 + $0x50] sm:$0xff] %v2190
      %2223 = vst [vmem:[#allocation4 + $0x58] sm:$0xff] %v2191
      %2224 = vst [vmem:[#allocation4 + $0x60] sm:$0xff] %v2192
      %2225 = vst [vmem:[#allocation4 + $0x68] sm:$0xff] %v2193
      %2226 = vst [vmem:[#allocation4 + $0x70] sm:$0xff] %v2194
      %2227 = vst [vmem:[#allocation4 + $0x78] sm:$0xff] %v2195
      %2228 = vst [vmem:[#allocation4 + $0x80] sm:$0xff] %v2196
      %2229 = vst [vmem:[#allocation4 + $0x88] sm:$0xff] %v2197
      %2230 = vst [vmem:[#allocation4 + $0x90] sm:$0xff] %v2198
      %2231 = vst [vmem:[#allocation4 + $0x98] sm:$0xff] %v2199
      %2232 = vst [vmem:[#allocation4 + $0xa0] sm:$0xff] %v2200
      %2233 = vst [vmem:[#allocation4 + $0xa8] sm:$0xff] %v2201
      %2234 = vst [vmem:[#allocation4 + $0xb0] sm:$0xff] %v2202
      %2235 = vst [vmem:[#allocation4 + $0xb8] sm:$0xff] %v2203
      %2236 = vst [vmem:[#allocation4 + $0xc0] sm:$0xff] %v2204
      %2237 = vst [vmem:[#allocation4 + $0xc8] sm:$0xff] %v2205
      %2238 = vst [vmem:[#allocation4 + $0xd0] sm:$0xff] %v2206
      %2239 = vst [vmem:[#allocation4 + $0xd8] sm:$0xff] %v2207
      %2240 = vst [vmem:[#allocation4 + $0xe0] sm:$0xff] %v2208
      %2241 = vst [vmem:[#allocation4 + $0xe8] sm:$0xff] %v2209
      %2242 = vst [vmem:[#allocation4 + $0xf0] sm:$0xff] %v2210
      %2243 = vst [vmem:[#allocation4 + $0xf8] sm:$0xff] %v2211
      %2244 = vst.msk [vmem:[#allocation2] sm:$0xff] %vm1617, %v1041
      %2245 = vst.msk [vmem:[#allocation2 + $0x8] sm:$0xff] %vm1617, %v1042
      %2246 = vst.msk [vmem:[#allocation2 + $0x10] sm:$0xff] %vm1617, %v1043
      %2247 = vst.msk [vmem:[#allocation2 + $0x18] sm:$0xff] %vm1617, %v1044
      %2248 = vst.msk [vmem:[#allocation2 + $0x20] sm:$0xff] %vm1617, %v1045
      %2249 = vst.msk [vmem:[#allocation2 + $0x28] sm:$0xff] %vm1617, %v1046
      %2250 = vst.msk [vmem:[#allocation2 + $0x30] sm:$0xff] %vm1617, %v1047
      %2251 = vst.msk [vmem:[#allocation2 + $0x38] sm:$0xff] %vm1617, %v1048
      %2252 = vst.msk [vmem:[#allocation2 + $0x40] sm:$0xff] %vm1617, %v1049
      %2253 = vst.msk [vmem:[#allocation2 + $0x48] sm:$0xff] %vm1617, %v1050
      %2254 = vst.msk [vmem:[#allocation2 + $0x50] sm:$0xff] %vm1617, %v1051
      %2255 = vst.msk [vmem:[#allocation2 + $0x58] sm:$0xff] %vm1617, %v1052
      %2256 = vst.msk [vmem:[#allocation2 + $0x60] sm:$0xff] %vm1617, %v1053
      %2257 = vst.msk [vmem:[#allocation2 + $0x68] sm:$0xff] %vm1617, %v1054
      %2258 = vst.msk [vmem:[#allocation2 + $0x70] sm:$0xff] %vm1617, %v1055
      %2259 = vst.msk [vmem:[#allocation2 + $0x78] sm:$0xff] %vm1617, %v1056
      %2260 = vst.msk [vmem:[#allocation2 + $0x80] sm:$0xff] %vm1617, %v1057
      %2261 = vst.msk [vmem:[#allocation2 + $0x88] sm:$0xff] %vm1617, %v1058
      %2262 = vst.msk [vmem:[#allocation2 + $0x90] sm:$0xff] %vm1617, %v1059
      %2263 = vst.msk [vmem:[#allocation2 + $0x98] sm:$0xff] %vm1617, %v1060
      %2264 = vst.msk [vmem:[#allocation2 + $0xa0] sm:$0xff] %vm1617, %v1061
      %2265 = vst.msk [vmem:[#allocation2 + $0xa8] sm:$0xff] %vm1617, %v1062
      %2266 = vst.msk [vmem:[#allocation2 + $0xb0] sm:$0xff] %vm1617, %v1063
      %2267 = vst.msk [vmem:[#allocation2 + $0xb8] sm:$0xff] %vm1617, %v1064
      %2268 = vst.msk [vmem:[#allocation2 + $0xc0] sm:$0xff] %vm1617, %v1065
      %2269 = vst.msk [vmem:[#allocation2 + $0xc8] sm:$0xff] %vm1617, %v1066
      %2270 = vst.msk [vmem:[#allocation2 + $0xd0] sm:$0xff] %vm1617, %v1067
      %2271 = vst.msk [vmem:[#allocation2 + $0xd8] sm:$0xff] %vm1617, %v1068
      %2272 = vst.msk [vmem:[#allocation2 + $0xe0] sm:$0xff] %vm1617, %v1069
      %2273 = vst.msk [vmem:[#allocation2 + $0xe8] sm:$0xff] %vm1617, %v1070
      %2274 = vst.msk [vmem:[#allocation2 + $0xf0] sm:$0xff] %vm1617, %v1071
      %2275 = vst.msk [vmem:[#allocation2 + $0xf8] sm:$0xff] %vm1617, %v1072
      // Predicated region
      $region45: #{attn_block.5} parent=39 // pred_check
        %p2276 = pneg %p346
      $region46: #{attn_block.5} parent=39 // pred_check_branch
        %2278 = sbr.rel (%p2276) target = $region48
      $region47: #{attn_block.5} parent=39 // pred_region
        %v2279 = vld [vmem:[#allocation4] sm:$0xff]
        %v2280 = vld [vmem:[#allocation4 + $0x8] sm:$0xff]
        %v2281 = vld [vmem:[#allocation4 + $0x10] sm:$0xff]
        %v2282 = vld [vmem:[#allocation4 + $0x18] sm:$0xff]
        %v2283 = vld [vmem:[#allocation4 + $0x20] sm:$0xff]
        %v2284 = vld [vmem:[#allocation4 + $0x28] sm:$0xff]
        %v2285 = vld [vmem:[#allocation4 + $0x30] sm:$0xff]
        %v2286 = vld [vmem:[#allocation4 + $0x38] sm:$0xff]
        %v2287 = vld [vmem:[#allocation4 + $0x40] sm:$0xff]
        %v2288 = vld [vmem:[#allocation4 + $0x48] sm:$0xff]
        %v2289 = vld [vmem:[#allocation4 + $0x50] sm:$0xff]
        %v2290 = vld [vmem:[#allocation4 + $0x58] sm:$0xff]
        %v2291 = vld [vmem:[#allocation4 + $0x60] sm:$0xff]
        %v2292 = vld [vmem:[#allocation4 + $0x68] sm:$0xff]
        %v2293 = vld [vmem:[#allocation4 + $0x70] sm:$0xff]
        %v2294 = vld [vmem:[#allocation4 + $0x78] sm:$0xff]
        %v2295 = vld [vmem:[#allocation4 + $0x80] sm:$0xff]
        %v2296 = vld [vmem:[#allocation4 + $0x88] sm:$0xff]
        %v2297 = vld [vmem:[#allocation4 + $0x90] sm:$0xff]
        %v2298 = vld [vmem:[#allocation4 + $0x98] sm:$0xff]
        %v2299 = vld [vmem:[#allocation4 + $0xa0] sm:$0xff]
        %v2300 = vld [vmem:[#allocation4 + $0xa8] sm:$0xff]
        %v2301 = vld [vmem:[#allocation4 + $0xb0] sm:$0xff]
        %v2302 = vld [vmem:[#allocation4 + $0xb8] sm:$0xff]
        %v2303 = vld [vmem:[#allocation4 + $0xc0] sm:$0xff]
        %v2304 = vld [vmem:[#allocation4 + $0xc8] sm:$0xff]
        %v2305 = vld [vmem:[#allocation4 + $0xd0] sm:$0xff]
        %v2306 = vld [vmem:[#allocation4 + $0xd8] sm:$0xff]
        %v2307 = vld [vmem:[#allocation4 + $0xe0] sm:$0xff]
        %v2308 = vld [vmem:[#allocation4 + $0xe8] sm:$0xff]
        %v2309 = vld [vmem:[#allocation4 + $0xf0] sm:$0xff]
        %v2310 = vld [vmem:[#allocation4 + $0xf8] sm:$0xff]
        %v2311 = vld [vmem:[#allocation3] sm:$0xff]
        %v2312 = vld [vmem:[#allocation3 + $0x8] sm:$0xff]
        %v2313 = vld [vmem:[#allocation3 + $0x10] sm:$0xff]
        %v2314 = vld [vmem:[#allocation3 + $0x18] sm:$0xff]
        %v2315 = vld [vmem:[#allocation3 + $0x20] sm:$0xff]
        %v2316 = vld [vmem:[#allocation3 + $0x28] sm:$0xff]
        %v2317 = vld [vmem:[#allocation3 + $0x30] sm:$0xff]
        %v2318 = vld [vmem:[#allocation3 + $0x38] sm:$0xff]
        %v2319 = vld [vmem:[#allocation3 + $0x40] sm:$0xff]
        %v2320 = vld [vmem:[#allocation3 + $0x48] sm:$0xff]
        %v2321 = vld [vmem:[#allocation3 + $0x50] sm:$0xff]
        %v2322 = vld [vmem:[#allocation3 + $0x58] sm:$0xff]
        %v2323 = vld [vmem:[#allocation3 + $0x60] sm:$0xff]
        %v2324 = vld [vmem:[#allocation3 + $0x68] sm:$0xff]
        %v2325 = vld [vmem:[#allocation3 + $0x70] sm:$0xff]
        %v2326 = vld [vmem:[#allocation3 + $0x78] sm:$0xff]
        %v2327 = vld [vmem:[#allocation3 + $0x80] sm:$0xff]
        %v2328 = vld [vmem:[#allocation3 + $0x88] sm:$0xff]
        %v2329 = vld [vmem:[#allocation3 + $0x90] sm:$0xff]
        %v2330 = vld [vmem:[#allocation3 + $0x98] sm:$0xff]
        %v2331 = vld [vmem:[#allocation3 + $0xa0] sm:$0xff]
        %v2332 = vld [vmem:[#allocation3 + $0xa8] sm:$0xff]
        %v2333 = vld [vmem:[#allocation3 + $0xb0] sm:$0xff]
        %v2334 = vld [vmem:[#allocation3 + $0xb8] sm:$0xff]
        %v2335 = vld [vmem:[#allocation3 + $0xc0] sm:$0xff]
        %v2336 = vld [vmem:[#allocation3 + $0xc8] sm:$0xff]
        %v2337 = vld [vmem:[#allocation3 + $0xd0] sm:$0xff]
        %v2338 = vld [vmem:[#allocation3 + $0xd8] sm:$0xff]
        %v2339 = vld [vmem:[#allocation3 + $0xe0] sm:$0xff]
        %v2340 = vld [vmem:[#allocation3 + $0xe8] sm:$0xff]
        %v2341 = vld [vmem:[#allocation3 + $0xf0] sm:$0xff]
        %v2342 = vld [vmem:[#allocation3 + $0xf8] sm:$0xff]
        %v2343 = vrcp.pop %v2311
        %v2344 = vmul.f32 %v2311, %v2343
        %v2345 = vsub.f32 1.0, %v2344
        %v2346 = vmul.f32 %v2343, %v2345
        %v2347 = vadd.f32 %v2343, %v2346
        %vm2348 = vweird.f32 %v2311
        %vm2349 = vweird.f32 %v2343
        %vm2350 = vmor %vm2348, %vm2349
        %v2351 = vsel %vm2350, %v2343, %v2347
        %v2352 = vand.u32 2147483647, %v2311
        %vm2353 = vcmp.eq.f32.partialorder %v2352, 8.507059e+37
        %v2354 = vand.u32 %v2311, 2147483648
        %v2355 = vor.u32 1.1754944e-38, %v2354
        %v2356 = vsel %vm2353, %v2355, %v2351
        %v2357 = vmul.f32 1.0, %v2356
        %v2358 = vrcp.pop %v2312
        %v2359 = vmul.f32 %v2312, %v2358
        %v2360 = vsub.f32 1.0, %v2359
        %v2361 = vmul.f32 %v2358, %v2360
        %v2362 = vadd.f32 %v2358, %v2361
        %vm2363 = vweird.f32 %v2312
        %vm2364 = vweird.f32 %v2358
        %vm2365 = vmor %vm2363, %vm2364
        %v2366 = vsel %vm2365, %v2358, %v2362
        %v2367 = vand.u32 2147483647, %v2312
        %vm2368 = vcmp.eq.f32.partialorder %v2367, 8.507059e+37
        %v2369 = vand.u32 %v2312, 2147483648
        %v2370 = vor.u32 1.1754944e-38, %v2369
        %v2371 = vsel %vm2368, %v2370, %v2366
        %v2372 = vmul.f32 1.0, %v2371
        %v2373 = vrcp.pop %v2313
        %v2374 = vmul.f32 %v2313, %v2373
        %v2375 = vsub.f32 1.0, %v2374
        %v2376 = vmul.f32 %v2373, %v2375
        %v2377 = vadd.f32 %v2373, %v2376
        %vm2378 = vweird.f32 %v2313
        %vm2379 = vweird.f32 %v2373
        %vm2380 = vmor %vm2378, %vm2379
        %v2381 = vsel %vm2380, %v2373, %v2377
        %v2382 = vand.u32 2147483647, %v2313
        %vm2383 = vcmp.eq.f32.partialorder %v2382, 8.507059e+37
        %v2384 = vand.u32 %v2313, 2147483648
        %v2385 = vor.u32 1.1754944e-38, %v2384
        %v2386 = vsel %vm2383, %v2385, %v2381
        %v2387 = vmul.f32 1.0, %v2386
        %v2388 = vrcp.pop %v2314
        %v2389 = vmul.f32 %v2314, %v2388
        %v2390 = vsub.f32 1.0, %v2389
        %v2391 = vmul.f32 %v2388, %v2390
        %v2392 = vadd.f32 %v2388, %v2391
        %vm2393 = vweird.f32 %v2314
        %vm2394 = vweird.f32 %v2388
        %vm2395 = vmor %vm2393, %vm2394
        %v2396 = vsel %vm2395, %v2388, %v2392
        %v2397 = vand.u32 2147483647, %v2314
        %vm2398 = vcmp.eq.f32.partialorder %v2397, 8.507059e+37
        %v2399 = vand.u32 %v2314, 2147483648
        %v2400 = vor.u32 1.1754944e-38, %v2399
        %v2401 = vsel %vm2398, %v2400, %v2396
        %v2402 = vmul.f32 1.0, %v2401
        %v2403 = vrcp.pop %v2315
        %v2404 = vmul.f32 %v2315, %v2403
        %v2405 = vsub.f32 1.0, %v2404
        %v2406 = vmul.f32 %v2403, %v2405
        %v2407 = vadd.f32 %v2403, %v2406
        %vm2408 = vweird.f32 %v2315
        %vm2409 = vweird.f32 %v2403
        %vm2410 = vmor %vm2408, %vm2409
        %v2411 = vsel %vm2410, %v2403, %v2407
        %v2412 = vand.u32 2147483647, %v2315
        %vm2413 = vcmp.eq.f32.partialorder %v2412, 8.507059e+37
        %v2414 = vand.u32 %v2315, 2147483648
        %v2415 = vor.u32 1.1754944e-38, %v2414
        %v2416 = vsel %vm2413, %v2415, %v2411
        %v2417 = vmul.f32 1.0, %v2416
        %v2418 = vrcp.pop %v2316
        %v2419 = vmul.f32 %v2316, %v2418
        %v2420 = vsub.f32 1.0, %v2419
        %v2421 = vmul.f32 %v2418, %v2420
        %v2422 = vadd.f32 %v2418, %v2421
        %vm2423 = vweird.f32 %v2316
        %vm2424 = vweird.f32 %v2418
        %vm2425 = vmor %vm2423, %vm2424
        %v2426 = vsel %vm2425, %v2418, %v2422
        %v2427 = vand.u32 2147483647, %v2316
        %vm2428 = vcmp.eq.f32.partialorder %v2427, 8.507059e+37
        %v2429 = vand.u32 %v2316, 2147483648
        %v2430 = vor.u32 1.1754944e-38, %v2429
        %v2431 = vsel %vm2428, %v2430, %v2426
        %v2432 = vmul.f32 1.0, %v2431
        %v2433 = vrcp.pop %v2317
        %v2434 = vmul.f32 %v2317, %v2433
        %v2435 = vsub.f32 1.0, %v2434
        %v2436 = vmul.f32 %v2433, %v2435
        %v2437 = vadd.f32 %v2433, %v2436
        %vm2438 = vweird.f32 %v2317
        %vm2439 = vweird.f32 %v2433
        %vm2440 = vmor %vm2438, %vm2439
        %v2441 = vsel %vm2440, %v2433, %v2437
        %v2442 = vand.u32 2147483647, %v2317
        %vm2443 = vcmp.eq.f32.partialorder %v2442, 8.507059e+37
        %v2444 = vand.u32 %v2317, 2147483648
        %v2445 = vor.u32 1.1754944e-38, %v2444
        %v2446 = vsel %vm2443, %v2445, %v2441
        %v2447 = vmul.f32 1.0, %v2446
        %v2448 = vrcp.pop %v2318
        %v2449 = vmul.f32 %v2318, %v2448
        %v2450 = vsub.f32 1.0, %v2449
        %v2451 = vmul.f32 %v2448, %v2450
        %v2452 = vadd.f32 %v2448, %v2451
        %vm2453 = vweird.f32 %v2318
        %vm2454 = vweird.f32 %v2448
        %vm2455 = vmor %vm2453, %vm2454
        %v2456 = vsel %vm2455, %v2448, %v2452
        %v2457 = vand.u32 2147483647, %v2318
        %vm2458 = vcmp.eq.f32.partialorder %v2457, 8.507059e+37
        %v2459 = vand.u32 %v2318, 2147483648
        %v2460 = vor.u32 1.1754944e-38, %v2459
        %v2461 = vsel %vm2458, %v2460, %v2456
        %v2462 = vmul.f32 1.0, %v2461
        %v2463 = vrcp.pop %v2319
        %v2464 = vmul.f32 %v2319, %v2463
        %v2465 = vsub.f32 1.0, %v2464
        %v2466 = vmul.f32 %v2463, %v2465
        %v2467 = vadd.f32 %v2463, %v2466
        %vm2468 = vweird.f32 %v2319
        %vm2469 = vweird.f32 %v2463
        %vm2470 = vmor %vm2468, %vm2469
        %v2471 = vsel %vm2470, %v2463, %v2467
        %v2472 = vand.u32 2147483647, %v2319
        %vm2473 = vcmp.eq.f32.partialorder %v2472, 8.507059e+37
        %v2474 = vand.u32 %v2319, 2147483648
        %v2475 = vor.u32 1.1754944e-38, %v2474
        %v2476 = vsel %vm2473, %v2475, %v2471
        %v2477 = vmul.f32 1.0, %v2476
        %v2478 = vrcp.pop %v2320
        %v2479 = vmul.f32 %v2320, %v2478
        %v2480 = vsub.f32 1.0, %v2479
        %v2481 = vmul.f32 %v2478, %v2480
        %v2482 = vadd.f32 %v2478, %v2481
        %vm2483 = vweird.f32 %v2320
        %vm2484 = vweird.f32 %v2478
        %vm2485 = vmor %vm2483, %vm2484
        %v2486 = vsel %vm2485, %v2478, %v2482
        %v2487 = vand.u32 2147483647, %v2320
        %vm2488 = vcmp.eq.f32.partialorder %v2487, 8.507059e+37
        %v2489 = vand.u32 %v2320, 2147483648
        %v2490 = vor.u32 1.1754944e-38, %v2489
        %v2491 = vsel %vm2488, %v2490, %v2486
        %v2492 = vmul.f32 1.0, %v2491
        %v2493 = vrcp.pop %v2321
        %v2494 = vmul.f32 %v2321, %v2493
        %v2495 = vsub.f32 1.0, %v2494
        %v2496 = vmul.f32 %v2493, %v2495
        %v2497 = vadd.f32 %v2493, %v2496
        %vm2498 = vweird.f32 %v2321
        %vm2499 = vweird.f32 %v2493
        %vm2500 = vmor %vm2498, %vm2499
        %v2501 = vsel %vm2500, %v2493, %v2497
        %v2502 = vand.u32 2147483647, %v2321
        %vm2503 = vcmp.eq.f32.partialorder %v2502, 8.507059e+37
        %v2504 = vand.u32 %v2321, 2147483648
        %v2505 = vor.u32 1.1754944e-38, %v2504
        %v2506 = vsel %vm2503, %v2505, %v2501
        %v2507 = vmul.f32 1.0, %v2506
        %v2508 = vrcp.pop %v2322
        %v2509 = vmul.f32 %v2322, %v2508
        %v2510 = vsub.f32 1.0, %v2509
        %v2511 = vmul.f32 %v2508, %v2510
        %v2512 = vadd.f32 %v2508, %v2511
        %vm2513 = vweird.f32 %v2322
        %vm2514 = vweird.f32 %v2508
        %vm2515 = vmor %vm2513, %vm2514
        %v2516 = vsel %vm2515, %v2508, %v2512
        %v2517 = vand.u32 2147483647, %v2322
        %vm2518 = vcmp.eq.f32.partialorder %v2517, 8.507059e+37
        %v2519 = vand.u32 %v2322, 2147483648
        %v2520 = vor.u32 1.1754944e-38, %v2519
        %v2521 = vsel %vm2518, %v2520, %v2516
        %v2522 = vmul.f32 1.0, %v2521
        %v2523 = vrcp.pop %v2323
        %v2524 = vmul.f32 %v2323, %v2523
        %v2525 = vsub.f32 1.0, %v2524
        %v2526 = vmul.f32 %v2523, %v2525
        %v2527 = vadd.f32 %v2523, %v2526
        %vm2528 = vweird.f32 %v2323
        %vm2529 = vweird.f32 %v2523
        %vm2530 = vmor %vm2528, %vm2529
        %v2531 = vsel %vm2530, %v2523, %v2527
        %v2532 = vand.u32 2147483647, %v2323
        %vm2533 = vcmp.eq.f32.partialorder %v2532, 8.507059e+37
        %v2534 = vand.u32 %v2323, 2147483648
        %v2535 = vor.u32 1.1754944e-38, %v2534
        %v2536 = vsel %vm2533, %v2535, %v2531
        %v2537 = vmul.f32 1.0, %v2536
        %v2538 = vrcp.pop %v2324
        %v2539 = vmul.f32 %v2324, %v2538
        %v2540 = vsub.f32 1.0, %v2539
        %v2541 = vmul.f32 %v2538, %v2540
        %v2542 = vadd.f32 %v2538, %v2541
        %vm2543 = vweird.f32 %v2324
        %vm2544 = vweird.f32 %v2538
        %vm2545 = vmor %vm2543, %vm2544
        %v2546 = vsel %vm2545, %v2538, %v2542
        %v2547 = vand.u32 2147483647, %v2324
        %vm2548 = vcmp.eq.f32.partialorder %v2547, 8.507059e+37
        %v2549 = vand.u32 %v2324, 2147483648
        %v2550 = vor.u32 1.1754944e-38, %v2549
        %v2551 = vsel %vm2548, %v2550, %v2546
        %v2552 = vmul.f32 1.0, %v2551
        %v2553 = vrcp.pop %v2325
        %v2554 = vmul.f32 %v2325, %v2553
        %v2555 = vsub.f32 1.0, %v2554
        %v2556 = vmul.f32 %v2553, %v2555
        %v2557 = vadd.f32 %v2553, %v2556
        %vm2558 = vweird.f32 %v2325
        %vm2559 = vweird.f32 %v2553
        %vm2560 = vmor %vm2558, %vm2559
        %v2561 = vsel %vm2560, %v2553, %v2557
        %v2562 = vand.u32 2147483647, %v2325
        %vm2563 = vcmp.eq.f32.partialorder %v2562, 8.507059e+37
        %v2564 = vand.u32 %v2325, 2147483648
        %v2565 = vor.u32 1.1754944e-38, %v2564
        %v2566 = vsel %vm2563, %v2565, %v2561
        %v2567 = vmul.f32 1.0, %v2566
        %v2568 = vrcp.pop %v2326
        %v2569 = vmul.f32 %v2326, %v2568
        %v2570 = vsub.f32 1.0, %v2569
        %v2571 = vmul.f32 %v2568, %v2570
        %v2572 = vadd.f32 %v2568, %v2571
        %vm2573 = vweird.f32 %v2326
        %vm2574 = vweird.f32 %v2568
        %vm2575 = vmor %vm2573, %vm2574
        %v2576 = vsel %vm2575, %v2568, %v2572
        %v2577 = vand.u32 2147483647, %v2326
        %vm2578 = vcmp.eq.f32.partialorder %v2577, 8.507059e+37
        %v2579 = vand.u32 %v2326, 2147483648
        %v2580 = vor.u32 1.1754944e-38, %v2579
        %v2581 = vsel %vm2578, %v2580, %v2576
        %v2582 = vmul.f32 1.0, %v2581
        %v2583 = vrcp.pop %v2327
        %v2584 = vmul.f32 %v2327, %v2583
        %v2585 = vsub.f32 1.0, %v2584
        %v2586 = vmul.f32 %v2583, %v2585
        %v2587 = vadd.f32 %v2583, %v2586
        %vm2588 = vweird.f32 %v2327
        %vm2589 = vweird.f32 %v2583
        %vm2590 = vmor %vm2588, %vm2589
        %v2591 = vsel %vm2590, %v2583, %v2587
        %v2592 = vand.u32 2147483647, %v2327
        %vm2593 = vcmp.eq.f32.partialorder %v2592, 8.507059e+37
        %v2594 = vand.u32 %v2327, 2147483648
        %v2595 = vor.u32 1.1754944e-38, %v2594
        %v2596 = vsel %vm2593, %v2595, %v2591
        %v2597 = vmul.f32 1.0, %v2596
        %v2598 = vrcp.pop %v2328
        %v2599 = vmul.f32 %v2328, %v2598
        %v2600 = vsub.f32 1.0, %v2599
        %v2601 = vmul.f32 %v2598, %v2600
        %v2602 = vadd.f32 %v2598, %v2601
        %vm2603 = vweird.f32 %v2328
        %vm2604 = vweird.f32 %v2598
        %vm2605 = vmor %vm2603, %vm2604
        %v2606 = vsel %vm2605, %v2598, %v2602
        %v2607 = vand.u32 2147483647, %v2328
        %vm2608 = vcmp.eq.f32.partialorder %v2607, 8.507059e+37
        %v2609 = vand.u32 %v2328, 2147483648
        %v2610 = vor.u32 1.1754944e-38, %v2609
        %v2611 = vsel %vm2608, %v2610, %v2606
        %v2612 = vmul.f32 1.0, %v2611
        %v2613 = vrcp.pop %v2329
        %v2614 = vmul.f32 %v2329, %v2613
        %v2615 = vsub.f32 1.0, %v2614
        %v2616 = vmul.f32 %v2613, %v2615
        %v2617 = vadd.f32 %v2613, %v2616
        %vm2618 = vweird.f32 %v2329
        %vm2619 = vweird.f32 %v2613
        %vm2620 = vmor %vm2618, %vm2619
        %v2621 = vsel %vm2620, %v2613, %v2617
        %v2622 = vand.u32 2147483647, %v2329
        %vm2623 = vcmp.eq.f32.partialorder %v2622, 8.507059e+37
        %v2624 = vand.u32 %v2329, 2147483648
        %v2625 = vor.u32 1.1754944e-38, %v2624
        %v2626 = vsel %vm2623, %v2625, %v2621
        %v2627 = vmul.f32 1.0, %v2626
        %v2628 = vrcp.pop %v2330
        %v2629 = vmul.f32 %v2330, %v2628
        %v2630 = vsub.f32 1.0, %v2629
        %v2631 = vmul.f32 %v2628, %v2630
        %v2632 = vadd.f32 %v2628, %v2631
        %vm2633 = vweird.f32 %v2330
        %vm2634 = vweird.f32 %v2628
        %vm2635 = vmor %vm2633, %vm2634
        %v2636 = vsel %vm2635, %v2628, %v2632
        %v2637 = vand.u32 2147483647, %v2330
        %vm2638 = vcmp.eq.f32.partialorder %v2637, 8.507059e+37
        %v2639 = vand.u32 %v2330, 2147483648
        %v2640 = vor.u32 1.1754944e-38, %v2639
        %v2641 = vsel %vm2638, %v2640, %v2636
        %v2642 = vmul.f32 1.0, %v2641
        %v2643 = vrcp.pop %v2331
        %v2644 = vmul.f32 %v2331, %v2643
        %v2645 = vsub.f32 1.0, %v2644
        %v2646 = vmul.f32 %v2643, %v2645
        %v2647 = vadd.f32 %v2643, %v2646
        %vm2648 = vweird.f32 %v2331
        %vm2649 = vweird.f32 %v2643
        %vm2650 = vmor %vm2648, %vm2649
        %v2651 = vsel %vm2650, %v2643, %v2647
        %v2652 = vand.u32 2147483647, %v2331
        %vm2653 = vcmp.eq.f32.partialorder %v2652, 8.507059e+37
        %v2654 = vand.u32 %v2331, 2147483648
        %v2655 = vor.u32 1.1754944e-38, %v2654
        %v2656 = vsel %vm2653, %v2655, %v2651
        %v2657 = vmul.f32 1.0, %v2656
        %v2658 = vrcp.pop %v2332
        %v2659 = vmul.f32 %v2332, %v2658
        %v2660 = vsub.f32 1.0, %v2659
        %v2661 = vmul.f32 %v2658, %v2660
        %v2662 = vadd.f32 %v2658, %v2661
        %vm2663 = vweird.f32 %v2332
        %vm2664 = vweird.f32 %v2658
        %vm2665 = vmor %vm2663, %vm2664
        %v2666 = vsel %vm2665, %v2658, %v2662
        %v2667 = vand.u32 2147483647, %v2332
        %vm2668 = vcmp.eq.f32.partialorder %v2667, 8.507059e+37
        %v2669 = vand.u32 %v2332, 2147483648
        %v2670 = vor.u32 1.1754944e-38, %v2669
        %v2671 = vsel %vm2668, %v2670, %v2666
        %v2672 = vmul.f32 1.0, %v2671
        %v2673 = vrcp.pop %v2333
        %v2674 = vmul.f32 %v2333, %v2673
        %v2675 = vsub.f32 1.0, %v2674
        %v2676 = vmul.f32 %v2673, %v2675
        %v2677 = vadd.f32 %v2673, %v2676
        %vm2678 = vweird.f32 %v2333
        %vm2679 = vweird.f32 %v2673
        %vm2680 = vmor %vm2678, %vm2679
        %v2681 = vsel %vm2680, %v2673, %v2677
        %v2682 = vand.u32 2147483647, %v2333
        %vm2683 = vcmp.eq.f32.partialorder %v2682, 8.507059e+37
        %v2684 = vand.u32 %v2333, 2147483648
        %v2685 = vor.u32 1.1754944e-38, %v2684
        %v2686 = vsel %vm2683, %v2685, %v2681
        %v2687 = vmul.f32 1.0, %v2686
        %v2688 = vrcp.pop %v2334
        %v2689 = vmul.f32 %v2334, %v2688
        %v2690 = vsub.f32 1.0, %v2689
        %v2691 = vmul.f32 %v2688, %v2690
        %v2692 = vadd.f32 %v2688, %v2691
        %vm2693 = vweird.f32 %v2334
        %vm2694 = vweird.f32 %v2688
        %vm2695 = vmor %vm2693, %vm2694
        %v2696 = vsel %vm2695, %v2688, %v2692
        %v2697 = vand.u32 2147483647, %v2334
        %vm2698 = vcmp.eq.f32.partialorder %v2697, 8.507059e+37
        %v2699 = vand.u32 %v2334, 2147483648
        %v2700 = vor.u32 1.1754944e-38, %v2699
        %v2701 = vsel %vm2698, %v2700, %v2696
        %v2702 = vmul.f32 1.0, %v2701
        %v2703 = vrcp.pop %v2335
        %v2704 = vmul.f32 %v2335, %v2703
        %v2705 = vsub.f32 1.0, %v2704
        %v2706 = vmul.f32 %v2703, %v2705
        %v2707 = vadd.f32 %v2703, %v2706
        %vm2708 = vweird.f32 %v2335
        %vm2709 = vweird.f32 %v2703
        %vm2710 = vmor %vm2708, %vm2709
        %v2711 = vsel %vm2710, %v2703, %v2707
        %v2712 = vand.u32 2147483647, %v2335
        %vm2713 = vcmp.eq.f32.partialorder %v2712, 8.507059e+37
        %v2714 = vand.u32 %v2335, 2147483648
        %v2715 = vor.u32 1.1754944e-38, %v2714
        %v2716 = vsel %vm2713, %v2715, %v2711
        %v2717 = vmul.f32 1.0, %v2716
        %v2718 = vrcp.pop %v2336
        %v2719 = vmul.f32 %v2336, %v2718
        %v2720 = vsub.f32 1.0, %v2719
        %v2721 = vmul.f32 %v2718, %v2720
        %v2722 = vadd.f32 %v2718, %v2721
        %vm2723 = vweird.f32 %v2336
        %vm2724 = vweird.f32 %v2718
        %vm2725 = vmor %vm2723, %vm2724
        %v2726 = vsel %vm2725, %v2718, %v2722
        %v2727 = vand.u32 2147483647, %v2336
        %vm2728 = vcmp.eq.f32.partialorder %v2727, 8.507059e+37
        %v2729 = vand.u32 %v2336, 2147483648
        %v2730 = vor.u32 1.1754944e-38, %v2729
        %v2731 = vsel %vm2728, %v2730, %v2726
        %v2732 = vmul.f32 1.0, %v2731
        %v2733 = vrcp.pop %v2337
        %v2734 = vmul.f32 %v2337, %v2733
        %v2735 = vsub.f32 1.0, %v2734
        %v2736 = vmul.f32 %v2733, %v2735
        %v2737 = vadd.f32 %v2733, %v2736
        %vm2738 = vweird.f32 %v2337
        %vm2739 = vweird.f32 %v2733
        %vm2740 = vmor %vm2738, %vm2739
        %v2741 = vsel %vm2740, %v2733, %v2737
        %v2742 = vand.u32 2147483647, %v2337
        %vm2743 = vcmp.eq.f32.partialorder %v2742, 8.507059e+37
        %v2744 = vand.u32 %v2337, 2147483648
        %v2745 = vor.u32 1.1754944e-38, %v2744
        %v2746 = vsel %vm2743, %v2745, %v2741
        %v2747 = vmul.f32 1.0, %v2746
        %v2748 = vrcp.pop %v2338
        %v2749 = vmul.f32 %v2338, %v2748
        %v2750 = vsub.f32 1.0, %v2749
        %v2751 = vmul.f32 %v2748, %v2750
        %v2752 = vadd.f32 %v2748, %v2751
        %vm2753 = vweird.f32 %v2338
        %vm2754 = vweird.f32 %v2748
        %vm2755 = vmor %vm2753, %vm2754
        %v2756 = vsel %vm2755, %v2748, %v2752
        %v2757 = vand.u32 2147483647, %v2338
        %vm2758 = vcmp.eq.f32.partialorder %v2757, 8.507059e+37
        %v2759 = vand.u32 %v2338, 2147483648
        %v2760 = vor.u32 1.1754944e-38, %v2759
        %v2761 = vsel %vm2758, %v2760, %v2756
        %v2762 = vmul.f32 1.0, %v2761
        %v2763 = vrcp.pop %v2339
        %v2764 = vmul.f32 %v2339, %v2763
        %v2765 = vsub.f32 1.0, %v2764
        %v2766 = vmul.f32 %v2763, %v2765
        %v2767 = vadd.f32 %v2763, %v2766
        %vm2768 = vweird.f32 %v2339
        %vm2769 = vweird.f32 %v2763
        %vm2770 = vmor %vm2768, %vm2769
        %v2771 = vsel %vm2770, %v2763, %v2767
        %v2772 = vand.u32 2147483647, %v2339
        %vm2773 = vcmp.eq.f32.partialorder %v2772, 8.507059e+37
        %v2774 = vand.u32 %v2339, 2147483648
        %v2775 = vor.u32 1.1754944e-38, %v2774
        %v2776 = vsel %vm2773, %v2775, %v2771
        %v2777 = vmul.f32 1.0, %v2776
        %v2778 = vrcp.pop %v2340
        %v2779 = vmul.f32 %v2340, %v2778
        %v2780 = vsub.f32 1.0, %v2779
        %v2781 = vmul.f32 %v2778, %v2780
        %v2782 = vadd.f32 %v2778, %v2781
        %vm2783 = vweird.f32 %v2340
        %vm2784 = vweird.f32 %v2778
        %vm2785 = vmor %vm2783, %vm2784
        %v2786 = vsel %vm2785, %v2778, %v2782
        %v2787 = vand.u32 2147483647, %v2340
        %vm2788 = vcmp.eq.f32.partialorder %v2787, 8.507059e+37
        %v2789 = vand.u32 %v2340, 2147483648
        %v2790 = vor.u32 1.1754944e-38, %v2789
        %v2791 = vsel %vm2788, %v2790, %v2786
        %v2792 = vmul.f32 1.0, %v2791
        %v2793 = vrcp.pop %v2341
        %v2794 = vmul.f32 %v2341, %v2793
        %v2795 = vsub.f32 1.0, %v2794
        %v2796 = vmul.f32 %v2793, %v2795
        %v2797 = vadd.f32 %v2793, %v2796
        %vm2798 = vweird.f32 %v2341
        %vm2799 = vweird.f32 %v2793
        %vm2800 = vmor %vm2798, %vm2799
        %v2801 = vsel %vm2800, %v2793, %v2797
        %v2802 = vand.u32 2147483647, %v2341
        %vm2803 = vcmp.eq.f32.partialorder %v2802, 8.507059e+37
        %v2804 = vand.u32 %v2341, 2147483648
        %v2805 = vor.u32 1.1754944e-38, %v2804
        %v2806 = vsel %vm2803, %v2805, %v2801
        %v2807 = vmul.f32 1.0, %v2806
        %v2808 = vrcp.pop %v2342
        %v2809 = vmul.f32 %v2342, %v2808
        %v2810 = vsub.f32 1.0, %v2809
        %v2811 = vmul.f32 %v2808, %v2810
        %v2812 = vadd.f32 %v2808, %v2811
        %vm2813 = vweird.f32 %v2342
        %vm2814 = vweird.f32 %v2808
        %vm2815 = vmor %vm2813, %vm2814
        %v2816 = vsel %vm2815, %v2808, %v2812
        %v2817 = vand.u32 2147483647, %v2342
        %vm2818 = vcmp.eq.f32.partialorder %v2817, 8.507059e+37
        %v2819 = vand.u32 %v2342, 2147483648
        %v2820 = vor.u32 1.1754944e-38, %v2819
        %v2821 = vsel %vm2818, %v2820, %v2816
        %v2822 = vmul.f32 1.0, %v2821
        %2824 = vset.pattern.permute.xlu0 0
        %2825 = vperm.xlu0 %2824, %v2357
        %v2826 = vpop.permute.xlu0 %2825
        %2829 = vset.pattern.permute.xlu0 0
        %2830 = vperm.xlu0 %2829, %v2372
        %v2831 = vpop.permute.xlu0 %2830
        %2834 = vset.pattern.permute.xlu0 0
        %2835 = vperm.xlu0 %2834, %v2387
        %v2836 = vpop.permute.xlu0 %2835
        %2839 = vset.pattern.permute.xlu0 0
        %2840 = vperm.xlu0 %2839, %v2402
        %v2841 = vpop.permute.xlu0 %2840
        %2844 = vset.pattern.permute.xlu0 0
        %2845 = vperm.xlu0 %2844, %v2417
        %v2846 = vpop.permute.xlu0 %2845
        %2849 = vset.pattern.permute.xlu0 0
        %2850 = vperm.xlu0 %2849, %v2432
        %v2851 = vpop.permute.xlu0 %2850
        %2854 = vset.pattern.permute.xlu0 0
        %2855 = vperm.xlu0 %2854, %v2447
        %v2856 = vpop.permute.xlu0 %2855
        %2859 = vset.pattern.permute.xlu0 0
        %2860 = vperm.xlu0 %2859, %v2462
        %v2861 = vpop.permute.xlu0 %2860
        %2864 = vset.pattern.permute.xlu0 0
        %2865 = vperm.xlu0 %2864, %v2477
        %v2866 = vpop.permute.xlu0 %2865
        %2869 = vset.pattern.permute.xlu0 0
        %2870 = vperm.xlu0 %2869, %v2492
        %v2871 = vpop.permute.xlu0 %2870
        %2874 = vset.pattern.permute.xlu0 0
        %2875 = vperm.xlu0 %2874, %v2507
        %v2876 = vpop.permute.xlu0 %2875
        %2879 = vset.pattern.permute.xlu0 0
        %2880 = vperm.xlu0 %2879, %v2522
        %v2881 = vpop.permute.xlu0 %2880
        %2884 = vset.pattern.permute.xlu0 0
        %2885 = vperm.xlu0 %2884, %v2537
        %v2886 = vpop.permute.xlu0 %2885
        %2889 = vset.pattern.permute.xlu0 0
        %2890 = vperm.xlu0 %2889, %v2552
        %v2891 = vpop.permute.xlu0 %2890
        %2894 = vset.pattern.permute.xlu0 0
        %2895 = vperm.xlu0 %2894, %v2567
        %v2896 = vpop.permute.xlu0 %2895
        %2899 = vset.pattern.permute.xlu0 0
        %2900 = vperm.xlu0 %2899, %v2582
        %v2901 = vpop.permute.xlu0 %2900
        %2904 = vset.pattern.permute.xlu0 0
        %2905 = vperm.xlu0 %2904, %v2597
        %v2906 = vpop.permute.xlu0 %2905
        %2909 = vset.pattern.permute.xlu0 0
        %2910 = vperm.xlu0 %2909, %v2612
        %v2911 = vpop.permute.xlu0 %2910
        %2914 = vset.pattern.permute.xlu0 0
        %2915 = vperm.xlu0 %2914, %v2627
        %v2916 = vpop.permute.xlu0 %2915
        %2919 = vset.pattern.permute.xlu0 0
        %2920 = vperm.xlu0 %2919, %v2642
        %v2921 = vpop.permute.xlu0 %2920
        %2924 = vset.pattern.permute.xlu0 0
        %2925 = vperm.xlu0 %2924, %v2657
        %v2926 = vpop.permute.xlu0 %2925
        %2929 = vset.pattern.permute.xlu0 0
        %2930 = vperm.xlu0 %2929, %v2672
        %v2931 = vpop.permute.xlu0 %2930
        %2934 = vset.pattern.permute.xlu0 0
        %2935 = vperm.xlu0 %2934, %v2687
        %v2936 = vpop.permute.xlu0 %2935
        %2939 = vset.pattern.permute.xlu0 0
        %2940 = vperm.xlu0 %2939, %v2702
        %v2941 = vpop.permute.xlu0 %2940
        %2944 = vset.pattern.permute.xlu0 0
        %2945 = vperm.xlu0 %2944, %v2717
        %v2946 = vpop.permute.xlu0 %2945
        %2949 = vset.pattern.permute.xlu0 0
        %2950 = vperm.xlu0 %2949, %v2732
        %v2951 = vpop.permute.xlu0 %2950
        %2954 = vset.pattern.permute.xlu0 0
        %2955 = vperm.xlu0 %2954, %v2747
        %v2956 = vpop.permute.xlu0 %2955
        %2959 = vset.pattern.permute.xlu0 0
        %2960 = vperm.xlu0 %2959, %v2762
        %v2961 = vpop.permute.xlu0 %2960
        %2964 = vset.pattern.permute.xlu0 0
        %2965 = vperm.xlu0 %2964, %v2777
        %v2966 = vpop.permute.xlu0 %2965
        %2969 = vset.pattern.permute.xlu0 0
        %2970 = vperm.xlu0 %2969, %v2792
        %v2971 = vpop.permute.xlu0 %2970
        %2974 = vset.pattern.permute.xlu0 0
        %2975 = vperm.xlu0 %2974, %v2807
        %v2976 = vpop.permute.xlu0 %2975
        %2979 = vset.pattern.permute.xlu0 0
        %2980 = vperm.xlu0 %2979, %v2822
        %v2981 = vpop.permute.xlu0 %2980
        %v2983 = vmul.f32 %v2279, %v2826
        %v2984 = vmul.f32 %v2280, %v2831
        %v2985 = vmul.f32 %v2281, %v2836
        %v2986 = vmul.f32 %v2282, %v2841
        %v2987 = vmul.f32 %v2283, %v2846
        %v2988 = vmul.f32 %v2284, %v2851
        %v2989 = vmul.f32 %v2285, %v2856
        %v2990 = vmul.f32 %v2286, %v2861
        %v2991 = vmul.f32 %v2287, %v2866
        %v2992 = vmul.f32 %v2288, %v2871
        %v2993 = vmul.f32 %v2289, %v2876
        %v2994 = vmul.f32 %v2290, %v2881
        %v2995 = vmul.f32 %v2291, %v2886
        %v2996 = vmul.f32 %v2292, %v2891
        %v2997 = vmul.f32 %v2293, %v2896
        %v2998 = vmul.f32 %v2294, %v2901
        %v2999 = vmul.f32 %v2295, %v2906
        %v3000 = vmul.f32 %v2296, %v2911
        %v3001 = vmul.f32 %v2297, %v2916
        %v3002 = vmul.f32 %v2298, %v2921
        %v3003 = vmul.f32 %v2299, %v2926
        %v3004 = vmul.f32 %v2300, %v2931
        %v3005 = vmul.f32 %v2301, %v2936
        %v3006 = vmul.f32 %v2302, %v2941
        %v3007 = vmul.f32 %v2303, %v2946
        %v3008 = vmul.f32 %v2304, %v2951
        %v3009 = vmul.f32 %v2305, %v2956
        %v3010 = vmul.f32 %v2306, %v2961
        %v3011 = vmul.f32 %v2307, %v2966
        %v3012 = vmul.f32 %v2308, %v2971
        %v3013 = vmul.f32 %v2309, %v2976
        %v3014 = vmul.f32 %v2310, %v2981
        %v3015 = vpack.c.bf16 %v2984, %v2983
        %v3016 = vpack.c.bf16 %v2986, %v2985
        %v3017 = vpack.c.bf16 %v2988, %v2987
        %v3018 = vpack.c.bf16 %v2990, %v2989
        %v3019 = vpack.c.bf16 %v2992, %v2991
        %v3020 = vpack.c.bf16 %v2994, %v2993
        %v3021 = vpack.c.bf16 %v2996, %v2995
        %v3022 = vpack.c.bf16 %v2998, %v2997
        %v3023 = vpack.c.bf16 %v3000, %v2999
        %v3024 = vpack.c.bf16 %v3002, %v3001
        %v3025 = vpack.c.bf16 %v3004, %v3003
        %v3026 = vpack.c.bf16 %v3006, %v3005
        %v3027 = vpack.c.bf16 %v3008, %v3007
        %v3028 = vpack.c.bf16 %v3010, %v3009
        %v3029 = vpack.c.bf16 %v3012, %v3011
        %v3030 = vpack.c.bf16 %v3014, %v3013
        %v3031 = vld [vmem:[%s3] sm:$0xf]
        %v3032 = vld [vmem:[%s3 + $0x4] sm:$0xf]
        %v3033 = vld [vmem:[%s3 + $0x8] sm:$0xf]
        %v3034 = vld [vmem:[%s3 + $0xc] sm:$0xf]
        %v3035 = vld [vmem:[%s3 + $0x10] sm:$0xf]
        %v3036 = vld [vmem:[%s3 + $0x14] sm:$0xf]
        %v3037 = vld [vmem:[%s3 + $0x18] sm:$0xf]
        %v3038 = vld [vmem:[%s3 + $0x1c] sm:$0xf]
        %v3039 = vld [vmem:[%s3 + $0x20] sm:$0xf]
        %v3040 = vld [vmem:[%s3 + $0x24] sm:$0xf]
        %v3041 = vld [vmem:[%s3 + $0x28] sm:$0xf]
        %v3042 = vld [vmem:[%s3 + $0x2c] sm:$0xf]
        %v3043 = vld [vmem:[%s3 + $0x30] sm:$0xf]
        %v3044 = vld [vmem:[%s3 + $0x34] sm:$0xf]
        %v3045 = vld [vmem:[%s3 + $0x38] sm:$0xf]
        %v3046 = vld [vmem:[%s3 + $0x3c] sm:$0xf]
        %v3063 = vunpack.c.l.b16 %v3031
        %v3064 = vunpack.c.l.b16 %v3032
        %v3065 = vunpack.c.l.b16 %v3033
        %v3066 = vunpack.c.l.b16 %v3034
        %v3067 = vunpack.c.l.b16 %v3035
        %v3068 = vunpack.c.l.b16 %v3036
        %v3069 = vunpack.c.l.b16 %v3037
        %v3070 = vunpack.c.l.b16 %v3038
        %v3071 = vunpack.c.l.b16 %v3039
        %v3072 = vunpack.c.l.b16 %v3040
        %v3073 = vunpack.c.l.b16 %v3041
        %v3074 = vunpack.c.l.b16 %v3042
        %v3075 = vunpack.c.l.b16 %v3043
        %v3076 = vunpack.c.l.b16 %v3044
        %v3077 = vunpack.c.l.b16 %v3045
        %v3078 = vunpack.c.l.b16 %v3046
        %v3079 = vpack.c.b16 %v3064, %v3063
        %v3080 = vpack.c.b16 %v3066, %v3065
        %v3081 = vpack.c.b16 %v3068, %v3067
        %v3082 = vpack.c.b16 %v3070, %v3069
        %v3083 = vpack.c.b16 %v3072, %v3071
        %v3084 = vpack.c.b16 %v3074, %v3073
        %v3085 = vpack.c.b16 %v3076, %v3075
        %v3086 = vpack.c.b16 %v3078, %v3077
        %3095 = vmatpush.bf16.xpose.msra.mxu0 %v3022
        %3096 = vmatpush.bf16.xpose.msra.mxu0 %v3021
        %3097 = vmatpush.bf16.xpose.msra.mxu0 %v3020
        %3098 = vmatpush.bf16.xpose.msra.mxu0 %v3019
        %3099 = vmatpush.bf16.xpose.msra.mxu0 %v3018
        %3100 = vmatpush.bf16.xpose.msra.mxu0 %v3017
        %3101 = vmatpush.bf16.xpose.msra.mxu0 %v3016
        %3102 = vmatpush.bf16.xpose.msra.mxu0 %v3015
        %3103 = vmatmul.bf16.gmra.mxu0 %v3079
        %v3104 = vpop.f32.mrf.mxu0
        %v3105 = vadd.f32 0.0, %v3104
        %v3106 = vpop.f32.mrf.mxu0
        %v3107 = vadd.f32 0.0, %v3106
        %3108 = vmatmul.bf16.gmra.mxu0 %v3080
        %v3109 = vpop.f32.mrf.mxu0
        %v3110 = vadd.f32 0.0, %v3109
        %v3111 = vpop.f32.mrf.mxu0
        %v3112 = vadd.f32 0.0, %v3111
        %3113 = vmatmul.bf16.gmra.mxu0 %v3081
        %v3114 = vpop.f32.mrf.mxu0
        %v3115 = vadd.f32 0.0, %v3114
        %v3116 = vpop.f32.mrf.mxu0
        %v3117 = vadd.f32 0.0, %v3116
        %3118 = vmatmul.bf16.gmra.mxu0 %v3082
        %v3119 = vpop.f32.mrf.mxu0
        %v3120 = vadd.f32 0.0, %v3119
        %v3121 = vpop.f32.mrf.mxu0
        %v3122 = vadd.f32 0.0, %v3121
        %3123 = vmatmul.bf16.gmra.mxu0 %v3083
        %v3124 = vpop.f32.mrf.mxu0
        %v3125 = vadd.f32 0.0, %v3124
        %v3126 = vpop.f32.mrf.mxu0
        %v3127 = vadd.f32 0.0, %v3126
        %3128 = vmatmul.bf16.gmra.mxu0 %v3084
        %v3129 = vpop.f32.mrf.mxu0
        %v3130 = vadd.f32 0.0, %v3129
        %v3131 = vpop.f32.mrf.mxu0
        %v3132 = vadd.f32 0.0, %v3131
        %3133 = vmatmul.bf16.gmra.mxu0 %v3085
        %v3134 = vpop.f32.mrf.mxu0
        %v3135 = vadd.f32 0.0, %v3134
        %v3136 = vpop.f32.mrf.mxu0
        %v3137 = vadd.f32 0.0, %v3136
        %3138 = vmatmul.bf16.gmra.mxu0 %v3086
        %v3139 = vpop.f32.mrf.mxu0
        %v3140 = vadd.f32 0.0, %v3139
        %v3141 = vpop.f32.mrf.mxu0
        %v3142 = vadd.f32 0.0, %v3141
        %3143 = vdwg.mxu0
        %3144 = vmatpush.bf16.xpose.msra.mxu0 %v3030
        %3145 = vmatpush.bf16.xpose.msra.mxu0 %v3029
        %3146 = vmatpush.bf16.xpose.msra.mxu0 %v3028
        %3147 = vmatpush.bf16.xpose.msra.mxu0 %v3027
        %3148 = vmatpush.bf16.xpose.msra.mxu0 %v3026
        %3149 = vmatpush.bf16.xpose.msra.mxu0 %v3025
        %3150 = vmatpush.bf16.xpose.msra.mxu0 %v3024
        %3151 = vmatpush.bf16.xpose.msra.mxu0 %v3023
        %3152 = vmatmul.bf16.gmra.mxu0 %v3079
        %v3153 = vpop.f32.mrf.mxu0
        %v3154 = vadd.f32 0.0, %v3153
        %v3155 = vpop.f32.mrf.mxu0
        %v3156 = vadd.f32 0.0, %v3155
        %3157 = vmatmul.bf16.gmra.mxu0 %v3080
        %v3158 = vpop.f32.mrf.mxu0
        %v3159 = vadd.f32 0.0, %v3158
        %v3160 = vpop.f32.mrf.mxu0
        %v3161 = vadd.f32 0.0, %v3160
        %3162 = vmatmul.bf16.gmra.mxu0 %v3081
        %v3163 = vpop.f32.mrf.mxu0
        %v3164 = vadd.f32 0.0, %v3163
        %v3165 = vpop.f32.mrf.mxu0
        %v3166 = vadd.f32 0.0, %v3165
        %3167 = vmatmul.bf16.gmra.mxu0 %v3082
        %v3168 = vpop.f32.mrf.mxu0
        %v3169 = vadd.f32 0.0, %v3168
        %v3170 = vpop.f32.mrf.mxu0
        %v3171 = vadd.f32 0.0, %v3170
        %3172 = vmatmul.bf16.gmra.mxu0 %v3083
        %v3173 = vpop.f32.mrf.mxu0
        %v3174 = vadd.f32 0.0, %v3173
        %v3175 = vpop.f32.mrf.mxu0
        %v3176 = vadd.f32 0.0, %v3175
        %3177 = vmatmul.bf16.gmra.mxu0 %v3084
        %v3178 = vpop.f32.mrf.mxu0
        %v3179 = vadd.f32 0.0, %v3178
        %v3180 = vpop.f32.mrf.mxu0
        %v3181 = vadd.f32 0.0, %v3180
        %3182 = vmatmul.bf16.gmra.mxu0 %v3085
        %v3183 = vpop.f32.mrf.mxu0
        %v3184 = vadd.f32 0.0, %v3183
        %v3185 = vpop.f32.mrf.mxu0
        %v3186 = vadd.f32 0.0, %v3185
        %3187 = vmatmul.bf16.gmra.mxu0 %v3086
        %v3188 = vpop.f32.mrf.mxu0
        %v3189 = vadd.f32 0.0, %v3188
        %v3190 = vpop.f32.mrf.mxu0
        %v3191 = vadd.f32 0.0, %v3190
        %3192 = vdwg.mxu0
        %v3193 = vld [vmem:[%s334] sm:$0xff]
        %v3194 = vld [vmem:[%s334 + $0x8] sm:$0xff]
        %v3195 = vld [vmem:[%s334 + $0x10] sm:$0xff]
        %v3196 = vld [vmem:[%s334 + $0x18] sm:$0xff]
        %v3197 = vld [vmem:[%s334 + $0x20] sm:$0xff]
        %v3198 = vld [vmem:[%s334 + $0x28] sm:$0xff]
        %v3199 = vld [vmem:[%s334 + $0x30] sm:$0xff]
        %v3200 = vld [vmem:[%s334 + $0x38] sm:$0xff]
        %v3201 = vld [vmem:[%s334 + $0x40] sm:$0xff]
        %v3202 = vld [vmem:[%s334 + $0x48] sm:$0xff]
        %v3203 = vld [vmem:[%s334 + $0x50] sm:$0xff]
        %v3204 = vld [vmem:[%s334 + $0x58] sm:$0xff]
        %v3205 = vld [vmem:[%s334 + $0x60] sm:$0xff]
        %v3206 = vld [vmem:[%s334 + $0x68] sm:$0xff]
        %v3207 = vld [vmem:[%s334 + $0x70] sm:$0xff]
        %v3208 = vld [vmem:[%s334 + $0x78] sm:$0xff]
        %v3209 = vld [vmem:[%s334 + $0x80] sm:$0xff]
        %v3210 = vld [vmem:[%s334 + $0x88] sm:$0xff]
        %v3211 = vld [vmem:[%s334 + $0x90] sm:$0xff]
        %v3212 = vld [vmem:[%s334 + $0x98] sm:$0xff]
        %v3213 = vld [vmem:[%s334 + $0xa0] sm:$0xff]
        %v3214 = vld [vmem:[%s334 + $0xa8] sm:$0xff]
        %v3215 = vld [vmem:[%s334 + $0xb0] sm:$0xff]
        %v3216 = vld [vmem:[%s334 + $0xb8] sm:$0xff]
        %v3217 = vld [vmem:[%s334 + $0xc0] sm:$0xff]
        %v3218 = vld [vmem:[%s334 + $0xc8] sm:$0xff]
        %v3219 = vld [vmem:[%s334 + $0xd0] sm:$0xff]
        %v3220 = vld [vmem:[%s334 + $0xd8] sm:$0xff]
        %v3221 = vld [vmem:[%s334 + $0xe0] sm:$0xff]
        %v3222 = vld [vmem:[%s334 + $0xe8] sm:$0xff]
        %v3223 = vld [vmem:[%s334 + $0xf0] sm:$0xff]
        %v3224 = vld [vmem:[%s334 + $0xf8] sm:$0xff]
        %v3225 = vadd.f32 %v3193, %v3105
        %v3226 = vadd.f32 %v3194, %v3154
        %v3227 = vadd.f32 %v3195, %v3107
        %v3228 = vadd.f32 %v3196, %v3156
        %v3229 = vadd.f32 %v3197, %v3110
        %v3230 = vadd.f32 %v3198, %v3159
        %v3231 = vadd.f32 %v3199, %v3112
        %v3232 = vadd.f32 %v3200, %v3161
        %v3233 = vadd.f32 %v3201, %v3115
        %v3234 = vadd.f32 %v3202, %v3164
        %v3235 = vadd.f32 %v3203, %v3117
        %v3236 = vadd.f32 %v3204, %v3166
        %v3237 = vadd.f32 %v3205, %v3120
        %v3238 = vadd.f32 %v3206, %v3169
        %v3239 = vadd.f32 %v3207, %v3122
        %v3240 = vadd.f32 %v3208, %v3171
        %v3241 = vadd.f32 %v3209, %v3125
        %v3242 = vadd.f32 %v3210, %v3174
        %v3243 = vadd.f32 %v3211, %v3127
        %v3244 = vadd.f32 %v3212, %v3176
        %v3245 = vadd.f32 %v3213, %v3130
        %v3246 = vadd.f32 %v3214, %v3179
        %v3247 = vadd.f32 %v3215, %v3132
        %v3248 = vadd.f32 %v3216, %v3181
        %v3249 = vadd.f32 %v3217, %v3135
        %v3250 = vadd.f32 %v3218, %v3184
        %v3251 = vadd.f32 %v3219, %v3137
        %v3252 = vadd.f32 %v3220, %v3186
        %v3253 = vadd.f32 %v3221, %v3140
        %v3254 = vadd.f32 %v3222, %v3189
        %v3255 = vadd.f32 %v3223, %v3142
        %v3256 = vadd.f32 %v3224, %v3191
        %v3257 = vld [vmem:[%s4] sm:$0xff]
        %v3258 = vld [vmem:[%s4 + $0x8] sm:$0xff]
        %v3259 = vld [vmem:[%s4 + $0x10] sm:$0xff]
        %v3260 = vld [vmem:[%s4 + $0x18] sm:$0xff]
        %v3261 = vld [vmem:[%s4 + $0x20] sm:$0xff]
        %v3262 = vld [vmem:[%s4 + $0x28] sm:$0xff]
        %v3263 = vld [vmem:[%s4 + $0x30] sm:$0xff]
        %v3264 = vld [vmem:[%s4 + $0x38] sm:$0xff]
        %v3265 = vld [vmem:[%s4 + $0x40] sm:$0xff]
        %v3266 = vld [vmem:[%s4 + $0x48] sm:$0xff]
        %v3267 = vld [vmem:[%s4 + $0x50] sm:$0xff]
        %v3268 = vld [vmem:[%s4 + $0x58] sm:$0xff]
        %v3269 = vld [vmem:[%s4 + $0x60] sm:$0xff]
        %v3270 = vld [vmem:[%s4 + $0x68] sm:$0xff]
        %v3271 = vld [vmem:[%s4 + $0x70] sm:$0xff]
        %v3272 = vld [vmem:[%s4 + $0x78] sm:$0xff]
        %3274 = vset.pattern.permute.xlu0 0
        %3275 = vperm.xlu0 %3274, %v3257
        %v3276 = vpop.permute.xlu0 %3275
        %3279 = vset.pattern.permute.xlu0 0
        %3280 = vperm.xlu0 %3279, %v3258
        %v3281 = vpop.permute.xlu0 %3280
        %3284 = vset.pattern.permute.xlu0 0
        %3285 = vperm.xlu0 %3284, %v3259
        %v3286 = vpop.permute.xlu0 %3285
        %3289 = vset.pattern.permute.xlu0 0
        %3290 = vperm.xlu0 %3289, %v3260
        %v3291 = vpop.permute.xlu0 %3290
        %3294 = vset.pattern.permute.xlu0 0
        %3295 = vperm.xlu0 %3294, %v3261
        %v3296 = vpop.permute.xlu0 %3295
        %3299 = vset.pattern.permute.xlu0 0
        %3300 = vperm.xlu0 %3299, %v3262
        %v3301 = vpop.permute.xlu0 %3300
        %3304 = vset.pattern.permute.xlu0 0
        %3305 = vperm.xlu0 %3304, %v3263
        %v3306 = vpop.permute.xlu0 %3305
        %3309 = vset.pattern.permute.xlu0 0
        %3310 = vperm.xlu0 %3309, %v3264
        %v3311 = vpop.permute.xlu0 %3310
        %3314 = vset.pattern.permute.xlu0 0
        %3315 = vperm.xlu0 %3314, %v3265
        %v3316 = vpop.permute.xlu0 %3315
        %3319 = vset.pattern.permute.xlu0 0
        %3320 = vperm.xlu0 %3319, %v3266
        %v3321 = vpop.permute.xlu0 %3320
        %3324 = vset.pattern.permute.xlu0 0
        %3325 = vperm.xlu0 %3324, %v3267
        %v3326 = vpop.permute.xlu0 %3325
        %3329 = vset.pattern.permute.xlu0 0
        %3330 = vperm.xlu0 %3329, %v3268
        %v3331 = vpop.permute.xlu0 %3330
        %3334 = vset.pattern.permute.xlu0 0
        %3335 = vperm.xlu0 %3334, %v3269
        %v3336 = vpop.permute.xlu0 %3335
        %3339 = vset.pattern.permute.xlu0 0
        %3340 = vperm.xlu0 %3339, %v3270
        %v3341 = vpop.permute.xlu0 %3340
        %3344 = vset.pattern.permute.xlu0 0
        %3345 = vperm.xlu0 %3344, %v3271
        %v3346 = vpop.permute.xlu0 %3345
        %3349 = vset.pattern.permute.xlu0 0
        %3350 = vperm.xlu0 %3349, %v3272
        %v3351 = vpop.permute.xlu0 %3350
        %v3353 = vadd.f32 %v3225, %v3276
        %v3354 = vadd.f32 %v3226, %v3276
        %v3355 = vadd.f32 %v3227, %v3281
        %v3356 = vadd.f32 %v3228, %v3281
        %v3357 = vadd.f32 %v3229, %v3286
        %v3358 = vadd.f32 %v3230, %v3286
        %v3359 = vadd.f32 %v3231, %v3291
        %v3360 = vadd.f32 %v3232, %v3291
        %v3361 = vadd.f32 %v3233, %v3296
        %v3362 = vadd.f32 %v3234, %v3296
        %v3363 = vadd.f32 %v3235, %v3301
        %v3364 = vadd.f32 %v3236, %v3301
        %v3365 = vadd.f32 %v3237, %v3306
        %v3366 = vadd.f32 %v3238, %v3306
        %v3367 = vadd.f32 %v3239, %v3311
        %v3368 = vadd.f32 %v3240, %v3311
        %v3369 = vadd.f32 %v3241, %v3316
        %v3370 = vadd.f32 %v3242, %v3316
        %v3371 = vadd.f32 %v3243, %v3321
        %v3372 = vadd.f32 %v3244, %v3321
        %v3373 = vadd.f32 %v3245, %v3326
        %v3374 = vadd.f32 %v3246, %v3326
        %v3375 = vadd.f32 %v3247, %v3331
        %v3376 = vadd.f32 %v3248, %v3331
        %v3377 = vadd.f32 %v3249, %v3336
        %v3378 = vadd.f32 %v3250, %v3336
        %v3379 = vadd.f32 %v3251, %v3341
        %v3380 = vadd.f32 %v3252, %v3341
        %v3381 = vadd.f32 %v3253, %v3346
        %v3382 = vadd.f32 %v3254, %v3346
        %v3383 = vadd.f32 %v3255, %v3351
        %v3384 = vadd.f32 %v3256, %v3351
        %3385 = vst [vmem:[%s344] sm:$0xff] %v3353
        %3386 = vst [vmem:[%s344 + $0x8] sm:$0xff] %v3354
        %3387 = vst [vmem:[%s344 + $0x10] sm:$0xff] %v3355
        %3388 = vst [vmem:[%s344 + $0x18] sm:$0xff] %v3356
        %3389 = vst [vmem:[%s344 + $0x20] sm:$0xff] %v3357
        %3390 = vst [vmem:[%s344 + $0x28] sm:$0xff] %v3358
        %3391 = vst [vmem:[%s344 + $0x30] sm:$0xff] %v3359
        %3392 = vst [vmem:[%s344 + $0x38] sm:$0xff] %v3360
        %3393 = vst [vmem:[%s344 + $0x40] sm:$0xff] %v3361
        %3394 = vst [vmem:[%s344 + $0x48] sm:$0xff] %v3362
        %3395 = vst [vmem:[%s344 + $0x50] sm:$0xff] %v3363
        %3396 = vst [vmem:[%s344 + $0x58] sm:$0xff] %v3364
        %3397 = vst [vmem:[%s344 + $0x60] sm:$0xff] %v3365
        %3398 = vst [vmem:[%s344 + $0x68] sm:$0xff] %v3366
        %3399 = vst [vmem:[%s344 + $0x70] sm:$0xff] %v3367
        %3400 = vst [vmem:[%s344 + $0x78] sm:$0xff] %v3368
        %3401 = vst [vmem:[%s344 + $0x80] sm:$0xff] %v3369
        %3402 = vst [vmem:[%s344 + $0x88] sm:$0xff] %v3370
        %3403 = vst [vmem:[%s344 + $0x90] sm:$0xff] %v3371
        %3404 = vst [vmem:[%s344 + $0x98] sm:$0xff] %v3372
        %3405 = vst [vmem:[%s344 + $0xa0] sm:$0xff] %v3373
        %3406 = vst [vmem:[%s344 + $0xa8] sm:$0xff] %v3374
        %3407 = vst [vmem:[%s344 + $0xb0] sm:$0xff] %v3375
        %3408 = vst [vmem:[%s344 + $0xb8] sm:$0xff] %v3376
        %3409 = vst [vmem:[%s344 + $0xc0] sm:$0xff] %v3377
        %3410 = vst [vmem:[%s344 + $0xc8] sm:$0xff] %v3378
        %3411 = vst [vmem:[%s344 + $0xd0] sm:$0xff] %v3379
        %3412 = vst [vmem:[%s344 + $0xd8] sm:$0xff] %v3380
        %3413 = vst [vmem:[%s344 + $0xe0] sm:$0xff] %v3381
        %3414 = vst [vmem:[%s344 + $0xe8] sm:$0xff] %v3382
        %3415 = vst [vmem:[%s344 + $0xf0] sm:$0xff] %v3383
        %3416 = vst [vmem:[%s344 + $0xf8] sm:$0xff] %v3384
      $region48: #{attn_block.5} parent=39 // pred_fallthru
        _
      %s3417 = smul.u32 2, %s22
      %p3418 = scmp.lt.s32.totalorder %s21, 1
      %s3419 = scalar_select %p3418, %s21, 1
      %p3420 = scmp.lt.s32.totalorder %s3417, 1
      %s3421 = scalar_select %p3420, %s3417, 1
      %s3422 = smul.addr %s3419, 32
      %s3423 = sadd.s32 %s3421, %s3422
      %s3424 = smul.addr %s3423, 8
      %s3425 = scalar_lea.vmem %s5, %s3424
      // Predicated region
      $region49: #{attn_block.5} parent=39 // pred_check
        %p3426 = pneg %p181
      $region50: #{attn_block.5} parent=39 // pred_check_branch
        %3428 = sbr.rel (%p3426) target = $region52
      $region51: #{attn_block.5} parent=39 // pred_region
        %s3429 = smul.u32 2, %s22
      $region52: #{attn_block.5} parent=39 // pred_fallthru
        _
    $region40: #{attn_block.5} parent=5 // pred_fallthru
      _
    %p3430 = scmp.le.s32.totalorder 2, %s11
    // Predicated region
    $region53: #{attn_block.5} parent=5 // pred_check
      %p3431 = pneg %p3430
    $region54: #{attn_block.5} parent=5 // pred_check_branch
      %3433 = sbr.rel (%p3431) target = $region56
    $region55: #{attn_block.5} parent=5 // pred_region
      %s3434 = ssub.s32 %s11, 2
      // Predicated region
      $region57: #{attn_block.5} parent=55 // pred_check
        %p3435 = pneg %p187
      $region58: #{attn_block.5} parent=55 // pred_check_branch
        %3437 = sbr.rel (%p3435) target = $region60
      $region59: #{attn_block.5} parent=55 // pred_region
        %s3438 = smul.u32 2, %s25
        %p3439 = scmp.lt.s32.totalorder %s24, 1
        %s3440 = scalar_select %p3439, %s24, 1
        %p3441 = scmp.lt.s32.totalorder %s3438, 1
        %s3442 = scalar_select %p3441, %s3438, 1
        %s3443 = smul.addr %s3440, 32
        %s3444 = sadd.s32 %s3442, %s3443
        %s3445 = smul.addr %s3444, 8
        %s3446 = scalar_lea.vmem %s5, %s3445
      $region60: #{attn_block.5} parent=55 // pred_fallthru
        _
    $region56: #{attn_block.5} parent=5 // pred_fallthru
      _
  $region6: #{attn_block.5} parent=0 // loop_footer
    %s15 = sadd.s32 1, %s11
  $region7: #{attn_block.5} parent=0 // loop_footer_branch
    %10 = sbr.rel target = $region3
  $region8: #{attn_block.5} parent=0 // loop_exit
    _

</llo_original>
